<compile_context>
chip_gen: v6e
topology: v6e:2x2x1
jax: 0.10.0
libtpu: 0.0.40
codegen_flags: <defaults>
</compile_context>

<pallas_src>
import numpy as np
import jax
import jax.numpy as jnp
from jax.experimental import pallas as pl
from jax.experimental.pallas import tpu as pltpu

# ----------------------------- synthetic SMPL-H sizes (small) ----------------
V = 512                      # mesh vertices (real SMPL-H: 6890)
J = 52                       # joints: 1 root + 21 body + 30 hands
NUM_BETAS = 16
NUM_DMPLS = 8
NSHAPE = NUM_BETAS + NUM_DMPLS       # 24 shape components (betas + dmpls)
NPOSE = 9 * (J - 1)                  # 459 pose-blendshape features
VF = V * 3                           # 1536 flattened vertex coords (coord-major: k*V+v)
J3 = J * 3                           # 156
J3P = 256                            # lane-padded joints output width
TB = 8                               # bodies per grid step (f32 sublane multiple)


# ----------------------------- Pallas kernels --------------------------------
def blend_joints_kernel(betas_ref, pfeat_ref, shapedirs_ref, posedirs_ref,
                        jreg_ref, vt_ref, vposed_ref, joints_ref):
    # betas (TB,NSHAPE) f32, pfeat (TB,NPOSE) f32
    # shapedirs (NSHAPE,VF) bf16, posedirs (NPOSE,VF) bf16, jreg (VF,J3P) bf16
    # vt (1,VF) f32 ; outputs: vposed (TB,VF) f32, joints (TB,J3P) f32
    shape_off = jnp.dot(betas_ref[...].astype(jnp.bfloat16), shapedirs_ref[...],
                        preferred_element_type=jnp.float32)        # (TB, VF)
    pose_off = jnp.dot(pfeat_ref[...].astype(jnp.bfloat16), posedirs_ref[...],
                       preferred_element_type=jnp.float32)         # (TB, VF)
    vs = vt_ref[...] + shape_off                                   # (TB, VF)
    vposed_ref[...] = vs + pose_off
    joints_ref[...] = jnp.dot(vs.astype(jnp.bfloat16), jreg_ref[...],
                              preferred_element_type=jnp.float32)  # (TB, J3P)


def skin_kernel(w_t_ref, a_t_ref, vposed_ref, out_ref):
    # w_t (J,V) f32, a_t (TB,16,J) f32, vposed (TB,3,V) f32 -> out (TB,3,V) f32
    w = w_t_ref[...]                                               # (J, V)
    for b in range(TB):                                            # static unroll
        t = jnp.dot(a_t_ref[b], w, preferred_element_type=jnp.float32)  # (16, V)
        vp = vposed_ref[b]                                         # (3, V)
        vx, vy, vz = vp[0:1, :], vp[1:2, :], vp[2:3, :]
        rows = []
        for k in range(3):
            r = (t[4 * k + 0:4 * k + 1, :] * vx
                 + t[4 * k + 1:4 * k + 2, :] * vy
                 + t[4 * k + 2:4 * k + 3, :] * vz
                 + t[4 * k + 3:4 * k + 4, :])
            rows.append(r)
        out_ref[b, :, :] = jnp.concatenate(rows, axis=0)           # (3, V) lane-dense


# ----------------------------- Pallas wrappers --------------------------------
def _pad_batch(x):
    b = x.shape[0]
    bp = ((b + TB - 1) // TB) * TB
    if bp == b:
        return x
    pad = [(0, bp - b)] + [(0, 0)] * (x.ndim - 1)
    return jnp.pad(x, pad)


def pallas_blend_joints(betas, pfeat, shapedirs_cm, posedirs_cm, jreg_big, vt_flat):
    B = betas.shape[0]
    betas_p = _pad_batch(betas)
    pfeat_p = _pad_batch(pfeat)
    Bp = betas_p.shape[0]
    bytes_acc = ((betas_p.size + pfeat_p.size + vt_flat.size) * 4
                 + (shapedirs_cm.size + posedirs_cm.size + jreg_big.size) * 2
                 + Bp * (VF + J3P) * 4)
    flops = 2 * Bp * VF * (NSHAPE + NPOSE) + 2 * Bp * VF * J3P
    vposed, joints = pl.pallas_call(
        blend_joints_kernel,
        out_shape=(jax.ShapeDtypeStruct((Bp, VF), jnp.float32),
                   jax.ShapeDtypeStruct((Bp, J3P), jnp.float32)),
        grid=(Bp // TB,),
        in_specs=[
            pl.BlockSpec((TB, NSHAPE), lambda b: (b, 0)),
            pl.BlockSpec((TB, NPOSE), lambda b: (b, 0)),
            pl.BlockSpec((NSHAPE, VF), lambda b: (0, 0)),
            pl.BlockSpec((NPOSE, VF), lambda b: (0, 0)),
            pl.BlockSpec((VF, J3P), lambda b: (0, 0)),
            pl.BlockSpec((1, VF), lambda b: (0, 0)),
        ],
        out_specs=(pl.BlockSpec((TB, VF), lambda b: (b, 0)),
                   pl.BlockSpec((TB, J3P), lambda b: (b, 0))),
        compiler_params=pltpu.CompilerParams(
            dimension_semantics=("parallel",)),
        cost_estimate=pl.CostEstimate(flops=flops, transcendentals=0,
                                      bytes_accessed=bytes_acc),
    )(betas_p, pfeat_p, shapedirs_cm, posedirs_cm, jreg_big, vt_flat)
    return vposed[:B], joints[:B, :J3]


def pallas_skin(weights_T, a_t, vposed_t):
    B = a_t.shape[0]
    a_p = _pad_batch(a_t)
    v_p = _pad_batch(vposed_t)
    Bp = a_p.shape[0]
    bytes_acc = (weights_T.size + a_p.size + v_p.size + Bp * 3 * V) * 4
    flops = 2 * Bp * 16 * J * V + 8 * Bp * 3 * V
    out = pl.pallas_call(
        skin_kernel,
        out_shape=jax.ShapeDtypeStruct((Bp, 3, V), jnp.float32),
        grid=(Bp // TB,),
        in_specs=[pl.BlockSpec((J, V), lambda b: (0, 0)),
                  pl.BlockSpec((TB, 16, J), lambda b: (b, 0, 0)),
                  pl.BlockSpec((TB, 3, V), lambda b: (b, 0, 0))],
        out_specs=pl.BlockSpec((TB, 3, V), lambda b: (b, 0, 0)),
        compiler_params=pltpu.CompilerParams(
            dimension_semantics=("parallel",)),
        cost_estimate=pl.CostEstimate(flops=flops, transcendentals=0,
                                      bytes_accessed=bytes_acc),
    )(weights_T, a_p, v_p)
    return out[:B]


# ----------------------------- plain-JAX glue ---------------------------------
def batch_rodrigues(rot_vecs):
    # rot_vecs: (N, 3) axis-angle -> (N, 3, 3) rotation matrices
    angle = jnp.linalg.norm(rot_vecs + 1e-8, axis=1, keepdims=True)      # (N, 1)
    rot_dir = rot_vecs / angle
    cos = jnp.cos(angle)[:, :, None]
    sin = jnp.sin(angle)[:, :, None]
    rx, ry, rz = rot_dir[:, 0], rot_dir[:, 1], rot_dir[:, 2]
    zeros = jnp.zeros_like(rx)
    K = jnp.stack([zeros, -rz, ry,
                   rz, zeros, -rx,
                   -ry, rx, zeros], axis=1).reshape(-1, 3, 3)
    ident = jnp.eye(3, dtype=rot_vecs.dtype)[None]
    return ident + sin * K + (1.0 - cos) * jnp.matmul(K, K)


def batch_rigid_transform(rot_mats, joints, parents):
    # rot_mats: (B, J, 3, 3)   joints: (B, J, 3)
    B = joints.shape[0]
    parents_np = np.asarray(parents)
    rel_joints = joints.at[:, 1:].add(-joints[:, parents_np[1:]])
    top = jnp.concatenate([rot_mats, rel_joints[..., None]], axis=-1)    # (B,J,3,4)
    bottom = jnp.broadcast_to(jnp.array([0., 0., 0., 1.], jnp.float32),
                              (B, J, 1, 4))
    tf = jnp.concatenate([top, bottom], axis=-2)                         # (B,J,4,4)

    # level-parallel kinematic chain: depth(tree) dependent matmuls, not J-1
    depths = np.zeros(J, dtype=np.int64)
    for i in range(1, J):
        depths[i] = depths[parents_np[i]] + 1
    glob = tf
    for d in range(1, int(depths.max()) + 1):
        idx = np.nonzero(depths == d)[0]
        upd = jnp.matmul(glob[:, parents_np[idx]], tf[:, idx])
        glob = glob.at[:, idx].set(upd)
    transforms = glob                                                    # (B,J,4,4)

    posed_joints = transforms[:, :, :3, 3]
    joints_h = jnp.concatenate(
        [joints, jnp.zeros((B, J, 1), jnp.float32)], axis=-1)[..., None]  # (B,J,4,1)
    tj = jnp.matmul(transforms, joints_h)[..., 0]                        # (B,J,4)
    rel_transforms = transforms.at[:, :, :, 3].add(-tj)
    return posed_joints, rel_transforms


# ----------------------------- BodyModel --------------------------------------
class BodyModelPallas:
    """Synthetic SMPL-H body model; forward matches BM(pose_body, trans, root_orient)."""

    def __init__(self, key):
        k = jax.random.split(key, 5)
        self.v_template = jax.random.normal(k[0], (V, 3), jnp.float32) * 0.1
        shapedirs = jax.random.normal(k[1], (V, 3, NSHAPE), jnp.float32) * 0.01
        posedirs = jax.random.normal(k[2], (NPOSE, V, 3), jnp.float32) * 0.01
        jr = jax.random.uniform(k[3], (J, V), jnp.float32)
        J_regressor = jr / jnp.sum(jr, axis=1, keepdims=True)
        weights = jax.nn.softmax(
            jax.random.normal(k[4], (V, J), jnp.float32), axis=-1)
        # synthetic kinematic tree (binary-tree parents, root = -1)
        self.parents = tuple([-1] + [(i - 1) // 2 for i in range(1, J)])

        # ---- coordinate-major flat layouts: flat index = k*V + v ----
        self.vt_flat = self.v_template.T.reshape(1, VF)                          # f32
        # shapedirs[v,k,s] -> (s, k*V+v)
        self.shapedirs_cm = shapedirs.transpose(2, 1, 0).reshape(
            NSHAPE, VF).astype(jnp.bfloat16)
        # posedirs[p,v,k]  -> (p, k*V+v)
        self.posedirs_cm = posedirs.transpose(0, 2, 1).reshape(
            NPOSE, VF).astype(jnp.bfloat16)
        # expanded block-diagonal joint regressor: (VF, J3P), [k*V+v, 3*j+k] = Jreg[j,v]
        eye3 = jnp.eye(3, dtype=jnp.float32)
        jreg_big = jnp.einsum('jv,kl->kvjl', J_regressor, eye3).reshape(VF, J3)
        jreg_big = jnp.pad(jreg_big, ((0, 0), (0, J3P - J3)))        # lane-pad to 256
        self.jreg_big = jreg_big.astype(jnp.bfloat16)
        self.weights_T = weights.T                                    # (J, V) f32
        self.J_regressor = J_regressor
        self.weights = weights

    def _forward(self, body_params, use_pallas=True):
        # replicate the torch wrapper: only these keys are consumed
        p = {kk: vv for kk, vv in body_params.items()
             if kk in ('pose_body', 'trans', 'root_orient')}
        pose_body = p['pose_body'].astype(jnp.float32)       # (B, 63)
        root_orient = p['root_orient'].astype(jnp.float32)   # (B, 3)
        trans = p['trans'].astype(jnp.float32)                # (B, 3)
        B = pose_body.shape[0]

        pose_hand = jnp.zeros((B, (J - 22) * 3), jnp.float32)        # default
        betas = jnp.zeros((B, NUM_BETAS), jnp.float32)               # default
        dmpls = jnp.zeros((B, NUM_DMPLS), jnp.float32)               # default
        shape_components = jnp.concatenate([betas, dmpls], axis=-1)  # (B, 24)
        full_pose = jnp.concatenate([root_orient, pose_body, pose_hand],
                                    axis=-1)                         # (B, 156)

        rot_mats = batch_rodrigues(full_pose.reshape(-1, 3)).reshape(B, J, 3, 3)
        ident = jnp.eye(3, dtype=jnp.float32)
        pose_feature = (rot_mats[:, 1:] - ident).reshape(B, NPOSE)

        if use_pallas:
            vposed_flat, joints_flat = pallas_blend_joints(
                shape_components, pose_feature, self.shapedirs_cm,
                self.posedirs_cm, self.jreg_big, self.vt_flat)
        else:
            sd = self.shapedirs_cm.astype(jnp.float32)
            pd = self.posedirs_cm.astype(jnp.float32)
            jb = self.jreg_big.astype(jnp.float32)
            vs = self.vt_flat + shape_components @ sd
            vposed_flat = vs + pose_feature @ pd
            joints_flat = (vs @ jb)[:, :J3]
        joints = joints_flat.reshape(B, J, 3)
        vposed_t = vposed_flat.reshape(B, 3, V)       # coordinate-major, pure reshape

        J_transformed, A = batch_rigid_transform(rot_mats, joints, self.parents)
        A_t = A.reshape(B, J, 16).transpose(0, 2, 1)  # (B, 16, J)

        if use_pallas:
            verts_t = pallas_skin(self.weights_T, A_t, vposed_t)     # (B, 3, V)
        else:
            T_T = jnp.einsum('bmj,jv->bmv', A_t, self.weights_T)     # (B, 16, V)
            rows = [T_T[:, 4 * k + 0] * vposed_t[:, 0]
                    + T_T[:, 4 * k + 1] * vposed_t[:, 1]
                    + T_T[:, 4 * k + 2] * vposed_t[:, 2]
                    + T_T[:, 4 * k + 3] for k in range(3)]
            verts_t = jnp.stack(rows, axis=1)                        # (B, 3, V)

        verts = verts_t.transpose(0, 2, 1) + trans[:, None, :]       # (B, V, 3)
        Jtr = J_transformed + trans[:, None, :]
        return {'v': verts, 'Jtr': Jtr, 'full_pose': full_pose}

    def forward(self, body_params):
        return self._forward(body_params, use_pallas=True)


# ----------------------------- main --------------------------------------------
if __name__ == "__main__":
    key = jax.random.PRNGKey(0)
    k_model, k_pose, k_root, k_trans = jax.random.split(key, 4)
    B = 2

    model = BodyModelPallas(k_model)
    body_params = {
        'pose_body': jax.random.normal(k_pose, (B, 63), jnp.float32) * 0.2,
        'root_orient': jax.random.normal(k_root, (B, 3), jnp.float32) * 0.2,
        'trans': jax.random.normal(k_trans, (B, 3), jnp.float32),
        'unused_key': jnp.zeros((B, 1), jnp.float32),   # filtered out, like torch
    }

    out = model.forward(body_params)
    jax.block_until_ready(out)

    # correctness vs. pure-JAX reference of the same math (same bf16-quantized consts)
    ref = model._forward(body_params, use_pallas=False)
    jax.block_until_ready(ref)
    assert np.allclose(np.asarray(out['v']), np.asarray(ref['v']),
                       rtol=2e-3, atol=2e-3)
    assert np.allclose(np.asarray(out['Jtr']), np.asarray(ref['Jtr']),
                       rtol=2e-3, atol=2e-3)

    print("KERNEL_OK")
</pallas_src>

<mosaic_0001>
module attributes {stable_mosaic.version = 11 : i64} {
  func.func @blend_joints_kernel(%arg0: i32, %arg1: memref<8x24xf32, #tpu.memory_space<vmem>>, %arg2: memref<8x459xf32, #tpu.memory_space<vmem>>, %arg3: memref<24x1536xbf16, #tpu.memory_space<vmem>>, %arg4: memref<459x1536xbf16, #tpu.memory_space<vmem>>, %arg5: memref<1536x256xbf16, #tpu.memory_space<vmem>>, %arg6: memref<1x1536xf32, #tpu.memory_space<vmem>>, %arg7: memref<8x1536xf32, #tpu.memory_space<vmem>>, %arg8: memref<8x256xf32, #tpu.memory_space<vmem>>) attributes {dimension_semantics = [#tpu.dimension_semantics<parallel>], iteration_bounds = array<i64: 1>, scalar_prefetch = 0 : i64, scratch_operands = 0 : i64, tpu.core_type = #tpu.core_type<tc>, window_params = [{transform_indices = @transform_0, window_bounds = array<i64: 8, 24>}, {transform_indices = @transform_1, window_bounds = array<i64: 8, 459>}, {pipeline_mode = #tpu.pipeline_mode<synchronous>, transform_indices = @transform_2, window_bounds = array<i64: 24, 1536>}, {pipeline_mode = #tpu.pipeline_mode<synchronous>, transform_indices = @transform_3, window_bounds = array<i64: 459, 1536>}, {pipeline_mode = #tpu.pipeline_mode<synchronous>, transform_indices = @transform_4, window_bounds = array<i64: 1536, 256>}, {pipeline_mode = #tpu.pipeline_mode<synchronous>, transform_indices = @transform_5, window_bounds = array<i64: 1, 1536>}, {transform_indices = @transform_6, window_bounds = array<i64: 8, 1536>}, {transform_indices = @transform_7, window_bounds = array<i64: 8, 256>}]} {
    %c0 = arith.constant 0 : index
    %c0_0 = arith.constant 0 : index
    %0 = vector.load %arg1[%c0, %c0_0] : memref<8x24xf32, #tpu.memory_space<vmem>>, vector<8x24xf32>
    %1 = arith.truncf %0 : vector<8x24xf32> to vector<8x24xbf16>
    %c0_1 = arith.constant 0 : index
    %c0_2 = arith.constant 0 : index
    %2 = vector.load %arg3[%c0_1, %c0_2] : memref<24x1536xbf16, #tpu.memory_space<vmem>>, vector<24x1536xbf16>
    %cst = arith.constant dense<0.000000e+00> : vector<8x1536xf32>
    %3 = tpu.matmul %1, %2, %cst {dimension_numbers = #tpu.dot_dimension_numbers<[1], [0], [0], [1], [0, 0, 1, 1], [], []>} : vector<8x24xbf16>, vector<24x1536xbf16>, vector<8x1536xf32> -> vector<8x1536xf32>
    %c0_3 = arith.constant 0 : index
    %c0_4 = arith.constant 0 : index
    %4 = vector.load %arg2[%c0_3, %c0_4] : memref<8x459xf32, #tpu.memory_space<vmem>>, vector<8x459xf32>
    %5 = arith.truncf %4 : vector<8x459xf32> to vector<8x459xbf16>
    %c0_5 = arith.constant 0 : index
    %c0_6 = arith.constant 0 : index
    %6 = vector.load %arg4[%c0_5, %c0_6] : memref<459x1536xbf16, #tpu.memory_space<vmem>>, vector<459x1536xbf16>
    %cst_7 = arith.constant dense<0.000000e+00> : vector<8x1536xf32>
    %7 = tpu.matmul %5, %6, %cst_7 {dimension_numbers = #tpu.dot_dimension_numbers<[1], [0], [0], [1], [0, 0, 1, 1], [], []>} : vector<8x459xbf16>, vector<459x1536xbf16>, vector<8x1536xf32> -> vector<8x1536xf32>
    %c0_8 = arith.constant 0 : index
    %c0_9 = arith.constant 0 : index
    %8 = vector.load %arg6[%c0_8, %c0_9] : memref<1x1536xf32, #tpu.memory_space<vmem>>, vector<1x1536xf32>
    %9 = vector.broadcast %8 : vector<1x1536xf32> to vector<8x1536xf32>
    %10 = arith.addf %9, %3 : vector<8x1536xf32>
    %11 = arith.addf %10, %7 : vector<8x1536xf32>
    %c0_10 = arith.constant 0 : index
    %c0_11 = arith.constant 0 : index
    %12 = vector.load %arg7[%c0_10, %c0_11] : memref<8x1536xf32, #tpu.memory_space<vmem>>, vector<8x1536xf32>
    tpu.vector_store %arg7[%c0_10, %c0_11], %11 {strides = array<i32>} : memref<8x1536xf32, #tpu.memory_space<vmem>>, vector<8x1536xf32>,
    %13 = arith.truncf %10 : vector<8x1536xf32> to vector<8x1536xbf16>
    %c0_12 = arith.constant 0 : index
    %c0_13 = arith.constant 0 : index
    %14 = vector.load %arg5[%c0_12, %c0_13] : memref<1536x256xbf16, #tpu.memory_space<vmem>>, vector<1536x256xbf16>
    %cst_14 = arith.constant dense<0.000000e+00> : vector<8x256xf32>
    %15 = tpu.matmul %13, %14, %cst_14 {dimension_numbers = #tpu.dot_dimension_numbers<[1], [0], [0], [1], [0, 0, 1, 1], [], []>} : vector<8x1536xbf16>, vector<1536x256xbf16>, vector<8x256xf32> -> vector<8x256xf32>
    %c0_15 = arith.constant 0 : index
    %c0_16 = arith.constant 0 : index
    %16 = vector.load %arg8[%c0_15, %c0_16] : memref<8x256xf32, #tpu.memory_space<vmem>>, vector<8x256xf32>
    tpu.vector_store %arg8[%c0_15, %c0_16], %15 {strides = array<i32>} : memref<8x256xf32, #tpu.memory_space<vmem>>, vector<8x256xf32>,
    return
  }
  func.func @transform_0(%arg0: i32) -> (i32, i32) {
    %c0_i32 = arith.constant 0 : i32
    %c0_i32_0 = arith.constant 0 : i32
    return %arg0, %c0_i32 : i32, i32
  }
  func.func @transform_1(%arg0: i32) -> (i32, i32) {
    %c0_i32 = arith.constant 0 : i32
    %c0_i32_0 = arith.constant 0 : i32
    return %arg0, %c0_i32 : i32, i32
  }
  func.func @transform_2(%arg0: i32) -> (i32, i32) {
    %c0_i32 = arith.constant 0 : i32
    %c0_i32_0 = arith.constant 0 : i32
    %c0_i32_1 = arith.constant 0 : i32
    return %c0_i32, %c0_i32_0 : i32, i32
  }
  func.func @transform_3(%arg0: i32) -> (i32, i32) {
    %c0_i32 = arith.constant 0 : i32
    %c0_i32_0 = arith.constant 0 : i32
    %c0_i32_1 = arith.constant 0 : i32
    return %c0_i32, %c0_i32_0 : i32, i32
  }
  func.func @transform_4(%arg0: i32) -> (i32, i32) {
    %c0_i32 = arith.constant 0 : i32
    %c0_i32_0 = arith.constant 0 : i32
    %c0_i32_1 = arith.constant 0 : i32
    return %c0_i32, %c0_i32_0 : i32, i32
  }
  func.func @transform_5(%arg0: i32) -> (i32, i32) {
    %c0_i32 = arith.constant 0 : i32
    %c0_i32_0 = arith.constant 0 : i32
    %c0_i32_1 = arith.constant 0 : i32
    return %c0_i32, %c0_i32_0 : i32, i32
  }
  func.func @transform_6(%arg0: i32) -> (i32, i32) {
    %c0_i32 = arith.constant 0 : i32
    %c0_i32_0 = arith.constant 0 : i32
    return %arg0, %c0_i32 : i32, i32
  }
  func.func @transform_7(%arg0: i32) -> (i32, i32) {
    %c0_i32 = arith.constant 0 : i32
    %c0_i32_0 = arith.constant 0 : i32
    return %arg0, %c0_i32 : i32, i32
  }
}

</mosaic_0001>

<llo_original>
// kernel: tpu_custom_call.1
$region0: #{tpu_custom_call.1}
  #allocation0 [shape = 'u32[]', space=smem, size = 0x4, offset = 0x4, fixed_abs, tag = 'smem constant byte address 0x4 - core index']
  #allocation1 [shape = 'u32[144,128]{1,0:T(1,128)}', space=vmem, size = 0x12000, scoped, tag = 'internal scratch']
  %s0 = inlined_call_operand.hbm [shape: f32[8,24], index: 0, kind: input, shape index: {}]
  %s1 = inlined_call_operand.hbm [shape: f32[8,459], index: 1, kind: input, shape index: {}]
  %s2 = inlined_call_operand.hbm [shape: bf16[24,1536], index: 2, kind: input, shape index: {}]
  %s3 = inlined_call_operand.hbm [shape: bf16[459,1536], index: 3, kind: input, shape index: {}]
  %s4 = inlined_call_operand.hbm [shape: bf16[1536,256], index: 4, kind: input, shape index: {}]
  %s5 = inlined_call_operand.hbm [shape: f32[1,1536], index: 5, kind: input, shape index: {}]
  %s6 = inlined_call_operand.hbm [shape: f32[8,1536], index: 6, kind: output, shape index: {0}]
  %s7 = inlined_call_operand.hbm [shape: f32[8,256], index: 7, kind: output, shape index: {1}]
  %8 = xla_tuple %s6, %s7
  %s9 = sld [smem:[#allocation0]]
  $region66: #{tpu_custom_call.1} parent=0
    _
  %s11 = ssub.s32 1, %s9
  %s12 = scalar_select 0, %s11, %s9
  $region1: #{tpu_custom_call.1} parent=0
    #allocation2 [shape = 'u8[4096]{0}', space=vmem, size = 0x1000, scoped, tag = 'input window, operand 0, single buffered']
    #allocation3 [shape = 's32[1]{0}', space=sflag, size = 0x4, scoped, tag = 'scoped memory for tpu_custom_call.1']
    #allocation4 [shape = 's32[1]{0}', space=sflag, size = 0x4, scoped, tag = 'scoped memory for tpu_custom_call.1']
    #allocation5 [shape = 'u8[16384]{0}', space=vmem, size = 0x4000, scoped, tag = 'input window, operand 1, single buffered']
    #allocation6 [shape = 's32[1]{0}', space=sflag, size = 0x4, scoped, tag = 'scoped memory for tpu_custom_call.1']
    #allocation7 [shape = 'u8[73728]{0}', space=vmem, size = 0x12000, scoped, tag = 'input window, operand 2, single buffered']
    #allocation8 [shape = 'u8[1425408]{0}', space=vmem, size = 0x15c000, scoped, tag = 'input window, operand 3, single buffered']
    #allocation9 [shape = 's32[1]{0}', space=sflag, size = 0x4, scoped, tag = 'scoped memory for tpu_custom_call.1']
    #allocation10 [shape = 'u8[786432]{0}', space=vmem, size = 0xc0000, scoped, tag = 'input window, operand 4, single buffered']
    #allocation11 [shape = 'u8[6144]{0}', space=vmem, size = 0x1800, scoped, tag = 'input window, operand 5, single buffered']
    #allocation12 [shape = 's32[1]{0}', space=sflag, size = 0x4, scoped, tag = 'scoped memory for tpu_custom_call.1']
    #allocation13 [shape = 'u8[49152]{0}', space=vmem, size = 0xc000, scoped, tag = 'output window, operand 0, single buffered']
    #allocation14 [shape = 'u8[8192]{0}', space=vmem, size = 0x2000, scoped, tag = 'output window, operand 1, single buffered']
    #allocation15 [shape = 's32[1]{0}', space=sflag, size = 0x4, scoped, tag = 'scoped memory for tpu_custom_call.1']
    %13 = vsyncpa [#allocation3], 0
    %14 = vsyncpa [#allocation6], 0
    %15 = vsyncpa [#allocation9], 0
    %16 = vsyncpa [#allocation12], 0
    %17 = vsyncpa [#allocation4], 0
    %18 = vsyncpa [#allocation15], 0
    // Predicated region
    $region2: #{tpu_custom_call.1} parent=1 // pred_check
      _
    $region3: #{tpu_custom_call.1} parent=1 // pred_check_branch
      %20 = sbr.rel (0) target = $region5
    $region4: #{tpu_custom_call.1} parent=1 // pred_region
      %s22 = ssub.s32 128, 128
      %23 = vsyncadd [#allocation3], %s22
      %s25 = sshll.u32 [#allocation2], 4
      %s26 = int_to_ptr.vmem [resolvable:$true] %s25
      %28 = dma.hbm_to_vmem [thread:$0]  %s0, 128, %s26, [#allocation3]
    $region5: #{tpu_custom_call.1} parent=1 // pred_fallthru
      _
    // Predicated region
    $region6: #{tpu_custom_call.1} parent=1 // pred_check
      _
    $region7: #{tpu_custom_call.1} parent=1 // pred_check_branch
      %30 = sbr.rel (0) target = $region9
    $region8: #{tpu_custom_call.1} parent=1 // pred_region
      %s32 = ssub.s32 512, 512
      %33 = vsyncadd [#allocation6], %s32
      %s35 = sshll.u32 [#allocation5], 4
      %s36 = int_to_ptr.vmem [resolvable:$true] %s35
      %38 = dma.hbm_to_vmem [thread:$0]  %s1, 512, %s36, [#allocation6]
    $region9: #{tpu_custom_call.1} parent=1 // pred_fallthru
      _
    // Predicated region
    $region10: #{tpu_custom_call.1} parent=1 // pred_check
      _
    $region11: #{tpu_custom_call.1} parent=1 // pred_check_branch
      %40 = sbr.rel (0) target = $region13
    $region12: #{tpu_custom_call.1} parent=1 // pred_region
      %s42 = ssub.s32 2304, 2304
      %43 = vsyncadd [#allocation6], %s42
      %s44 = sshll.u32 [#allocation7], 4
      %s45 = int_to_ptr.vmem [resolvable:$true] %s44
      %50 = dma.hbm_to_vmem [thread:$0]  %s2, 2304, %s45, [#allocation6], 768, 768, 48
    $region13: #{tpu_custom_call.1} parent=1 // pred_fallthru
      _
    // Predicated region
    $region14: #{tpu_custom_call.1} parent=1 // pred_check
      _
    $region15: #{tpu_custom_call.1} parent=1 // pred_check_branch
      %52 = sbr.rel (0) target = $region17
    $region16: #{tpu_custom_call.1} parent=1 // pred_region
      %s54 = ssub.s32 44544, 44544
      %55 = vsyncadd [#allocation9], %s54
      %s56 = sshll.u32 [#allocation8], 4
      %s57 = int_to_ptr.vmem [resolvable:$true] %s56
      %62 = dma.hbm_to_vmem [thread:$0]  %s3, 44544, %s57, [#allocation9], 768, 768, 48
    $region17: #{tpu_custom_call.1} parent=1 // pred_fallthru
      _
    // Predicated region
    $region18: #{tpu_custom_call.1} parent=1 // pred_check
      _
    $region19: #{tpu_custom_call.1} parent=1 // pred_check_branch
      %64 = sbr.rel (0) target = $region21
    $region20: #{tpu_custom_call.1} parent=1 // pred_region
      %s66 = ssub.s32 24576, 24576
      %67 = vsyncadd [#allocation9], %s66
      %s68 = sshll.u32 [#allocation10], 4
      %s69 = int_to_ptr.vmem [resolvable:$true] %s68
      %74 = dma.hbm_to_vmem [thread:$0]  %s4, 24576, %s69, [#allocation9], 128, 128, 8
    $region21: #{tpu_custom_call.1} parent=1 // pred_fallthru
      _
    // Predicated region
    $region22: #{tpu_custom_call.1} parent=1 // pred_check
      _
    $region23: #{tpu_custom_call.1} parent=1 // pred_check_branch
      %76 = sbr.rel (0) target = $region25
    $region24: #{tpu_custom_call.1} parent=1 // pred_region
      %s78 = ssub.s32 192, 192
      %79 = vsyncadd [#allocation12], %s78
      %s81 = sshll.u32 [#allocation11], 4
      %s82 = int_to_ptr.vmem [resolvable:$true] %s81
      %84 = dma.hbm_to_vmem [thread:$0]  %s5, 192, %s82, [#allocation12]
    $region25: #{tpu_custom_call.1} parent=1 // pred_fallthru
      _
    // Predicated region
    $region26: #{tpu_custom_call.1} parent=1 // pred_check
      _
    $region27: #{tpu_custom_call.1} parent=1 // pred_check_branch
      %86 = sbr.rel (0) target = $region29
    $region28: #{tpu_custom_call.1} parent=1 // pred_region
      %87 = dma.done [#allocation3], 128
    $region29: #{tpu_custom_call.1} parent=1 // pred_fallthru
      _
    // Predicated region
    $region30: #{tpu_custom_call.1} parent=1 // pred_check
      _
    $region31: #{tpu_custom_call.1} parent=1 // pred_check_branch
      %89 = sbr.rel (0) target = $region33
    $region32: #{tpu_custom_call.1} parent=1 // pred_region
      %90 = dma.done [#allocation6], 512
    $region33: #{tpu_custom_call.1} parent=1 // pred_fallthru
      _
    // Predicated region
    $region34: #{tpu_custom_call.1} parent=1 // pred_check
      _
    $region35: #{tpu_custom_call.1} parent=1 // pred_check_branch
      %92 = sbr.rel (0) target = $region37
    $region36: #{tpu_custom_call.1} parent=1 // pred_region
      %93 = dma.done [#allocation6], 2304
    $region37: #{tpu_custom_call.1} parent=1 // pred_fallthru
      _
    // Predicated region
    $region38: #{tpu_custom_call.1} parent=1 // pred_check
      _
    $region39: #{tpu_custom_call.1} parent=1 // pred_check_branch
      %95 = sbr.rel (0) target = $region41
    $region40: #{tpu_custom_call.1} parent=1 // pred_region
      %96 = dma.done [#allocation9], 44544
    $region41: #{tpu_custom_call.1} parent=1 // pred_fallthru
      _
    // Predicated region
    $region42: #{tpu_custom_call.1} parent=1 // pred_check
      _
    $region43: #{tpu_custom_call.1} parent=1 // pred_check_branch
      %98 = sbr.rel (0) target = $region45
    $region44: #{tpu_custom_call.1} parent=1 // pred_region
      %99 = dma.done [#allocation9], 24576
    $region45: #{tpu_custom_call.1} parent=1 // pred_fallthru
      _
    // Predicated region
    $region46: #{tpu_custom_call.1} parent=1 // pred_check
      _
    $region47: #{tpu_custom_call.1} parent=1 // pred_check_branch
      %101 = sbr.rel (0) target = $region49
    $region48: #{tpu_custom_call.1} parent=1 // pred_region
      %102 = dma.done [#allocation12], 192
    $region49: #{tpu_custom_call.1} parent=1 // pred_fallthru
      _
    %v104 = vld [vmem:[#allocation2] sm:$0xff]
    %v105 = vpack.c.bf16 %v104, %v104
    %v106 = vld [vmem:[#allocation7] sm:$0xff]
    %v107 = vld [vmem:[#allocation7 + $0x8] sm:$0xff]
    %v108 = vld [vmem:[#allocation7 + $0x10] sm:$0xff]
    %v109 = vld [vmem:[#allocation7 + $0x18] sm:$0xff]
    %v110 = vld [vmem:[#allocation7 + $0x20] sm:$0xff]
    %v111 = vld [vmem:[#allocation7 + $0x28] sm:$0xff]
    %v112 = vld [vmem:[#allocation7 + $0x30] sm:$0xff]
    %v113 = vld [vmem:[#allocation7 + $0x38] sm:$0xff]
    %v114 = vld [vmem:[#allocation7 + $0x40] sm:$0xff]
    %v115 = vld [vmem:[#allocation7 + $0x48] sm:$0xff]
    %v116 = vld [vmem:[#allocation7 + $0x50] sm:$0xff]
    %v117 = vld [vmem:[#allocation7 + $0x58] sm:$0xff]
    %v118 = vld [vmem:[#allocation7 + $0x60] sm:$0xff]
    %v119 = vld [vmem:[#allocation7 + $0x68] sm:$0xff]
    %v120 = vld [vmem:[#allocation7 + $0x70] sm:$0xff]
    %v121 = vld [vmem:[#allocation7 + $0x78] sm:$0xff]
    %v122 = vld [vmem:[#allocation7 + $0x80] sm:$0xff]
    %v123 = vld [vmem:[#allocation7 + $0x88] sm:$0xff]
    %v142 = vunpack.c.l.b16 %v106
    %v143 = vunpack.c.h.b16 %v106
    %v144 = vunpack.c.l.b16 %v107
    %v145 = vunpack.c.h.b16 %v107
    %v146 = vunpack.c.l.b16 %v108
    %v147 = vunpack.c.h.b16 %v108
    %v148 = vunpack.c.l.b16 %v109
    %v149 = vunpack.c.h.b16 %v109
    %v150 = vunpack.c.l.b16 %v110
    %v151 = vunpack.c.h.b16 %v110
    %v152 = vunpack.c.l.b16 %v111
    %v153 = vunpack.c.h.b16 %v111
    %v154 = vunpack.c.l.b16 %v112
    %v155 = vunpack.c.h.b16 %v112
    %v156 = vunpack.c.l.b16 %v113
    %v157 = vunpack.c.h.b16 %v113
    %v158 = vunpack.c.l.b16 %v114
    %v159 = vunpack.c.h.b16 %v114
    %v160 = vunpack.c.l.b16 %v115
    %v161 = vunpack.c.h.b16 %v115
    %v162 = vunpack.c.l.b16 %v116
    %v163 = vunpack.c.h.b16 %v116
    %v164 = vunpack.c.l.b16 %v117
    %v165 = vunpack.c.h.b16 %v117
    %v166 = vunpack.c.l.b16 %v118
    %v167 = vunpack.c.h.b16 %v118
    %v168 = vunpack.c.l.b16 %v119
    %v169 = vunpack.c.h.b16 %v119
    %v170 = vunpack.c.l.b16 %v120
    %v171 = vunpack.c.h.b16 %v120
    %v172 = vunpack.c.l.b16 %v121
    %v173 = vunpack.c.h.b16 %v121
    %v174 = vunpack.c.l.b16 %v122
    %v175 = vunpack.c.h.b16 %v122
    %v176 = vunpack.c.l.b16 %v123
    %v177 = vunpack.c.h.b16 %v123
    %v178 = vpack.c.b16 %v154, %v142
    %v179 = vpack.c.b16 %v155, %v143
    %v180 = vpack.c.b16 %v156, %v144
    %v181 = vpack.c.b16 %v157, %v145
    %v182 = vpack.c.b16 %v158, %v146
    %v183 = vpack.c.b16 %v159, %v147
    %v184 = vpack.c.b16 %v160, %v148
    %v185 = vpack.c.b16 %v161, %v149
    %v186 = vpack.c.b16 %v162, %v150
    %v187 = vpack.c.b16 %v163, %v151
    %v188 = vpack.c.b16 %v164, %v152
    %v189 = vpack.c.b16 %v165, %v153
    %v190 = vpack.c.b16 %v166, %v166
    %v191 = vpack.c.b16 %v167, %v167
    %v192 = vpack.c.b16 %v168, %v168
    %v193 = vpack.c.b16 %v169, %v169
    %v194 = vpack.c.b16 %v170, %v170
    %v195 = vpack.c.b16 %v171, %v171
    %v196 = vpack.c.b16 %v172, %v172
    %v197 = vpack.c.b16 %v173, %v173
    %v198 = vpack.c.b16 %v174, %v174
    %v199 = vpack.c.b16 %v175, %v175
    %v200 = vpack.c.b16 %v176, %v176
    %v201 = vpack.c.b16 %v177, %v177
    %vm214 = vcmask 195584
    %v216 = vsel %vm214, %v105, 0
    %vm218 = vcmask 1043456
    %v220 = vsel %vm218, %v190, 0
    %v223 = vsel %vm218, %v191, 0
    %v226 = vsel %vm218, %v192, 0
    %v229 = vsel %vm218, %v193, 0
    %v232 = vsel %vm218, %v194, 0
    %v235 = vsel %vm218, %v195, 0
    %v238 = vsel %vm218, %v196, 0
    %v241 = vsel %vm218, %v197, 0
    %v244 = vsel %vm218, %v198, 0
    %v247 = vsel %vm218, %v199, 0
    %v250 = vsel %vm218, %v200, 0
    %v253 = vsel %vm218, %v201, 0
    %255 = vmatprep.subr.bf16.mxu0 0
    %256 = vmatpush1.bf16.msra.mxu0 0
    %257 = vmatprep.subr.bf16.mxu0 0
    %258 = vmatpush1.bf16.msra.mxu0 0
    %259 = vmatprep.subr.bf16.mxu0 0
    %260 = vmatpush1.bf16.msra.mxu0 0
    %261 = vmatprep.subr.bf16.mxu0 0
    %262 = vmatpush1.bf16.msra.mxu0 0
    %263 = vmatprep.subr.bf16.mxu0 0
    %264 = vmatpush1.bf16.msra.mxu0 0
    %265 = vmatprep.subr.bf16.mxu0 0
    %266 = vmatpush1.bf16.msra.mxu0 0
    %267 = vmatprep.subr.bf16.mxu0 %v223
    %268 = vmatpush1.bf16.msra.mxu0 %v220
    %269 = vmatprep.subr.bf16.mxu0 %v179
    %270 = vmatpush1.bf16.msra.mxu0 %v178
    %271 = vmatprep.subr.bf16.mxu0 0
    %272 = vmatpush2.bf16.msra.mxu0 0
    %273 = vmatprep.subr.bf16.mxu0 0
    %274 = vmatpush2.bf16.msra.mxu0 0
    %275 = vmatprep.subr.bf16.mxu0 0
    %276 = vmatpush2.bf16.msra.mxu0 0
    %277 = vmatprep.subr.bf16.mxu0 0
    %278 = vmatpush2.bf16.msra.mxu0 0
    %279 = vmatprep.subr.bf16.mxu0 0
    %280 = vmatpush2.bf16.msra.mxu0 0
    %281 = vmatprep.subr.bf16.mxu0 0
    %282 = vmatpush2.bf16.msra.mxu0 0
    %283 = vmatprep.subr.bf16.mxu0 0
    %284 = vmatpush2.bf16.msra.mxu0 0
    %285 = vmatprep.subr.bf16.mxu0 0
    %286 = vmatpush2.bf16.msra.mxu0 0
    %287 = vmatprep.mubr.bf16.mxu0 0
    %288 = vmatmul.mubr.bf16.gmra.mxu0 %v216
    %v289 = vpop.f32.mrf.mxu0
    %v290 = vadd.f32 0.0, %v289
    %v291 = vpop.f32.mrf.mxu0
    %v292 = vadd.f32 0.0, %v291
    %v293 = vpop.f32.mrf.mxu0
    %v294 = vpop.f32.mrf.mxu0
    %295 = vdwg.mxu0
    %296 = vmatprep.subr.bf16.mxu0 0
    %297 = vmatpush1.bf16.msra.mxu0 0
    %298 = vmatprep.subr.bf16.mxu0 0
    %299 = vmatpush1.bf16.msra.mxu0 0
    %300 = vmatprep.subr.bf16.mxu0 0
    %301 = vmatpush1.bf16.msra.mxu0 0
    %302 = vmatprep.subr.bf16.mxu0 0
    %303 = vmatpush1.bf16.msra.mxu0 0
    %304 = vmatprep.subr.bf16.mxu0 0
    %305 = vmatpush1.bf16.msra.mxu0 0
    %306 = vmatprep.subr.bf16.mxu0 0
    %307 = vmatpush1.bf16.msra.mxu0 0
    %308 = vmatprep.subr.bf16.mxu0 %v229
    %309 = vmatpush1.bf16.msra.mxu0 %v226
    %310 = vmatprep.subr.bf16.mxu0 %v181
    %311 = vmatpush1.bf16.msra.mxu0 %v180
    %312 = vmatprep.subr.bf16.mxu0 0
    %313 = vmatpush2.bf16.msra.mxu0 0
    %314 = vmatprep.subr.bf16.mxu0 0
    %315 = vmatpush2.bf16.msra.mxu0 0
    %316 = vmatprep.subr.bf16.mxu0 0
    %317 = vmatpush2.bf16.msra.mxu0 0
    %318 = vmatprep.subr.bf16.mxu0 0
    %319 = vmatpush2.bf16.msra.mxu0 0
    %320 = vmatprep.subr.bf16.mxu0 0
    %321 = vmatpush2.bf16.msra.mxu0 0
    %322 = vmatprep.subr.bf16.mxu0 0
    %323 = vmatpush2.bf16.msra.mxu0 0
    %324 = vmatprep.subr.bf16.mxu0 0
    %325 = vmatpush2.bf16.msra.mxu0 0
    %326 = vmatprep.subr.bf16.mxu0 0
    %327 = vmatpush2.bf16.msra.mxu0 0
    %328 = vmatprep.mubr.bf16.mxu0 0
    %329 = vmatmul.mubr.bf16.gmra.mxu0 %v216
    %v330 = vpop.f32.mrf.mxu0
    %v331 = vadd.f32 0.0, %v330
    %v332 = vpop.f32.mrf.mxu0
    %v333 = vadd.f32 0.0, %v332
    %v334 = vpop.f32.mrf.mxu0
    %v335 = vpop.f32.mrf.mxu0
    %336 = vdwg.mxu0
    %337 = vmatprep.subr.bf16.mxu0 0
    %338 = vmatpush1.bf16.msra.mxu0 0
    %339 = vmatprep.subr.bf16.mxu0 0
    %340 = vmatpush1.bf16.msra.mxu0 0
    %341 = vmatprep.subr.bf16.mxu0 0
    %342 = vmatpush1.bf16.msra.mxu0 0
    %343 = vmatprep.subr.bf16.mxu0 0
    %344 = vmatpush1.bf16.msra.mxu0 0
    %345 = vmatprep.subr.bf16.mxu0 0
    %346 = vmatpush1.bf16.msra.mxu0 0
    %347 = vmatprep.subr.bf16.mxu0 0
    %348 = vmatpush1.bf16.msra.mxu0 0
    %349 = vmatprep.subr.bf16.mxu0 %v235
    %350 = vmatpush1.bf16.msra.mxu0 %v232
    %351 = vmatprep.subr.bf16.mxu0 %v183
    %352 = vmatpush1.bf16.msra.mxu0 %v182
    %353 = vmatprep.subr.bf16.mxu0 0
    %354 = vmatpush2.bf16.msra.mxu0 0
    %355 = vmatprep.subr.bf16.mxu0 0
    %356 = vmatpush2.bf16.msra.mxu0 0
    %357 = vmatprep.subr.bf16.mxu0 0
    %358 = vmatpush2.bf16.msra.mxu0 0
    %359 = vmatprep.subr.bf16.mxu0 0
    %360 = vmatpush2.bf16.msra.mxu0 0
    %361 = vmatprep.subr.bf16.mxu0 0
    %362 = vmatpush2.bf16.msra.mxu0 0
    %363 = vmatprep.subr.bf16.mxu0 0
    %364 = vmatpush2.bf16.msra.mxu0 0
    %365 = vmatprep.subr.bf16.mxu0 0
    %366 = vmatpush2.bf16.msra.mxu0 0
    %367 = vmatprep.subr.bf16.mxu0 0
    %368 = vmatpush2.bf16.msra.mxu0 0
    %369 = vmatprep.mubr.bf16.mxu0 0
    %370 = vmatmul.mubr.bf16.gmra.mxu0 %v216
    %v371 = vpop.f32.mrf.mxu0
    %v372 = vadd.f32 0.0, %v371
    %v373 = vpop.f32.mrf.mxu0
    %v374 = vadd.f32 0.0, %v373
    %v375 = vpop.f32.mrf.mxu0
    %v376 = vpop.f32.mrf.mxu0
    %377 = vdwg.mxu0
    %378 = vmatprep.subr.bf16.mxu0 0
    %379 = vmatpush1.bf16.msra.mxu0 0
    %380 = vmatprep.subr.bf16.mxu0 0
    %381 = vmatpush1.bf16.msra.mxu0 0
    %382 = vmatprep.subr.bf16.mxu0 0
    %383 = vmatpush1.bf16.msra.mxu0 0
    %384 = vmatprep.subr.bf16.mxu0 0
    %385 = vmatpush1.bf16.msra.mxu0 0
    %386 = vmatprep.subr.bf16.mxu0 0
    %387 = vmatpush1.bf16.msra.mxu0 0
    %388 = vmatprep.subr.bf16.mxu0 0
    %389 = vmatpush1.bf16.msra.mxu0 0
    %390 = vmatprep.subr.bf16.mxu0 %v241
    %391 = vmatpush1.bf16.msra.mxu0 %v238
    %392 = vmatprep.subr.bf16.mxu0 %v185
    %393 = vmatpush1.bf16.msra.mxu0 %v184
    %394 = vmatprep.subr.bf16.mxu0 0
    %395 = vmatpush2.bf16.msra.mxu0 0
    %396 = vmatprep.subr.bf16.mxu0 0
    %397 = vmatpush2.bf16.msra.mxu0 0
    %398 = vmatprep.subr.bf16.mxu0 0
    %399 = vmatpush2.bf16.msra.mxu0 0
    %400 = vmatprep.subr.bf16.mxu0 0
    %401 = vmatpush2.bf16.msra.mxu0 0
    %402 = vmatprep.subr.bf16.mxu0 0
    %403 = vmatpush2.bf16.msra.mxu0 0
    %404 = vmatprep.subr.bf16.mxu0 0
    %405 = vmatpush2.bf16.msra.mxu0 0
    %406 = vmatprep.subr.bf16.mxu0 0
    %407 = vmatpush2.bf16.msra.mxu0 0
    %408 = vmatprep.subr.bf16.mxu0 0
    %409 = vmatpush2.bf16.msra.mxu0 0
    %410 = vmatprep.mubr.bf16.mxu0 0
    %411 = vmatmul.mubr.bf16.gmra.mxu0 %v216
    %v412 = vpop.f32.mrf.mxu0
    %v413 = vadd.f32 0.0, %v412
    %v414 = vpop.f32.mrf.mxu0
    %v415 = vadd.f32 0.0, %v414
    %v416 = vpop.f32.mrf.mxu0
    %v417 = vpop.f32.mrf.mxu0
    %418 = vdwg.mxu0
    %419 = vmatprep.subr.bf16.mxu0 0
    %420 = vmatpush1.bf16.msra.mxu0 0
    %421 = vmatprep.subr.bf16.mxu0 0
    %422 = vmatpush1.bf16.msra.mxu0 0
    %423 = vmatprep.subr.bf16.mxu0 0
    %424 = vmatpush1.bf16.msra.mxu0 0
    %425 = vmatprep.subr.bf16.mxu0 0
    %426 = vmatpush1.bf16.msra.mxu0 0
    %427 = vmatprep.subr.bf16.mxu0 0
    %428 = vmatpush1.bf16.msra.mxu0 0
    %429 = vmatprep.subr.bf16.mxu0 0
    %430 = vmatpush1.bf16.msra.mxu0 0
    %431 = vmatprep.subr.bf16.mxu0 %v247
    %432 = vmatpush1.bf16.msra.mxu0 %v244
    %433 = vmatprep.subr.bf16.mxu0 %v187
    %434 = vmatpush1.bf16.msra.mxu0 %v186
    %435 = vmatprep.subr.bf16.mxu0 0
    %436 = vmatpush2.bf16.msra.mxu0 0
    %437 = vmatprep.subr.bf16.mxu0 0
    %438 = vmatpush2.bf16.msra.mxu0 0
    %439 = vmatprep.subr.bf16.mxu0 0
    %440 = vmatpush2.bf16.msra.mxu0 0
    %441 = vmatprep.subr.bf16.mxu0 0
    %442 = vmatpush2.bf16.msra.mxu0 0
    %443 = vmatprep.subr.bf16.mxu0 0
    %444 = vmatpush2.bf16.msra.mxu0 0
    %445 = vmatprep.subr.bf16.mxu0 0
    %446 = vmatpush2.bf16.msra.mxu0 0
    %447 = vmatprep.subr.bf16.mxu0 0
    %448 = vmatpush2.bf16.msra.mxu0 0
    %449 = vmatprep.subr.bf16.mxu0 0
    %450 = vmatpush2.bf16.msra.mxu0 0
    %451 = vmatprep.mubr.bf16.mxu0 0
    %452 = vmatmul.mubr.bf16.gmra.mxu0 %v216
    %v453 = vpop.f32.mrf.mxu0
    %v454 = vadd.f32 0.0, %v453
    %v455 = vpop.f32.mrf.mxu0
    %v456 = vadd.f32 0.0, %v455
    %v457 = vpop.f32.mrf.mxu0
    %v458 = vpop.f32.mrf.mxu0
    %459 = vdwg.mxu0
    %460 = vmatprep.subr.bf16.mxu0 0
    %461 = vmatpush1.bf16.msra.mxu0 0
    %462 = vmatprep.subr.bf16.mxu0 0
    %463 = vmatpush1.bf16.msra.mxu0 0
    %464 = vmatprep.subr.bf16.mxu0 0
    %465 = vmatpush1.bf16.msra.mxu0 0
    %466 = vmatprep.subr.bf16.mxu0 0
    %467 = vmatpush1.bf16.msra.mxu0 0
    %468 = vmatprep.subr.bf16.mxu0 0
    %469 = vmatpush1.bf16.msra.mxu0 0
    %470 = vmatprep.subr.bf16.mxu0 0
    %471 = vmatpush1.bf16.msra.mxu0 0
    %472 = vmatprep.subr.bf16.mxu0 %v253
    %473 = vmatpush1.bf16.msra.mxu0 %v250
    %474 = vmatprep.subr.bf16.mxu0 %v189
    %475 = vmatpush1.bf16.msra.mxu0 %v188
    %476 = vmatprep.subr.bf16.mxu0 0
    %477 = vmatpush2.bf16.msra.mxu0 0
    %478 = vmatprep.subr.bf16.mxu0 0
    %479 = vmatpush2.bf16.msra.mxu0 0
    %480 = vmatprep.subr.bf16.mxu0 0
    %481 = vmatpush2.bf16.msra.mxu0 0
    %482 = vmatprep.subr.bf16.mxu0 0
    %483 = vmatpush2.bf16.msra.mxu0 0
    %484 = vmatprep.subr.bf16.mxu0 0
    %485 = vmatpush2.bf16.msra.mxu0 0
    %486 = vmatprep.subr.bf16.mxu0 0
    %487 = vmatpush2.bf16.msra.mxu0 0
    %488 = vmatprep.subr.bf16.mxu0 0
    %489 = vmatpush2.bf16.msra.mxu0 0
    %490 = vmatprep.subr.bf16.mxu0 0
    %491 = vmatpush2.bf16.msra.mxu0 0
    %492 = vmatprep.mubr.bf16.mxu0 0
    %493 = vmatmul.mubr.bf16.gmra.mxu0 %v216
    %v494 = vpop.f32.mrf.mxu0
    %v495 = vadd.f32 0.0, %v494
    %v496 = vpop.f32.mrf.mxu0
    %v497 = vadd.f32 0.0, %v496
    %v498 = vpop.f32.mrf.mxu0
    %v499 = vpop.f32.mrf.mxu0
    %500 = vdwg.mxu0
    %v501 = vld [vmem:[#allocation5] sm:$0xff]
    %v502 = vld [vmem:[#allocation5 + $0x8] sm:$0xff]
    %v503 = vld [vmem:[#allocation5 + $0x10] sm:$0xff]
    %v504 = vld [vmem:[#allocation5 + $0x18] sm:$0xff]
    %v505 = vpack.c.bf16 %v501, %v501
    %v506 = vpack.c.bf16 %v502, %v502
    %v507 = vpack.c.bf16 %v503, %v503
    %v508 = vpack.c.bf16 %v504, %v504
    %v509 = vld [vmem:[#allocation8] sm:$0xff]
    %v510 = vld [vmem:[#allocation8 + $0x8] sm:$0xff]
    %v511 = vld [vmem:[#allocation8 + $0x10] sm:$0xff]
    %v512 = vld [vmem:[#allocation8 + $0x18] sm:$0xff]
    %v513 = vld [vmem:[#allocation8 + $0x20] sm:$0xff]
    %v514 = vld [vmem:[#allocation8 + $0x28] sm:$0xff]
    %v515 = vld [vmem:[#allocation8 + $0x30] sm:$0xff]
    %v516 = vld [vmem:[#allocation8 + $0x38] sm:$0xff]
    %v517 = vld [vmem:[#allocation8 + $0x40] sm:$0xff]
    %v518 = vld [vmem:[#allocation8 + $0x48] sm:$0xff]
    %v519 = vld [vmem:[#allocation8 + $0x50] sm:$0xff]
    %v520 = vld [vmem:[#allocation8 + $0x58] sm:$0xff]
    %v521 = vld [vmem:[#allocation8 + $0x60] sm:$0xff]
    %v522 = vld [vmem:[#allocation8 + $0x68] sm:$0xff]
    %v523 = vld [vmem:[#allocation8 + $0x70] sm:$0xff]
    %v524 = vld [vmem:[#allocation8 + $0x78] sm:$0xff]
    %v525 = vld [vmem:[#allocation8 + $0x80] sm:$0xff]
    %v526 = vld [vmem:[#allocation8 + $0x88] sm:$0xff]
    %v527 = vld [vmem:[#allocation8 + $0x90] sm:$0xff]
    %v528 = vld [vmem:[#allocation8 + $0x98] sm:$0xff]
    %v529 = vld [vmem:[#allocation8 + $0xa0] sm:$0xff]
    %v530 = vld [vmem:[#allocation8 + $0xa8] sm:$0xff]
    %v531 = vld [vmem:[#allocation8 + $0xb0] sm:$0xff]
    %v532 = vld [vmem:[#allocation8 + $0xb8] sm:$0xff]
    %v533 = vld [vmem:[#allocation8 + $0xc0] sm:$0xff]
    %v534 = vld [vmem:[#allocation8 + $0xc8] sm:$0xff]
    %v535 = vld [vmem:[#allocation8 + $0xd0] sm:$0xff]
    %v536 = vld [vmem:[#allocation8 + $0xd8] sm:$0xff]
    %v537 = vld [vmem:[#allocation8 + $0xe0] sm:$0xff]
    %v538 = vld [vmem:[#allocation8 + $0xe8] sm:$0xff]
    %v539 = vld [vmem:[#allocation8 + $0xf0] sm:$0xff]
    %v540 = vld [vmem:[#allocation8 + $0xf8] sm:$0xff]
    %v541 = vld [vmem:[#allocation8 + $0x100] sm:$0xff]
    %v542 = vld [vmem:[#allocation8 + $0x108] sm:$0xff]
    %v543 = vld [vmem:[#allocation8 + $0x110] sm:$0xff]
    %v544 = vld [vmem:[#allocation8 + $0x118] sm:$0xff]
    %v545 = vld [vmem:[#allocation8 + $0x120] sm:$0xff]
    %v546 = vld [vmem:[#allocation8 + $0x128] sm:$0xff]
    %v547 = vld [vmem:[#allocation8 + $0x130] sm:$0xff]
    %v548 = vld [vmem:[#allocation8 + $0x138] sm:$0xff]
    %v549 = vld [vmem:[#allocation8 + $0x140] sm:$0xff]
    %v550 = vld [vmem:[#allocation8 + $0x148] sm:$0xff]
    %v551 = vld [vmem:[#allocation8 + $0x150] sm:$0xff]
    %v552 = vld [vmem:[#allocation8 + $0x158] sm:$0xff]
    %v553 = vld [vmem:[#allocation8 + $0x160] sm:$0xff]
    %v554 = vld [vmem:[#allocation8 + $0x168] sm:$0xff]
    %v555 = vld [vmem:[#allocation8 + $0x170] sm:$0xff]
    %v556 = vld [vmem:[#allocation8 + $0x178] sm:$0xff]
    %v557 = vld [vmem:[#allocation8 + $0x180] sm:$0xff]
    %v558 = vld [vmem:[#allocation8 + $0x188] sm:$0xff]
    %v559 = vld [vmem:[#allocation8 + $0x190] sm:$0xff]
    %v560 = vld [vmem:[#allocation8 + $0x198] sm:$0xff]
    %v561 = vld [vmem:[#allocation8 + $0x1a0] sm:$0xff]
    %v562 = vld [vmem:[#allocation8 + $0x1a8] sm:$0xff]
    %v563 = vld [vmem:[#allocation8 + $0x1b0] sm:$0xff]
    %v564 = vld [vmem:[#allocation8 + $0x1b8] sm:$0xff]
    %v565 = vld [vmem:[#allocation8 + $0x1c0] sm:$0xff]
    %v566 = vld [vmem:[#allocation8 + $0x1c8] sm:$0xff]
    %v567 = vld [vmem:[#allocation8 + $0x1d0] sm:$0xff]
    %v568 = vld [vmem:[#allocation8 + $0x1d8] sm:$0xff]
    %v569 = vld [vmem:[#allocation8 + $0x1e0] sm:$0xff]
    %v570 = vld [vmem:[#allocation8 + $0x1e8] sm:$0xff]
    %v571 = vld [vmem:[#allocation8 + $0x1f0] sm:$0xff]
    %v572 = vld [vmem:[#allocation8 + $0x1f8] sm:$0xff]
    %v573 = vld [vmem:[#allocation8 + $0x200] sm:$0xff]
    %v574 = vld [vmem:[#allocation8 + $0x208] sm:$0xff]
    %v575 = vld [vmem:[#allocation8 + $0x210] sm:$0xff]
    %v576 = vld [vmem:[#allocation8 + $0x218] sm:$0xff]
    %v577 = vld [vmem:[#allocation8 + $0x220] sm:$0xff]
    %v578 = vld [vmem:[#allocation8 + $0x228] sm:$0xff]
    %v579 = vld [vmem:[#allocation8 + $0x230] sm:$0xff]
    %v580 = vld [vmem:[#allocation8 + $0x238] sm:$0xff]
    %v581 = vld [vmem:[#allocation8 + $0x240] sm:$0xff]
    %v582 = vld [vmem:[#allocation8 + $0x248] sm:$0xff]
    %v583 = vld [vmem:[#allocation8 + $0x250] sm:$0xff]
    %v584 = vld [vmem:[#allocation8 + $0x258] sm:$0xff]
    %v585 = vld [vmem:[#allocation8 + $0x260] sm:$0xff]
    %v586 = vld [vmem:[#allocation8 + $0x268] sm:$0xff]
    %v587 = vld [vmem:[#allocation8 + $0x270] sm:$0xff]
    %v588 = vld [vmem:[#allocation8 + $0x278] sm:$0xff]
    %v589 = vld [vmem:[#allocation8 + $0x280] sm:$0xff]
    %v590 = vld [vmem:[#allocation8 + $0x288] sm:$0xff]
    %v591 = vld [vmem:[#allocation8 + $0x290] sm:$0xff]
    %v592 = vld [vmem:[#allocation8 + $0x298] sm:$0xff]
    %v593 = vld [vmem:[#allocation8 + $0x2a0] sm:$0xff]
    %v594 = vld [vmem:[#allocation8 + $0x2a8] sm:$0xff]
    %v595 = vld [vmem:[#allocation8 + $0x2b0] sm:$0xff]
    %v596 = vld [vmem:[#allocation8 + $0x2b8] sm:$0xff]
    %v597 = vld [vmem:[#allocation8 + $0x2c0] sm:$0xff]
    %v598 = vld [vmem:[#allocation8 + $0x2c8] sm:$0xff]
    %v599 = vld [vmem:[#allocation8 + $0x2d0] sm:$0xff]
    %v600 = vld [vmem:[#allocation8 + $0x2d8] sm:$0xff]
    %v601 = vld [vmem:[#allocation8 + $0x2e0] sm:$0xff]
    %v602 = vld [vmem:[#allocation8 + $0x2e8] sm:$0xff]
    %v603 = vld [vmem:[#allocation8 + $0x2f0] sm:$0xff]
    %v604 = vld [vmem:[#allocation8 + $0x2f8] sm:$0xff]
    %v605 = vld [vmem:[#allocation8 + $0x300] sm:$0xff]
    %v606 = vld [vmem:[#allocation8 + $0x308] sm:$0xff]
    %v607 = vld [vmem:[#allocation8 + $0x310] sm:$0xff]
    %v608 = vld [vmem:[#allocation8 + $0x318] sm:$0xff]
    %v609 = vld [vmem:[#allocation8 + $0x320] sm:$0xff]
    %v610 = vld [vmem:[#allocation8 + $0x328] sm:$0xff]
    %v611 = vld [vmem:[#allocation8 + $0x330] sm:$0xff]
    %v612 = vld [vmem:[#allocation8 + $0x338] sm:$0xff]
    %v613 = vld [vmem:[#allocation8 + $0x340] sm:$0xff]
    %v614 = vld [vmem:[#allocation8 + $0x348] sm:$0xff]
    %v615 = vld [vmem:[#allocation8 + $0x350] sm:$0xff]
    %v616 = vld [vmem:[#allocation8 + $0x358] sm:$0xff]
    %v617 = vld [vmem:[#allocation8 + $0x360] sm:$0xff]
    %v618 = vld [vmem:[#allocation8 + $0x368] sm:$0xff]
    %v619 = vld [vmem:[#allocation8 + $0x370] sm:$0xff]
    %v620 = vld [vmem:[#allocation8 + $0x378] sm:$0xff]
    %v621 = vld [vmem:[#allocation8 + $0x380] sm:$0xff]
    %v622 = vld [vmem:[#allocation8 + $0x388] sm:$0xff]
    %v623 = vld [vmem:[#allocation8 + $0x390] sm:$0xff]
    %v624 = vld [vmem:[#allocation8 + $0x398] sm:$0xff]
    %v625 = vld [vmem:[#allocation8 + $0x3a0] sm:$0xff]
    %v626 = vld [vmem:[#allocation8 + $0x3a8] sm:$0xff]
    %v627 = vld [vmem:[#allocation8 + $0x3b0] sm:$0xff]
    %v628 = vld [vmem:[#allocation8 + $0x3b8] sm:$0xff]
    %v629 = vld [vmem:[#allocation8 + $0x3c0] sm:$0xff]
    %v630 = vld [vmem:[#allocation8 + $0x3c8] sm:$0xff]
    %v631 = vld [vmem:[#allocation8 + $0x3d0] sm:$0xff]
    %v632 = vld [vmem:[#allocation8 + $0x3d8] sm:$0xff]
    %v633 = vld [vmem:[#allocation8 + $0x3e0] sm:$0xff]
    %v634 = vld [vmem:[#allocation8 + $0x3e8] sm:$0xff]
    %v635 = vld [vmem:[#allocation8 + $0x3f0] sm:$0xff]
    %v636 = vld [vmem:[#allocation8 + $0x3f8] sm:$0xff]
    %v637 = vld [vmem:[#allocation8 + $0x400] sm:$0xff]
    %v638 = vld [vmem:[#allocation8 + $0x408] sm:$0xff]
    %v639 = vld [vmem:[#allocation8 + $0x410] sm:$0xff]
    %v640 = vld [vmem:[#allocation8 + $0x418] sm:$0xff]
    %v641 = vld [vmem:[#allocation8 + $0x420] sm:$0xff]
    %v642 = vld [vmem:[#allocation8 + $0x428] sm:$0xff]
    %v643 = vld [vmem:[#allocation8 + $0x430] sm:$0xff]
    %v644 = vld [vmem:[#allocation8 + $0x438] sm:$0xff]
    %v645 = vld [vmem:[#allocation8 + $0x440] sm:$0xff]
    %v646 = vld [vmem:[#allocation8 + $0x448] sm:$0xff]
    %v647 = vld [vmem:[#allocation8 + $0x450] sm:$0xff]
    %v648 = vld [vmem:[#allocation8 + $0x458] sm:$0xff]
    %v649 = vld [vmem:[#allocation8 + $0x460] sm:$0xff]
    %v650 = vld [vmem:[#allocation8 + $0x468] sm:$0xff]
    %v651 = vld [vmem:[#allocation8 + $0x470] sm:$0xff]
    %v652 = vld [vmem:[#allocation8 + $0x478] sm:$0xff]
    %v653 = vld [vmem:[#allocation8 + $0x480] sm:$0xff]
    %v654 = vld [vmem:[#allocation8 + $0x488] sm:$0xff]
    %v655 = vld [vmem:[#allocation8 + $0x490] sm:$0xff]
    %v656 = vld [vmem:[#allocation8 + $0x498] sm:$0xff]
    %v657 = vld [vmem:[#allocation8 + $0x4a0] sm:$0xff]
    %v658 = vld [vmem:[#allocation8 + $0x4a8] sm:$0xff]
    %v659 = vld [vmem:[#allocation8 + $0x4b0] sm:$0xff]
    %v660 = vld [vmem:[#allocation8 + $0x4b8] sm:$0xff]
    %v661 = vld [vmem:[#allocation8 + $0x4c0] sm:$0xff]
    %v662 = vld [vmem:[#allocation8 + $0x4c8] sm:$0xff]
    %v663 = vld [vmem:[#allocation8 + $0x4d0] sm:$0xff]
    %v664 = vld [vmem:[#allocation8 + $0x4d8] sm:$0xff]
    %v665 = vld [vmem:[#allocation8 + $0x4e0] sm:$0xff]
    %v666 = vld [vmem:[#allocation8 + $0x4e8] sm:$0xff]
    %v667 = vld [vmem:[#allocation8 + $0x4f0] sm:$0xff]
    %v668 = vld [vmem:[#allocation8 + $0x4f8] sm:$0xff]
    %v669 = vld [vmem:[#allocation8 + $0x500] sm:$0xff]
    %v670 = vld [vmem:[#allocation8 + $0x508] sm:$0xff]
    %v671 = vld [vmem:[#allocation8 + $0x510] sm:$0xff]
    %v672 = vld [vmem:[#allocation8 + $0x518] sm:$0xff]
    %v673 = vld [vmem:[#allocation8 + $0x520] sm:$0xff]
    %v674 = vld [vmem:[#allocation8 + $0x528] sm:$0xff]
    %v675 = vld [vmem:[#allocation8 + $0x530] sm:$0xff]
    %v676 = vld [vmem:[#allocation8 + $0x538] sm:$0xff]
    %v677 = vld [vmem:[#allocation8 + $0x540] sm:$0xff]
    %v678 = vld [vmem:[#allocation8 + $0x548] sm:$0xff]
    %v679 = vld [vmem:[#allocation8 + $0x550] sm:$0xff]
    %v680 = vld [vmem:[#allocation8 + $0x558] sm:$0xff]
    %v681 = vld [vmem:[#allocation8 + $0x560] sm:$0xff]
    %v682 = vld [vmem:[#allocation8 + $0x568] sm:$0xff]
    %v683 = vld [vmem:[#allocation8 + $0x570] sm:$0xff]
    %v684 = vld [vmem:[#allocation8 + $0x578] sm:$0xff]
    %v685 = vld [vmem:[#allocation8 + $0x580] sm:$0xff]
    %v686 = vld [vmem:[#allocation8 + $0x588] sm:$0xff]
    %v687 = vld [vmem:[#allocation8 + $0x590] sm:$0xff]
    %v688 = vld [vmem:[#allocation8 + $0x598] sm:$0xff]
    %v689 = vld [vmem:[#allocation8 + $0x5a0] sm:$0xff]
    %v690 = vld [vmem:[#allocation8 + $0x5a8] sm:$0xff]
    %v691 = vld [vmem:[#allocation8 + $0x5b0] sm:$0xff]
    %v692 = vld [vmem:[#allocation8 + $0x5b8] sm:$0xff]
    %v693 = vld [vmem:[#allocation8 + $0x5c0] sm:$0xff]
    %v694 = vld [vmem:[#allocation8 + $0x5c8] sm:$0xff]
    %v695 = vld [vmem:[#allocation8 + $0x5d0] sm:$0xff]
    %v696 = vld [vmem:[#allocation8 + $0x5d8] sm:$0xff]
    %v697 = vld [vmem:[#allocation8 + $0x5e0] sm:$0xff]
    %v698 = vld [vmem:[#allocation8 + $0x5e8] sm:$0xff]
    %v699 = vld [vmem:[#allocation8 + $0x5f0] sm:$0xff]
    %v700 = vld [vmem:[#allocation8 + $0x5f8] sm:$0xff]
    %v701 = vld [vmem:[#allocation8 + $0x600] sm:$0xff]
    %v702 = vld [vmem:[#allocation8 + $0x608] sm:$0xff]
    %v703 = vld [vmem:[#allocation8 + $0x610] sm:$0xff]
    %v704 = vld [vmem:[#allocation8 + $0x618] sm:$0xff]
    %v705 = vld [vmem:[#allocation8 + $0x620] sm:$0xff]
    %v706 = vld [vmem:[#allocation8 + $0x628] sm:$0xff]
    %v707 = vld [vmem:[#allocation8 + $0x630] sm:$0xff]
    %v708 = vld [vmem:[#allocation8 + $0x638] sm:$0xff]
    %v709 = vld [vmem:[#allocation8 + $0x640] sm:$0xff]
    %v710 = vld [vmem:[#allocation8 + $0x648] sm:$0xff]
    %v711 = vld [vmem:[#allocation8 + $0x650] sm:$0xff]
    %v712 = vld [vmem:[#allocation8 + $0x658] sm:$0xff]
    %v713 = vld [vmem:[#allocation8 + $0x660] sm:$0xff]
    %v714 = vld [vmem:[#allocation8 + $0x668] sm:$0xff]
    %v715 = vld [vmem:[#allocation8 + $0x670] sm:$0xff]
    %v716 = vld [vmem:[#allocation8 + $0x678] sm:$0xff]
    %v717 = vld [vmem:[#allocation8 + $0x680] sm:$0xff]
    %v718 = vld [vmem:[#allocation8 + $0x688] sm:$0xff]
    %v719 = vld [vmem:[#allocation8 + $0x690] sm:$0xff]
    %v720 = vld [vmem:[#allocation8 + $0x698] sm:$0xff]
    %v721 = vld [vmem:[#allocation8 + $0x6a0] sm:$0xff]
    %v722 = vld [vmem:[#allocation8 + $0x6a8] sm:$0xff]
    %v723 = vld [vmem:[#allocation8 + $0x6b0] sm:$0xff]
    %v724 = vld [vmem:[#allocation8 + $0x6b8] sm:$0xff]
    %v725 = vld [vmem:[#allocation8 + $0x6c0] sm:$0xff]
    %v726 = vld [vmem:[#allocation8 + $0x6c8] sm:$0xff]
    %v727 = vld [vmem:[#allocation8 + $0x6d0] sm:$0xff]
    %v728 = vld [vmem:[#allocation8 + $0x6d8] sm:$0xff]
    %v729 = vld [vmem:[#allocation8 + $0x6e0] sm:$0xff]
    %v730 = vld [vmem:[#allocation8 + $0x6e8] sm:$0xff]
    %v731 = vld [vmem:[#allocation8 + $0x6f0] sm:$0xff]
    %v732 = vld [vmem:[#allocation8 + $0x6f8] sm:$0xff]
    %v733 = vld [vmem:[#allocation8 + $0x700] sm:$0xff]
    %v734 = vld [vmem:[#allocation8 + $0x708] sm:$0xff]
    %v735 = vld [vmem:[#allocation8 + $0x710] sm:$0xff]
    %v736 = vld [vmem:[#allocation8 + $0x718] sm:$0xff]
    %v737 = vld [vmem:[#allocation8 + $0x720] sm:$0xff]
    %v738 = vld [vmem:[#allocation8 + $0x728] sm:$0xff]
    %v739 = vld [vmem:[#allocation8 + $0x730] sm:$0xff]
    %v740 = vld [vmem:[#allocation8 + $0x738] sm:$0xff]
    %v741 = vld [vmem:[#allocation8 + $0x740] sm:$0xff]
    %v742 = vld [vmem:[#allocation8 + $0x748] sm:$0xff]
    %v743 = vld [vmem:[#allocation8 + $0x750] sm:$0xff]
    %v744 = vld [vmem:[#allocation8 + $0x758] sm:$0xff]
    %v745 = vld [vmem:[#allocation8 + $0x760] sm:$0xff]
    %v746 = vld [vmem:[#allocation8 + $0x768] sm:$0xff]
    %v747 = vld [vmem:[#allocation8 + $0x770] sm:$0xff]
    %v748 = vld [vmem:[#allocation8 + $0x778] sm:$0xff]
    %v749 = vld [vmem:[#allocation8 + $0x780] sm:$0xff]
    %v750 = vld [vmem:[#allocation8 + $0x788] sm:$0xff]
    %v751 = vld [vmem:[#allocation8 + $0x790] sm:$0xff]
    %v752 = vld [vmem:[#allocation8 + $0x798] sm:$0xff]
    %v753 = vld [vmem:[#allocation8 + $0x7a0] sm:$0xff]
    %v754 = vld [vmem:[#allocation8 + $0x7a8] sm:$0xff]
    %v755 = vld [vmem:[#allocation8 + $0x7b0] sm:$0xff]
    %v756 = vld [vmem:[#allocation8 + $0x7b8] sm:$0xff]
    %v757 = vld [vmem:[#allocation8 + $0x7c0] sm:$0xff]
    %v758 = vld [vmem:[#allocation8 + $0x7c8] sm:$0xff]
    %v759 = vld [vmem:[#allocation8 + $0x7d0] sm:$0xff]
    %v760 = vld [vmem:[#allocation8 + $0x7d8] sm:$0xff]
    %v761 = vld [vmem:[#allocation8 + $0x7e0] sm:$0xff]
    %v762 = vld [vmem:[#allocation8 + $0x7e8] sm:$0xff]
    %v763 = vld [vmem:[#allocation8 + $0x7f0] sm:$0xff]
    %v764 = vld [vmem:[#allocation8 + $0x7f8] sm:$0xff]
    %v765 = vld [vmem:[#allocation8 + $0x800] sm:$0xff]
    %v766 = vld [vmem:[#allocation8 + $0x808] sm:$0xff]
    %v767 = vld [vmem:[#allocation8 + $0x810] sm:$0xff]
    %v768 = vld [vmem:[#allocation8 + $0x818] sm:$0xff]
    %v769 = vld [vmem:[#allocation8 + $0x820] sm:$0xff]
    %v770 = vld [vmem:[#allocation8 + $0x828] sm:$0xff]
    %v771 = vld [vmem:[#allocation8 + $0x830] sm:$0xff]
    %v772 = vld [vmem:[#allocation8 + $0x838] sm:$0xff]
    %v773 = vld [vmem:[#allocation8 + $0x840] sm:$0xff]
    %v774 = vld [vmem:[#allocation8 + $0x848] sm:$0xff]
    %v775 = vld [vmem:[#allocation8 + $0x850] sm:$0xff]
    %v776 = vld [vmem:[#allocation8 + $0x858] sm:$0xff]
    %v777 = vld [vmem:[#allocation8 + $0x860] sm:$0xff]
    %v778 = vld [vmem:[#allocation8 + $0x868] sm:$0xff]
    %v779 = vld [vmem:[#allocation8 + $0x870] sm:$0xff]
    %v780 = vld [vmem:[#allocation8 + $0x878] sm:$0xff]
    %v781 = vld [vmem:[#allocation8 + $0x880] sm:$0xff]
    %v782 = vld [vmem:[#allocation8 + $0x888] sm:$0xff]
    %v783 = vld [vmem:[#allocation8 + $0x890] sm:$0xff]
    %v784 = vld [vmem:[#allocation8 + $0x898] sm:$0xff]
    %v785 = vld [vmem:[#allocation8 + $0x8a0] sm:$0xff]
    %v786 = vld [vmem:[#allocation8 + $0x8a8] sm:$0xff]
    %v787 = vld [vmem:[#allocation8 + $0x8b0] sm:$0xff]
    %v788 = vld [vmem:[#allocation8 + $0x8b8] sm:$0xff]
    %v789 = vld [vmem:[#allocation8 + $0x8c0] sm:$0xff]
    %v790 = vld [vmem:[#allocation8 + $0x8c8] sm:$0xff]
    %v791 = vld [vmem:[#allocation8 + $0x8d0] sm:$0xff]
    %v792 = vld [vmem:[#allocation8 + $0x8d8] sm:$0xff]
    %v793 = vld [vmem:[#allocation8 + $0x8e0] sm:$0xff]
    %v794 = vld [vmem:[#allocation8 + $0x8e8] sm:$0xff]
    %v795 = vld [vmem:[#allocation8 + $0x8f0] sm:$0xff]
    %v796 = vld [vmem:[#allocation8 + $0x8f8] sm:$0xff]
    %v797 = vld [vmem:[#allocation8 + $0x900] sm:$0xff]
    %v798 = vld [vmem:[#allocation8 + $0x908] sm:$0xff]
    %v799 = vld [vmem:[#allocation8 + $0x910] sm:$0xff]
    %v800 = vld [vmem:[#allocation8 + $0x918] sm:$0xff]
    %v801 = vld [vmem:[#allocation8 + $0x920] sm:$0xff]
    %v802 = vld [vmem:[#allocation8 + $0x928] sm:$0xff]
    %v803 = vld [vmem:[#allocation8 + $0x930] sm:$0xff]
    %v804 = vld [vmem:[#allocation8 + $0x938] sm:$0xff]
    %v805 = vld [vmem:[#allocation8 + $0x940] sm:$0xff]
    %v806 = vld [vmem:[#allocation8 + $0x948] sm:$0xff]
    %v807 = vld [vmem:[#allocation8 + $0x950] sm:$0xff]
    %v808 = vld [vmem:[#allocation8 + $0x958] sm:$0xff]
    %v809 = vld [vmem:[#allocation8 + $0x960] sm:$0xff]
    %v810 = vld [vmem:[#allocation8 + $0x968] sm:$0xff]
    %v811 = vld [vmem:[#allocation8 + $0x970] sm:$0xff]
    %v812 = vld [vmem:[#allocation8 + $0x978] sm:$0xff]
    %v813 = vld [vmem:[#allocation8 + $0x980] sm:$0xff]
    %v814 = vld [vmem:[#allocation8 + $0x988] sm:$0xff]
    %v815 = vld [vmem:[#allocation8 + $0x990] sm:$0xff]
    %v816 = vld [vmem:[#allocation8 + $0x998] sm:$0xff]
    %v817 = vld [vmem:[#allocation8 + $0x9a0] sm:$0xff]
    %v818 = vld [vmem:[#allocation8 + $0x9a8] sm:$0xff]
    %v819 = vld [vmem:[#allocation8 + $0x9b0] sm:$0xff]
    %v820 = vld [vmem:[#allocation8 + $0x9b8] sm:$0xff]
    %v821 = vld [vmem:[#allocation8 + $0x9c0] sm:$0xff]
    %v822 = vld [vmem:[#allocation8 + $0x9c8] sm:$0xff]
    %v823 = vld [vmem:[#allocation8 + $0x9d0] sm:$0xff]
    %v824 = vld [vmem:[#allocation8 + $0x9d8] sm:$0xff]
    %v825 = vld [vmem:[#allocation8 + $0x9e0] sm:$0xff]
    %v826 = vld [vmem:[#allocation8 + $0x9e8] sm:$0xff]
    %v827 = vld [vmem:[#allocation8 + $0x9f0] sm:$0xff]
    %v828 = vld [vmem:[#allocation8 + $0x9f8] sm:$0xff]
    %v829 = vld [vmem:[#allocation8 + $0xa00] sm:$0xff]
    %v830 = vld [vmem:[#allocation8 + $0xa08] sm:$0xff]
    %v831 = vld [vmem:[#allocation8 + $0xa10] sm:$0xff]
    %v832 = vld [vmem:[#allocation8 + $0xa18] sm:$0xff]
    %v833 = vld [vmem:[#allocation8 + $0xa20] sm:$0xff]
    %v834 = vld [vmem:[#allocation8 + $0xa28] sm:$0xff]
    %v835 = vld [vmem:[#allocation8 + $0xa30] sm:$0xff]
    %v836 = vld [vmem:[#allocation8 + $0xa38] sm:$0xff]
    %v837 = vld [vmem:[#allocation8 + $0xa40] sm:$0xff]
    %v838 = vld [vmem:[#allocation8 + $0xa48] sm:$0xff]
    %v839 = vld [vmem:[#allocation8 + $0xa50] sm:$0xff]
    %v840 = vld [vmem:[#allocation8 + $0xa58] sm:$0xff]
    %v841 = vld [vmem:[#allocation8 + $0xa60] sm:$0xff]
    %v842 = vld [vmem:[#allocation8 + $0xa68] sm:$0xff]
    %v843 = vld [vmem:[#allocation8 + $0xa70] sm:$0xff]
    %v844 = vld [vmem:[#allocation8 + $0xa78] sm:$0xff]
    %v845 = vld [vmem:[#allocation8 + $0xa80] sm:$0xff]
    %v846 = vld [vmem:[#allocation8 + $0xa88] sm:$0xff]
    %v847 = vld [vmem:[#allocation8 + $0xa90] sm:$0xff]
    %v848 = vld [vmem:[#allocation8 + $0xa98] sm:$0xff]
    %v849 = vld [vmem:[#allocation8 + $0xaa0] sm:$0xff]
    %v850 = vld [vmem:[#allocation8 + $0xaa8] sm:$0xff]
    %v851 = vld [vmem:[#allocation8 + $0xab0] sm:$0x33]
    %v852 = vld [vmem:[#allocation8 + $0xab8] sm:$0x33]
    %v853 = vld [vmem:[#allocation8 + $0xac0] sm:$0x33]
    %v854 = vld [vmem:[#allocation8 + $0xac8] sm:$0x33]
    %v855 = vld [vmem:[#allocation8 + $0xad0] sm:$0x33]
    %v856 = vld [vmem:[#allocation8 + $0xad8] sm:$0x33]
    %v1205 = vunpack.c.l.b16 %v509
    %v1206 = vunpack.c.h.b16 %v509
    %v1207 = vunpack.c.l.b16 %v510
    %v1208 = vunpack.c.h.b16 %v510
    %v1209 = vunpack.c.l.b16 %v511
    %v1210 = vunpack.c.h.b16 %v511
    %v1211 = vunpack.c.l.b16 %v512
    %v1212 = vunpack.c.h.b16 %v512
    %v1213 = vunpack.c.l.b16 %v513
    %v1214 = vunpack.c.h.b16 %v513
    %v1215 = vunpack.c.l.b16 %v514
    %v1216 = vunpack.c.h.b16 %v514
    %v1217 = vunpack.c.l.b16 %v515
    %v1218 = vunpack.c.h.b16 %v515
    %v1219 = vunpack.c.l.b16 %v516
    %v1220 = vunpack.c.h.b16 %v516
    %v1221 = vunpack.c.l.b16 %v517
    %v1222 = vunpack.c.h.b16 %v517
    %v1223 = vunpack.c.l.b16 %v518
    %v1224 = vunpack.c.h.b16 %v518
    %v1225 = vunpack.c.l.b16 %v519
    %v1226 = vunpack.c.h.b16 %v519
    %v1227 = vunpack.c.l.b16 %v520
    %v1228 = vunpack.c.h.b16 %v520
    %v1229 = vunpack.c.l.b16 %v521
    %v1230 = vunpack.c.h.b16 %v521
    %v1231 = vunpack.c.l.b16 %v522
    %v1232 = vunpack.c.h.b16 %v522
    %v1233 = vunpack.c.l.b16 %v523
    %v1234 = vunpack.c.h.b16 %v523
    %v1235 = vunpack.c.l.b16 %v524
    %v1236 = vunpack.c.h.b16 %v524
    %v1237 = vunpack.c.l.b16 %v525
    %v1238 = vunpack.c.h.b16 %v525
    %v1239 = vunpack.c.l.b16 %v526
    %v1240 = vunpack.c.h.b16 %v526
    %v1241 = vunpack.c.l.b16 %v527
    %v1242 = vunpack.c.h.b16 %v527
    %v1243 = vunpack.c.l.b16 %v528
    %v1244 = vunpack.c.h.b16 %v528
    %v1245 = vunpack.c.l.b16 %v529
    %v1246 = vunpack.c.h.b16 %v529
    %v1247 = vunpack.c.l.b16 %v530
    %v1248 = vunpack.c.h.b16 %v530
    %v1249 = vunpack.c.l.b16 %v531
    %v1250 = vunpack.c.h.b16 %v531
    %v1251 = vunpack.c.l.b16 %v532
    %v1252 = vunpack.c.h.b16 %v532
    %v1253 = vunpack.c.l.b16 %v533
    %v1254 = vunpack.c.h.b16 %v533
    %v1255 = vunpack.c.l.b16 %v534
    %v1256 = vunpack.c.h.b16 %v534
    %v1257 = vunpack.c.l.b16 %v535
    %v1258 = vunpack.c.h.b16 %v535
    %v1259 = vunpack.c.l.b16 %v536
    %v1260 = vunpack.c.h.b16 %v536
    %v1261 = vunpack.c.l.b16 %v537
    %v1262 = vunpack.c.h.b16 %v537
    %v1263 = vunpack.c.l.b16 %v538
    %v1264 = vunpack.c.h.b16 %v538
    %v1265 = vunpack.c.l.b16 %v539
    %v1266 = vunpack.c.h.b16 %v539
    %v1267 = vunpack.c.l.b16 %v540
    %v1268 = vunpack.c.h.b16 %v540
    %v1269 = vunpack.c.l.b16 %v541
    %v1270 = vunpack.c.h.b16 %v541
    %v1271 = vunpack.c.l.b16 %v542
    %v1272 = vunpack.c.h.b16 %v542
    %v1273 = vunpack.c.l.b16 %v543
    %v1274 = vunpack.c.h.b16 %v543
    %v1275 = vunpack.c.l.b16 %v544
    %v1276 = vunpack.c.h.b16 %v544
    %v1277 = vunpack.c.l.b16 %v545
    %v1278 = vunpack.c.h.b16 %v545
    %v1279 = vunpack.c.l.b16 %v546
    %v1280 = vunpack.c.h.b16 %v546
    %v1281 = vunpack.c.l.b16 %v547
    %v1282 = vunpack.c.h.b16 %v547
    %v1283 = vunpack.c.l.b16 %v548
    %v1284 = vunpack.c.h.b16 %v548
    %v1285 = vunpack.c.l.b16 %v549
    %v1286 = vunpack.c.h.b16 %v549
    %v1287 = vunpack.c.l.b16 %v550
    %v1288 = vunpack.c.h.b16 %v550
    %v1289 = vunpack.c.l.b16 %v551
    %v1290 = vunpack.c.h.b16 %v551
    %v1291 = vunpack.c.l.b16 %v552
    %v1292 = vunpack.c.h.b16 %v552
    %v1293 = vunpack.c.l.b16 %v553
    %v1294 = vunpack.c.h.b16 %v553
    %v1295 = vunpack.c.l.b16 %v554
    %v1296 = vunpack.c.h.b16 %v554
    %v1297 = vunpack.c.l.b16 %v555
    %v1298 = vunpack.c.h.b16 %v555
    %v1299 = vunpack.c.l.b16 %v556
    %v1300 = vunpack.c.h.b16 %v556
    %v1301 = vunpack.c.l.b16 %v557
    %v1302 = vunpack.c.h.b16 %v557
    %v1303 = vunpack.c.l.b16 %v558
    %v1304 = vunpack.c.h.b16 %v558
    %v1305 = vunpack.c.l.b16 %v559
    %v1306 = vunpack.c.h.b16 %v559
    %v1307 = vunpack.c.l.b16 %v560
    %v1308 = vunpack.c.h.b16 %v560
    %v1309 = vunpack.c.l.b16 %v561
    %v1310 = vunpack.c.h.b16 %v561
    %v1311 = vunpack.c.l.b16 %v562
    %v1312 = vunpack.c.h.b16 %v562
    %v1313 = vunpack.c.l.b16 %v563
    %v1314 = vunpack.c.h.b16 %v563
    %v1315 = vunpack.c.l.b16 %v564
    %v1316 = vunpack.c.h.b16 %v564
    %v1317 = vunpack.c.l.b16 %v565
    %v1318 = vunpack.c.h.b16 %v565
    %v1319 = vunpack.c.l.b16 %v566
    %v1320 = vunpack.c.h.b16 %v566
    %v1321 = vunpack.c.l.b16 %v567
    %v1322 = vunpack.c.h.b16 %v567
    %v1323 = vunpack.c.l.b16 %v568
    %v1324 = vunpack.c.h.b16 %v568
    %v1325 = vunpack.c.l.b16 %v569
    %v1326 = vunpack.c.h.b16 %v569
    %v1327 = vunpack.c.l.b16 %v570
    %v1328 = vunpack.c.h.b16 %v570
    %v1329 = vunpack.c.l.b16 %v571
    %v1330 = vunpack.c.h.b16 %v571
    %v1331 = vunpack.c.l.b16 %v572
    %v1332 = vunpack.c.h.b16 %v572
    %v1333 = vunpack.c.l.b16 %v573
    %v1334 = vunpack.c.h.b16 %v573
    %v1335 = vunpack.c.l.b16 %v574
    %v1336 = vunpack.c.h.b16 %v574
    %v1337 = vunpack.c.l.b16 %v575
    %v1338 = vunpack.c.h.b16 %v575
    %v1339 = vunpack.c.l.b16 %v576
    %v1340 = vunpack.c.h.b16 %v576
    %v1341 = vunpack.c.l.b16 %v577
    %v1342 = vunpack.c.h.b16 %v577
    %v1343 = vunpack.c.l.b16 %v578
    %v1344 = vunpack.c.h.b16 %v578
    %v1345 = vunpack.c.l.b16 %v579
    %v1346 = vunpack.c.h.b16 %v579
    %v1347 = vunpack.c.l.b16 %v580
    %v1348 = vunpack.c.h.b16 %v580
    %v1349 = vunpack.c.l.b16 %v581
    %v1350 = vunpack.c.h.b16 %v581
    %v1351 = vunpack.c.l.b16 %v582
    %v1352 = vunpack.c.h.b16 %v582
    %v1353 = vunpack.c.l.b16 %v583
    %v1354 = vunpack.c.h.b16 %v583
    %v1355 = vunpack.c.l.b16 %v584
    %v1356 = vunpack.c.h.b16 %v584
    %v1357 = vunpack.c.l.b16 %v585
    %v1358 = vunpack.c.h.b16 %v585
    %v1359 = vunpack.c.l.b16 %v586
    %v1360 = vunpack.c.h.b16 %v586
    %v1361 = vunpack.c.l.b16 %v587
    %v1362 = vunpack.c.h.b16 %v587
    %v1363 = vunpack.c.l.b16 %v588
    %v1364 = vunpack.c.h.b16 %v588
    %v1365 = vunpack.c.l.b16 %v589
    %v1366 = vunpack.c.h.b16 %v589
    %v1367 = vunpack.c.l.b16 %v590
    %v1368 = vunpack.c.h.b16 %v590
    %v1369 = vunpack.c.l.b16 %v591
    %v1370 = vunpack.c.h.b16 %v591
    %v1371 = vunpack.c.l.b16 %v592
    %v1372 = vunpack.c.h.b16 %v592
    %v1373 = vunpack.c.l.b16 %v593
    %v1374 = vunpack.c.h.b16 %v593
    %v1375 = vunpack.c.l.b16 %v594
    %v1376 = vunpack.c.h.b16 %v594
    %v1377 = vunpack.c.l.b16 %v595
    %v1378 = vunpack.c.h.b16 %v595
    %v1379 = vunpack.c.l.b16 %v596
    %v1380 = vunpack.c.h.b16 %v596
    %v1381 = vunpack.c.l.b16 %v597
    %v1382 = vunpack.c.h.b16 %v597
    %v1383 = vunpack.c.l.b16 %v598
    %v1384 = vunpack.c.h.b16 %v598
    %v1385 = vunpack.c.l.b16 %v599
    %v1386 = vunpack.c.h.b16 %v599
    %v1387 = vunpack.c.l.b16 %v600
    %v1388 = vunpack.c.h.b16 %v600
    %v1389 = vunpack.c.l.b16 %v601
    %v1390 = vunpack.c.h.b16 %v601
    %v1391 = vunpack.c.l.b16 %v602
    %v1392 = vunpack.c.h.b16 %v602
    %v1393 = vunpack.c.l.b16 %v603
    %v1394 = vunpack.c.h.b16 %v603
    %v1395 = vunpack.c.l.b16 %v604
    %v1396 = vunpack.c.h.b16 %v604
    %v1397 = vunpack.c.l.b16 %v605
    %v1398 = vunpack.c.h.b16 %v605
    %v1399 = vunpack.c.l.b16 %v606
    %v1400 = vunpack.c.h.b16 %v606
    %v1401 = vunpack.c.l.b16 %v607
    %v1402 = vunpack.c.h.b16 %v607
    %v1403 = vunpack.c.l.b16 %v608
    %v1404 = vunpack.c.h.b16 %v608
    %v1405 = vunpack.c.l.b16 %v609
    %v1406 = vunpack.c.h.b16 %v609
    %v1407 = vunpack.c.l.b16 %v610
    %v1408 = vunpack.c.h.b16 %v610
    %v1409 = vunpack.c.l.b16 %v611
    %v1410 = vunpack.c.h.b16 %v611
    %v1411 = vunpack.c.l.b16 %v612
    %v1412 = vunpack.c.h.b16 %v612
    %v1413 = vunpack.c.l.b16 %v613
    %v1414 = vunpack.c.h.b16 %v613
    %v1415 = vunpack.c.l.b16 %v614
    %v1416 = vunpack.c.h.b16 %v614
    %v1417 = vunpack.c.l.b16 %v615
    %v1418 = vunpack.c.h.b16 %v615
    %v1419 = vunpack.c.l.b16 %v616
    %v1420 = vunpack.c.h.b16 %v616
    %v1421 = vunpack.c.l.b16 %v617
    %v1422 = vunpack.c.h.b16 %v617
    %v1423 = vunpack.c.l.b16 %v618
    %v1424 = vunpack.c.h.b16 %v618
    %v1425 = vunpack.c.l.b16 %v619
    %v1426 = vunpack.c.h.b16 %v619
    %v1427 = vunpack.c.l.b16 %v620
    %v1428 = vunpack.c.h.b16 %v620
    %v1429 = vunpack.c.l.b16 %v621
    %v1430 = vunpack.c.h.b16 %v621
    %v1431 = vunpack.c.l.b16 %v622
    %v1432 = vunpack.c.h.b16 %v622
    %v1433 = vunpack.c.l.b16 %v623
    %v1434 = vunpack.c.h.b16 %v623
    %v1435 = vunpack.c.l.b16 %v624
    %v1436 = vunpack.c.h.b16 %v624
    %v1437 = vunpack.c.l.b16 %v625
    %v1438 = vunpack.c.h.b16 %v625
    %v1439 = vunpack.c.l.b16 %v626
    %v1440 = vunpack.c.h.b16 %v626
    %v1441 = vunpack.c.l.b16 %v627
    %v1442 = vunpack.c.h.b16 %v627
    %v1443 = vunpack.c.l.b16 %v628
    %v1444 = vunpack.c.h.b16 %v628
    %v1445 = vunpack.c.l.b16 %v629
    %v1446 = vunpack.c.h.b16 %v629
    %v1447 = vunpack.c.l.b16 %v630
    %v1448 = vunpack.c.h.b16 %v630
    %v1449 = vunpack.c.l.b16 %v631
    %v1450 = vunpack.c.h.b16 %v631
    %v1451 = vunpack.c.l.b16 %v632
    %v1452 = vunpack.c.h.b16 %v632
    %v1453 = vunpack.c.l.b16 %v633
    %v1454 = vunpack.c.h.b16 %v633
    %v1455 = vunpack.c.l.b16 %v634
    %v1456 = vunpack.c.h.b16 %v634
    %v1457 = vunpack.c.l.b16 %v635
    %v1458 = vunpack.c.h.b16 %v635
    %v1459 = vunpack.c.l.b16 %v636
    %v1460 = vunpack.c.h.b16 %v636
    %v1461 = vunpack.c.l.b16 %v637
    %v1462 = vunpack.c.h.b16 %v637
    %v1463 = vunpack.c.l.b16 %v638
    %v1464 = vunpack.c.h.b16 %v638
    %v1465 = vunpack.c.l.b16 %v639
    %v1466 = vunpack.c.h.b16 %v639
    %v1467 = vunpack.c.l.b16 %v640
    %v1468 = vunpack.c.h.b16 %v640
    %v1469 = vunpack.c.l.b16 %v641
    %v1470 = vunpack.c.h.b16 %v641
    %v1471 = vunpack.c.l.b16 %v642
    %v1472 = vunpack.c.h.b16 %v642
    %v1473 = vunpack.c.l.b16 %v643
    %v1474 = vunpack.c.h.b16 %v643
    %v1475 = vunpack.c.l.b16 %v644
    %v1476 = vunpack.c.h.b16 %v644
    %v1477 = vunpack.c.l.b16 %v645
    %v1478 = vunpack.c.h.b16 %v645
    %v1479 = vunpack.c.l.b16 %v646
    %v1480 = vunpack.c.h.b16 %v646
    %v1481 = vunpack.c.l.b16 %v647
    %v1482 = vunpack.c.h.b16 %v647
    %v1483 = vunpack.c.l.b16 %v648
    %v1484 = vunpack.c.h.b16 %v648
    %v1485 = vunpack.c.l.b16 %v649
    %v1486 = vunpack.c.h.b16 %v649
    %v1487 = vunpack.c.l.b16 %v650
    %v1488 = vunpack.c.h.b16 %v650
    %v1489 = vunpack.c.l.b16 %v651
    %v1490 = vunpack.c.h.b16 %v651
    %v1491 = vunpack.c.l.b16 %v652
    %v1492 = vunpack.c.h.b16 %v652
    %v1493 = vunpack.c.l.b16 %v653
    %v1494 = vunpack.c.h.b16 %v653
    %v1495 = vunpack.c.l.b16 %v654
    %v1496 = vunpack.c.h.b16 %v654
    %v1497 = vunpack.c.l.b16 %v655
    %v1498 = vunpack.c.h.b16 %v655
    %v1499 = vunpack.c.l.b16 %v656
    %v1500 = vunpack.c.h.b16 %v656
    %v1501 = vunpack.c.l.b16 %v657
    %v1502 = vunpack.c.h.b16 %v657
    %v1503 = vunpack.c.l.b16 %v658
    %v1504 = vunpack.c.h.b16 %v658
    %v1505 = vunpack.c.l.b16 %v659
    %v1506 = vunpack.c.h.b16 %v659
    %v1507 = vunpack.c.l.b16 %v660
    %v1508 = vunpack.c.h.b16 %v660
    %v1509 = vunpack.c.l.b16 %v661
    %v1510 = vunpack.c.h.b16 %v661
    %v1511 = vunpack.c.l.b16 %v662
    %v1512 = vunpack.c.h.b16 %v662
    %v1513 = vunpack.c.l.b16 %v663
    %v1514 = vunpack.c.h.b16 %v663
    %v1515 = vunpack.c.l.b16 %v664
    %v1516 = vunpack.c.h.b16 %v664
    %v1517 = vunpack.c.l.b16 %v665
    %v1518 = vunpack.c.h.b16 %v665
    %v1519 = vunpack.c.l.b16 %v666
    %v1520 = vunpack.c.h.b16 %v666
    %v1521 = vunpack.c.l.b16 %v667
    %v1522 = vunpack.c.h.b16 %v667
    %v1523 = vunpack.c.l.b16 %v668
    %v1524 = vunpack.c.h.b16 %v668
    %v1525 = vunpack.c.l.b16 %v669
    %v1526 = vunpack.c.h.b16 %v669
    %v1527 = vunpack.c.l.b16 %v670
    %v1528 = vunpack.c.h.b16 %v670
    %v1529 = vunpack.c.l.b16 %v671
    %v1530 = vunpack.c.h.b16 %v671
    %v1531 = vunpack.c.l.b16 %v672
    %v1532 = vunpack.c.h.b16 %v672
    %v1533 = vunpack.c.l.b16 %v673
    %v1534 = vunpack.c.h.b16 %v673
    %v1535 = vunpack.c.l.b16 %v674
    %v1536 = vunpack.c.h.b16 %v674
    %v1537 = vunpack.c.l.b16 %v675
    %v1538 = vunpack.c.h.b16 %v675
    %v1539 = vunpack.c.l.b16 %v676
    %v1540 = vunpack.c.h.b16 %v676
    %v1541 = vunpack.c.l.b16 %v677
    %v1542 = vunpack.c.h.b16 %v677
    %v1543 = vunpack.c.l.b16 %v678
    %v1544 = vunpack.c.h.b16 %v678
    %v1545 = vunpack.c.l.b16 %v679
    %v1546 = vunpack.c.h.b16 %v679
    %v1547 = vunpack.c.l.b16 %v680
    %v1548 = vunpack.c.h.b16 %v680
    %v1549 = vunpack.c.l.b16 %v681
    %v1550 = vunpack.c.h.b16 %v681
    %v1551 = vunpack.c.l.b16 %v682
    %v1552 = vunpack.c.h.b16 %v682
    %v1553 = vunpack.c.l.b16 %v683
    %v1554 = vunpack.c.h.b16 %v683
    %v1555 = vunpack.c.l.b16 %v684
    %v1556 = vunpack.c.h.b16 %v684
    %v1557 = vunpack.c.l.b16 %v685
    %v1558 = vunpack.c.h.b16 %v685
    %v1559 = vunpack.c.l.b16 %v686
    %v1560 = vunpack.c.h.b16 %v686
    %v1561 = vunpack.c.l.b16 %v687
    %v1562 = vunpack.c.h.b16 %v687
    %v1563 = vunpack.c.l.b16 %v688
    %v1564 = vunpack.c.h.b16 %v688
    %v1565 = vunpack.c.l.b16 %v689
    %v1566 = vunpack.c.h.b16 %v689
    %v1567 = vunpack.c.l.b16 %v690
    %v1568 = vunpack.c.h.b16 %v690
    %v1569 = vunpack.c.l.b16 %v691
    %v1570 = vunpack.c.h.b16 %v691
    %v1571 = vunpack.c.l.b16 %v692
    %v1572 = vunpack.c.h.b16 %v692
    %v1573 = vunpack.c.l.b16 %v693
    %v1574 = vunpack.c.h.b16 %v693
    %v1575 = vunpack.c.l.b16 %v694
    %v1576 = vunpack.c.h.b16 %v694
    %v1577 = vunpack.c.l.b16 %v695
    %v1578 = vunpack.c.h.b16 %v695
    %v1579 = vunpack.c.l.b16 %v696
    %v1580 = vunpack.c.h.b16 %v696
    %v1581 = vunpack.c.l.b16 %v697
    %v1582 = vunpack.c.h.b16 %v697
    %v1583 = vunpack.c.l.b16 %v698
    %v1584 = vunpack.c.h.b16 %v698
    %v1585 = vunpack.c.l.b16 %v699
    %v1586 = vunpack.c.h.b16 %v699
    %v1587 = vunpack.c.l.b16 %v700
    %v1588 = vunpack.c.h.b16 %v700
    %v1589 = vunpack.c.l.b16 %v701
    %v1590 = vunpack.c.h.b16 %v701
    %v1591 = vunpack.c.l.b16 %v702
    %v1592 = vunpack.c.h.b16 %v702
    %v1593 = vunpack.c.l.b16 %v703
    %v1594 = vunpack.c.h.b16 %v703
    %v1595 = vunpack.c.l.b16 %v704
    %v1596 = vunpack.c.h.b16 %v704
    %v1597 = vunpack.c.l.b16 %v705
    %v1598 = vunpack.c.h.b16 %v705
    %v1599 = vunpack.c.l.b16 %v706
    %v1600 = vunpack.c.h.b16 %v706
    %v1601 = vunpack.c.l.b16 %v707
    %v1602 = vunpack.c.h.b16 %v707
    %v1603 = vunpack.c.l.b16 %v708
    %v1604 = vunpack.c.h.b16 %v708
    %v1605 = vunpack.c.l.b16 %v709
    %v1606 = vunpack.c.h.b16 %v709
    %v1607 = vunpack.c.l.b16 %v710
    %v1608 = vunpack.c.h.b16 %v710
    %v1609 = vunpack.c.l.b16 %v711
    %v1610 = vunpack.c.h.b16 %v711
    %v1611 = vunpack.c.l.b16 %v712
    %v1612 = vunpack.c.h.b16 %v712
    %v1613 = vunpack.c.l.b16 %v713
    %v1614 = vunpack.c.h.b16 %v713
    %v1615 = vunpack.c.l.b16 %v714
    %v1616 = vunpack.c.h.b16 %v714
    %v1617 = vunpack.c.l.b16 %v715
    %v1618 = vunpack.c.h.b16 %v715
    %v1619 = vunpack.c.l.b16 %v716
    %v1620 = vunpack.c.h.b16 %v716
    %v1621 = vunpack.c.l.b16 %v717
    %v1622 = vunpack.c.h.b16 %v717
    %v1623 = vunpack.c.l.b16 %v718
    %v1624 = vunpack.c.h.b16 %v718
    %v1625 = vunpack.c.l.b16 %v719
    %v1626 = vunpack.c.h.b16 %v719
    %v1627 = vunpack.c.l.b16 %v720
    %v1628 = vunpack.c.h.b16 %v720
    %v1629 = vunpack.c.l.b16 %v721
    %v1630 = vunpack.c.h.b16 %v721
    %v1631 = vunpack.c.l.b16 %v722
    %v1632 = vunpack.c.h.b16 %v722
    %v1633 = vunpack.c.l.b16 %v723
    %v1634 = vunpack.c.h.b16 %v723
    %v1635 = vunpack.c.l.b16 %v724
    %v1636 = vunpack.c.h.b16 %v724
    %v1637 = vunpack.c.l.b16 %v725
    %v1638 = vunpack.c.h.b16 %v725
    %v1639 = vunpack.c.l.b16 %v726
    %v1640 = vunpack.c.h.b16 %v726
    %v1641 = vunpack.c.l.b16 %v727
    %v1642 = vunpack.c.h.b16 %v727
    %v1643 = vunpack.c.l.b16 %v728
    %v1644 = vunpack.c.h.b16 %v728
    %v1645 = vunpack.c.l.b16 %v729
    %v1646 = vunpack.c.h.b16 %v729
    %v1647 = vunpack.c.l.b16 %v730
    %v1648 = vunpack.c.h.b16 %v730
    %v1649 = vunpack.c.l.b16 %v731
    %v1650 = vunpack.c.h.b16 %v731
    %v1651 = vunpack.c.l.b16 %v732
    %v1652 = vunpack.c.h.b16 %v732
    %v1653 = vunpack.c.l.b16 %v733
    %v1654 = vunpack.c.h.b16 %v733
    %v1655 = vunpack.c.l.b16 %v734
    %v1656 = vunpack.c.h.b16 %v734
    %v1657 = vunpack.c.l.b16 %v735
    %v1658 = vunpack.c.h.b16 %v735
    %v1659 = vunpack.c.l.b16 %v736
    %v1660 = vunpack.c.h.b16 %v736
    %v1661 = vunpack.c.l.b16 %v737
    %v1662 = vunpack.c.h.b16 %v737
    %v1663 = vunpack.c.l.b16 %v738
    %v1664 = vunpack.c.h.b16 %v738
    %v1665 = vunpack.c.l.b16 %v739
    %v1666 = vunpack.c.h.b16 %v739
    %v1667 = vunpack.c.l.b16 %v740
    %v1668 = vunpack.c.h.b16 %v740
    %v1669 = vunpack.c.l.b16 %v741
    %v1670 = vunpack.c.h.b16 %v741
    %v1671 = vunpack.c.l.b16 %v742
    %v1672 = vunpack.c.h.b16 %v742
    %v1673 = vunpack.c.l.b16 %v743
    %v1674 = vunpack.c.h.b16 %v743
    %v1675 = vunpack.c.l.b16 %v744
    %v1676 = vunpack.c.h.b16 %v744
    %v1677 = vunpack.c.l.b16 %v745
    %v1678 = vunpack.c.h.b16 %v745
    %v1679 = vunpack.c.l.b16 %v746
    %v1680 = vunpack.c.h.b16 %v746
    %v1681 = vunpack.c.l.b16 %v747
    %v1682 = vunpack.c.h.b16 %v747
    %v1683 = vunpack.c.l.b16 %v748
    %v1684 = vunpack.c.h.b16 %v748
    %v1685 = vunpack.c.l.b16 %v749
    %v1686 = vunpack.c.h.b16 %v749
    %v1687 = vunpack.c.l.b16 %v750
    %v1688 = vunpack.c.h.b16 %v750
    %v1689 = vunpack.c.l.b16 %v751
    %v1690 = vunpack.c.h.b16 %v751
    %v1691 = vunpack.c.l.b16 %v752
    %v1692 = vunpack.c.h.b16 %v752
    %v1693 = vunpack.c.l.b16 %v753
    %v1694 = vunpack.c.h.b16 %v753
    %v1695 = vunpack.c.l.b16 %v754
    %v1696 = vunpack.c.h.b16 %v754
    %v1697 = vunpack.c.l.b16 %v755
    %v1698 = vunpack.c.h.b16 %v755
    %v1699 = vunpack.c.l.b16 %v756
    %v1700 = vunpack.c.h.b16 %v756
    %v1701 = vunpack.c.l.b16 %v757
    %v1702 = vunpack.c.h.b16 %v757
    %v1703 = vunpack.c.l.b16 %v758
    %v1704 = vunpack.c.h.b16 %v758
    %v1705 = vunpack.c.l.b16 %v759
    %v1706 = vunpack.c.h.b16 %v759
    %v1707 = vunpack.c.l.b16 %v760
    %v1708 = vunpack.c.h.b16 %v760
    %v1709 = vunpack.c.l.b16 %v761
    %v1710 = vunpack.c.h.b16 %v761
    %v1711 = vunpack.c.l.b16 %v762
    %v1712 = vunpack.c.h.b16 %v762
    %v1713 = vunpack.c.l.b16 %v763
    %v1714 = vunpack.c.h.b16 %v763
    %v1715 = vunpack.c.l.b16 %v764
    %v1716 = vunpack.c.h.b16 %v764
    %v1717 = vunpack.c.l.b16 %v765
    %v1718 = vunpack.c.h.b16 %v765
    %v1719 = vunpack.c.l.b16 %v766
    %v1720 = vunpack.c.h.b16 %v766
    %v1721 = vunpack.c.l.b16 %v767
    %v1722 = vunpack.c.h.b16 %v767
    %v1723 = vunpack.c.l.b16 %v768
    %v1724 = vunpack.c.h.b16 %v768
    %v1725 = vunpack.c.l.b16 %v769
    %v1726 = vunpack.c.h.b16 %v769
    %v1727 = vunpack.c.l.b16 %v770
    %v1728 = vunpack.c.h.b16 %v770
    %v1729 = vunpack.c.l.b16 %v771
    %v1730 = vunpack.c.h.b16 %v771
    %v1731 = vunpack.c.l.b16 %v772
    %v1732 = vunpack.c.h.b16 %v772
    %v1733 = vunpack.c.l.b16 %v773
    %v1734 = vunpack.c.h.b16 %v773
    %v1735 = vunpack.c.l.b16 %v774
    %v1736 = vunpack.c.h.b16 %v774
    %v1737 = vunpack.c.l.b16 %v775
    %v1738 = vunpack.c.h.b16 %v775
    %v1739 = vunpack.c.l.b16 %v776
    %v1740 = vunpack.c.h.b16 %v776
    %v1741 = vunpack.c.l.b16 %v777
    %v1742 = vunpack.c.h.b16 %v777
    %v1743 = vunpack.c.l.b16 %v778
    %v1744 = vunpack.c.h.b16 %v778
    %v1745 = vunpack.c.l.b16 %v779
    %v1746 = vunpack.c.h.b16 %v779
    %v1747 = vunpack.c.l.b16 %v780
    %v1748 = vunpack.c.h.b16 %v780
    %v1749 = vunpack.c.l.b16 %v781
    %v1750 = vunpack.c.h.b16 %v781
    %v1751 = vunpack.c.l.b16 %v782
    %v1752 = vunpack.c.h.b16 %v782
    %v1753 = vunpack.c.l.b16 %v783
    %v1754 = vunpack.c.h.b16 %v783
    %v1755 = vunpack.c.l.b16 %v784
    %v1756 = vunpack.c.h.b16 %v784
    %v1757 = vunpack.c.l.b16 %v785
    %v1758 = vunpack.c.h.b16 %v785
    %v1759 = vunpack.c.l.b16 %v786
    %v1760 = vunpack.c.h.b16 %v786
    %v1761 = vunpack.c.l.b16 %v787
    %v1762 = vunpack.c.h.b16 %v787
    %v1763 = vunpack.c.l.b16 %v788
    %v1764 = vunpack.c.h.b16 %v788
    %v1765 = vunpack.c.l.b16 %v789
    %v1766 = vunpack.c.h.b16 %v789
    %v1767 = vunpack.c.l.b16 %v790
    %v1768 = vunpack.c.h.b16 %v790
    %v1769 = vunpack.c.l.b16 %v791
    %v1770 = vunpack.c.h.b16 %v791
    %v1771 = vunpack.c.l.b16 %v792
    %v1772 = vunpack.c.h.b16 %v792
    %v1773 = vunpack.c.l.b16 %v793
    %v1774 = vunpack.c.h.b16 %v793
    %v1775 = vunpack.c.l.b16 %v794
    %v1776 = vunpack.c.h.b16 %v794
    %v1777 = vunpack.c.l.b16 %v795
    %v1778 = vunpack.c.h.b16 %v795
    %v1779 = vunpack.c.l.b16 %v796
    %v1780 = vunpack.c.h.b16 %v796
    %v1781 = vunpack.c.l.b16 %v797
    %v1782 = vunpack.c.h.b16 %v797
    %v1783 = vunpack.c.l.b16 %v798
    %v1784 = vunpack.c.h.b16 %v798
    %v1785 = vunpack.c.l.b16 %v799
    %v1786 = vunpack.c.h.b16 %v799
    %v1787 = vunpack.c.l.b16 %v800
    %v1788 = vunpack.c.h.b16 %v800
    %v1789 = vunpack.c.l.b16 %v801
    %v1790 = vunpack.c.h.b16 %v801
    %v1791 = vunpack.c.l.b16 %v802
    %v1792 = vunpack.c.h.b16 %v802
    %v1793 = vunpack.c.l.b16 %v803
    %v1794 = vunpack.c.h.b16 %v803
    %v1795 = vunpack.c.l.b16 %v804
    %v1796 = vunpack.c.h.b16 %v804
    %v1797 = vunpack.c.l.b16 %v805
    %v1798 = vunpack.c.h.b16 %v805
    %v1799 = vunpack.c.l.b16 %v806
    %v1800 = vunpack.c.h.b16 %v806
    %v1801 = vunpack.c.l.b16 %v807
    %v1802 = vunpack.c.h.b16 %v807
    %v1803 = vunpack.c.l.b16 %v808
    %v1804 = vunpack.c.h.b16 %v808
    %v1805 = vunpack.c.l.b16 %v809
    %v1806 = vunpack.c.h.b16 %v809
    %v1807 = vunpack.c.l.b16 %v810
    %v1808 = vunpack.c.h.b16 %v810
    %v1809 = vunpack.c.l.b16 %v811
    %v1810 = vunpack.c.h.b16 %v811
    %v1811 = vunpack.c.l.b16 %v812
    %v1812 = vunpack.c.h.b16 %v812
    %v1813 = vunpack.c.l.b16 %v813
    %v1814 = vunpack.c.h.b16 %v813
    %v1815 = vunpack.c.l.b16 %v814
    %v1816 = vunpack.c.h.b16 %v814
    %v1817 = vunpack.c.l.b16 %v815
    %v1818 = vunpack.c.h.b16 %v815
    %v1819 = vunpack.c.l.b16 %v816
    %v1820 = vunpack.c.h.b16 %v816
    %v1821 = vunpack.c.l.b16 %v817
    %v1822 = vunpack.c.h.b16 %v817
    %v1823 = vunpack.c.l.b16 %v818
    %v1824 = vunpack.c.h.b16 %v818
    %v1825 = vunpack.c.l.b16 %v819
    %v1826 = vunpack.c.h.b16 %v819
    %v1827 = vunpack.c.l.b16 %v820
    %v1828 = vunpack.c.h.b16 %v820
    %v1829 = vunpack.c.l.b16 %v821
    %v1830 = vunpack.c.h.b16 %v821
    %v1831 = vunpack.c.l.b16 %v822
    %v1832 = vunpack.c.h.b16 %v822
    %v1833 = vunpack.c.l.b16 %v823
    %v1834 = vunpack.c.h.b16 %v823
    %v1835 = vunpack.c.l.b16 %v824
    %v1836 = vunpack.c.h.b16 %v824
    %v1837 = vunpack.c.l.b16 %v825
    %v1838 = vunpack.c.h.b16 %v825
    %v1839 = vunpack.c.l.b16 %v826
    %v1840 = vunpack.c.h.b16 %v826
    %v1841 = vunpack.c.l.b16 %v827
    %v1842 = vunpack.c.h.b16 %v827
    %v1843 = vunpack.c.l.b16 %v828
    %v1844 = vunpack.c.h.b16 %v828
    %v1845 = vunpack.c.l.b16 %v829
    %v1846 = vunpack.c.h.b16 %v829
    %v1847 = vunpack.c.l.b16 %v830
    %v1848 = vunpack.c.h.b16 %v830
    %v1849 = vunpack.c.l.b16 %v831
    %v1850 = vunpack.c.h.b16 %v831
    %v1851 = vunpack.c.l.b16 %v832
    %v1852 = vunpack.c.h.b16 %v832
    %v1853 = vunpack.c.l.b16 %v833
    %v1854 = vunpack.c.h.b16 %v833
    %v1855 = vunpack.c.l.b16 %v834
    %v1856 = vunpack.c.h.b16 %v834
    %v1857 = vunpack.c.l.b16 %v835
    %v1858 = vunpack.c.h.b16 %v835
    %v1859 = vunpack.c.l.b16 %v836
    %v1860 = vunpack.c.h.b16 %v836
    %v1861 = vunpack.c.l.b16 %v837
    %v1862 = vunpack.c.h.b16 %v837
    %v1863 = vunpack.c.l.b16 %v838
    %v1864 = vunpack.c.h.b16 %v838
    %v1865 = vunpack.c.l.b16 %v839
    %v1866 = vunpack.c.h.b16 %v839
    %v1867 = vunpack.c.l.b16 %v840
    %v1868 = vunpack.c.h.b16 %v840
    %v1869 = vunpack.c.l.b16 %v841
    %v1870 = vunpack.c.h.b16 %v841
    %v1871 = vunpack.c.l.b16 %v842
    %v1872 = vunpack.c.h.b16 %v842
    %v1873 = vunpack.c.l.b16 %v843
    %v1874 = vunpack.c.h.b16 %v843
    %v1875 = vunpack.c.l.b16 %v844
    %v1876 = vunpack.c.h.b16 %v844
    %v1877 = vunpack.c.l.b16 %v845
    %v1878 = vunpack.c.h.b16 %v845
    %v1879 = vunpack.c.l.b16 %v846
    %v1880 = vunpack.c.h.b16 %v846
    %v1881 = vunpack.c.l.b16 %v847
    %v1882 = vunpack.c.h.b16 %v847
    %v1883 = vunpack.c.l.b16 %v848
    %v1884 = vunpack.c.h.b16 %v848
    %v1885 = vunpack.c.l.b16 %v849
    %v1886 = vunpack.c.h.b16 %v849
    %v1887 = vunpack.c.l.b16 %v850
    %v1888 = vunpack.c.h.b16 %v850
    %v1889 = vunpack.c.l.b16 %v851
    %v1890 = vunpack.c.h.b16 %v851
    %v1891 = vunpack.c.l.b16 %v852
    %v1892 = vunpack.c.h.b16 %v852
    %v1893 = vunpack.c.l.b16 %v853
    %v1894 = vunpack.c.h.b16 %v853
    %v1895 = vunpack.c.l.b16 %v854
    %v1896 = vunpack.c.h.b16 %v854
    %v1897 = vunpack.c.l.b16 %v855
    %v1898 = vunpack.c.h.b16 %v855
    %v1899 = vunpack.c.l.b16 %v856
    %v1900 = vunpack.c.h.b16 %v856
    %v1901 = vpack.c.b16 %v1217, %v1205
    %v1902 = vpack.c.b16 %v1218, %v1206
    %v1903 = vpack.c.b16 %v1219, %v1207
    %v1904 = vpack.c.b16 %v1220, %v1208
    %v1905 = vpack.c.b16 %v1221, %v1209
    %v1906 = vpack.c.b16 %v1222, %v1210
    %v1907 = vpack.c.b16 %v1223, %v1211
    %v1908 = vpack.c.b16 %v1224, %v1212
    %v1909 = vpack.c.b16 %v1225, %v1213
    %v1910 = vpack.c.b16 %v1226, %v1214
    %v1911 = vpack.c.b16 %v1227, %v1215
    %v1912 = vpack.c.b16 %v1228, %v1216
    %v1913 = vpack.c.b16 %v1241, %v1229
    %v1914 = vpack.c.b16 %v1242, %v1230
    %v1915 = vpack.c.b16 %v1243, %v1231
    %v1916 = vpack.c.b16 %v1244, %v1232
    %v1917 = vpack.c.b16 %v1245, %v1233
    %v1918 = vpack.c.b16 %v1246, %v1234
    %v1919 = vpack.c.b16 %v1247, %v1235
    %v1920 = vpack.c.b16 %v1248, %v1236
    %v1921 = vpack.c.b16 %v1249, %v1237
    %v1922 = vpack.c.b16 %v1250, %v1238
    %v1923 = vpack.c.b16 %v1251, %v1239
    %v1924 = vpack.c.b16 %v1252, %v1240
    %v1925 = vpack.c.b16 %v1265, %v1253
    %v1926 = vpack.c.b16 %v1266, %v1254
    %v1927 = vpack.c.b16 %v1267, %v1255
    %v1928 = vpack.c.b16 %v1268, %v1256
    %v1929 = vpack.c.b16 %v1269, %v1257
    %v1930 = vpack.c.b16 %v1270, %v1258
    %v1931 = vpack.c.b16 %v1271, %v1259
    %v1932 = vpack.c.b16 %v1272, %v1260
    %v1933 = vpack.c.b16 %v1273, %v1261
    %v1934 = vpack.c.b16 %v1274, %v1262
    %v1935 = vpack.c.b16 %v1275, %v1263
    %v1936 = vpack.c.b16 %v1276, %v1264
    %v1937 = vpack.c.b16 %v1289, %v1277
    %v1938 = vpack.c.b16 %v1290, %v1278
    %v1939 = vpack.c.b16 %v1291, %v1279
    %v1940 = vpack.c.b16 %v1292, %v1280
    %v1941 = vpack.c.b16 %v1293, %v1281
    %v1942 = vpack.c.b16 %v1294, %v1282
    %v1943 = vpack.c.b16 %v1295, %v1283
    %v1944 = vpack.c.b16 %v1296, %v1284
    %v1945 = vpack.c.b16 %v1297, %v1285
    %v1946 = vpack.c.b16 %v1298, %v1286
    %v1947 = vpack.c.b16 %v1299, %v1287
    %v1948 = vpack.c.b16 %v1300, %v1288
    %v1949 = vpack.c.b16 %v1313, %v1301
    %v1950 = vpack.c.b16 %v1314, %v1302
    %v1951 = vpack.c.b16 %v1315, %v1303
    %v1952 = vpack.c.b16 %v1316, %v1304
    %v1953 = vpack.c.b16 %v1317, %v1305
    %v1954 = vpack.c.b16 %v1318, %v1306
    %v1955 = vpack.c.b16 %v1319, %v1307
    %v1956 = vpack.c.b16 %v1320, %v1308
    %v1957 = vpack.c.b16 %v1321, %v1309
    %v1958 = vpack.c.b16 %v1322, %v1310
    %v1959 = vpack.c.b16 %v1323, %v1311
    %v1960 = vpack.c.b16 %v1324, %v1312
    %v1961 = vpack.c.b16 %v1337, %v1325
    %v1962 = vpack.c.b16 %v1338, %v1326
    %v1963 = vpack.c.b16 %v1339, %v1327
    %v1964 = vpack.c.b16 %v1340, %v1328
    %v1965 = vpack.c.b16 %v1341, %v1329
    %v1966 = vpack.c.b16 %v1342, %v1330
    %v1967 = vpack.c.b16 %v1343, %v1331
    %v1968 = vpack.c.b16 %v1344, %v1332
    %v1969 = vpack.c.b16 %v1345, %v1333
    %v1970 = vpack.c.b16 %v1346, %v1334
    %v1971 = vpack.c.b16 %v1347, %v1335
    %v1972 = vpack.c.b16 %v1348, %v1336
    %v1973 = vpack.c.b16 %v1361, %v1349
    %v1974 = vpack.c.b16 %v1362, %v1350
    %v1975 = vpack.c.b16 %v1363, %v1351
    %v1976 = vpack.c.b16 %v1364, %v1352
    %v1977 = vpack.c.b16 %v1365, %v1353
    %v1978 = vpack.c.b16 %v1366, %v1354
    %v1979 = vpack.c.b16 %v1367, %v1355
    %v1980 = vpack.c.b16 %v1368, %v1356
    %v1981 = vpack.c.b16 %v1369, %v1357
    %v1982 = vpack.c.b16 %v1370, %v1358
    %v1983 = vpack.c.b16 %v1371, %v1359
    %v1984 = vpack.c.b16 %v1372, %v1360
    %v1985 = vpack.c.b16 %v1385, %v1373
    %v1986 = vpack.c.b16 %v1386, %v1374
    %v1987 = vpack.c.b16 %v1387, %v1375
    %v1988 = vpack.c.b16 %v1388, %v1376
    %v1989 = vpack.c.b16 %v1389, %v1377
    %v1990 = vpack.c.b16 %v1390, %v1378
    %v1991 = vpack.c.b16 %v1391, %v1379
    %v1992 = vpack.c.b16 %v1392, %v1380
    %v1993 = vpack.c.b16 %v1393, %v1381
    %v1994 = vpack.c.b16 %v1394, %v1382
    %v1995 = vpack.c.b16 %v1395, %v1383
    %v1996 = vpack.c.b16 %v1396, %v1384
    %v1997 = vpack.c.b16 %v1409, %v1397
    %v1998 = vpack.c.b16 %v1410, %v1398
    %v1999 = vpack.c.b16 %v1411, %v1399
    %v2000 = vpack.c.b16 %v1412, %v1400
    %v2001 = vpack.c.b16 %v1413, %v1401
    %v2002 = vpack.c.b16 %v1414, %v1402
    %v2003 = vpack.c.b16 %v1415, %v1403
    %v2004 = vpack.c.b16 %v1416, %v1404
    %v2005 = vpack.c.b16 %v1417, %v1405
    %v2006 = vpack.c.b16 %v1418, %v1406
    %v2007 = vpack.c.b16 %v1419, %v1407
    %v2008 = vpack.c.b16 %v1420, %v1408
    %v2009 = vpack.c.b16 %v1433, %v1421
    %v2010 = vpack.c.b16 %v1434, %v1422
    %v2011 = vpack.c.b16 %v1435, %v1423
    %v2012 = vpack.c.b16 %v1436, %v1424
    %v2013 = vpack.c.b16 %v1437, %v1425
    %v2014 = vpack.c.b16 %v1438, %v1426
    %v2015 = vpack.c.b16 %v1439, %v1427
    %v2016 = vpack.c.b16 %v1440, %v1428
    %v2017 = vpack.c.b16 %v1441, %v1429
    %v2018 = vpack.c.b16 %v1442, %v1430
    %v2019 = vpack.c.b16 %v1443, %v1431
    %v2020 = vpack.c.b16 %v1444, %v1432
    %v2021 = vpack.c.b16 %v1457, %v1445
    %v2022 = vpack.c.b16 %v1458, %v1446
    %v2023 = vpack.c.b16 %v1459, %v1447
    %v2024 = vpack.c.b16 %v1460, %v1448
    %v2025 = vpack.c.b16 %v1461, %v1449
    %v2026 = vpack.c.b16 %v1462, %v1450
    %v2027 = vpack.c.b16 %v1463, %v1451
    %v2028 = vpack.c.b16 %v1464, %v1452
    %v2029 = vpack.c.b16 %v1465, %v1453
    %v2030 = vpack.c.b16 %v1466, %v1454
    %v2031 = vpack.c.b16 %v1467, %v1455
    %v2032 = vpack.c.b16 %v1468, %v1456
    %v2033 = vpack.c.b16 %v1481, %v1469
    %v2034 = vpack.c.b16 %v1482, %v1470
    %v2035 = vpack.c.b16 %v1483, %v1471
    %v2036 = vpack.c.b16 %v1484, %v1472
    %v2037 = vpack.c.b16 %v1485, %v1473
    %v2038 = vpack.c.b16 %v1486, %v1474
    %v2039 = vpack.c.b16 %v1487, %v1475
    %v2040 = vpack.c.b16 %v1488, %v1476
    %v2041 = vpack.c.b16 %v1489, %v1477
    %v2042 = vpack.c.b16 %v1490, %v1478
    %v2043 = vpack.c.b16 %v1491, %v1479
    %v2044 = vpack.c.b16 %v1492, %v1480
    %v2045 = vpack.c.b16 %v1505, %v1493
    %v2046 = vpack.c.b16 %v1506, %v1494
    %v2047 = vpack.c.b16 %v1507, %v1495
    %v2048 = vpack.c.b16 %v1508, %v1496
    %v2049 = vpack.c.b16 %v1509, %v1497
    %v2050 = vpack.c.b16 %v1510, %v1498
    %v2051 = vpack.c.b16 %v1511, %v1499
    %v2052 = vpack.c.b16 %v1512, %v1500
    %v2053 = vpack.c.b16 %v1513, %v1501
    %v2054 = vpack.c.b16 %v1514, %v1502
    %v2055 = vpack.c.b16 %v1515, %v1503
    %v2056 = vpack.c.b16 %v1516, %v1504
    %v2057 = vpack.c.b16 %v1529, %v1517
    %v2058 = vpack.c.b16 %v1530, %v1518
    %v2059 = vpack.c.b16 %v1531, %v1519
    %v2060 = vpack.c.b16 %v1532, %v1520
    %v2061 = vpack.c.b16 %v1533, %v1521
    %v2062 = vpack.c.b16 %v1534, %v1522
    %v2063 = vpack.c.b16 %v1535, %v1523
    %v2064 = vpack.c.b16 %v1536, %v1524
    %v2065 = vpack.c.b16 %v1537, %v1525
    %v2066 = vpack.c.b16 %v1538, %v1526
    %v2067 = vpack.c.b16 %v1539, %v1527
    %v2068 = vpack.c.b16 %v1540, %v1528
    %v2069 = vpack.c.b16 %v1553, %v1541
    %v2070 = vpack.c.b16 %v1554, %v1542
    %v2071 = vpack.c.b16 %v1555, %v1543
    %v2072 = vpack.c.b16 %v1556, %v1544
    %v2073 = vpack.c.b16 %v1557, %v1545
    %v2074 = vpack.c.b16 %v1558, %v1546
    %v2075 = vpack.c.b16 %v1559, %v1547
    %v2076 = vpack.c.b16 %v1560, %v1548
    %v2077 = vpack.c.b16 %v1561, %v1549
    %v2078 = vpack.c.b16 %v1562, %v1550
    %v2079 = vpack.c.b16 %v1563, %v1551
    %v2080 = vpack.c.b16 %v1564, %v1552
    %v2081 = vpack.c.b16 %v1577, %v1565
    %v2082 = vpack.c.b16 %v1578, %v1566
    %v2083 = vpack.c.b16 %v1579, %v1567
    %v2084 = vpack.c.b16 %v1580, %v1568
    %v2085 = vpack.c.b16 %v1581, %v1569
    %v2086 = vpack.c.b16 %v1582, %v1570
    %v2087 = vpack.c.b16 %v1583, %v1571
    %v2088 = vpack.c.b16 %v1584, %v1572
    %v2089 = vpack.c.b16 %v1585, %v1573
    %v2090 = vpack.c.b16 %v1586, %v1574
    %v2091 = vpack.c.b16 %v1587, %v1575
    %v2092 = vpack.c.b16 %v1588, %v1576
    %v2093 = vpack.c.b16 %v1601, %v1589
    %v2094 = vpack.c.b16 %v1602, %v1590
    %v2095 = vpack.c.b16 %v1603, %v1591
    %v2096 = vpack.c.b16 %v1604, %v1592
    %v2097 = vpack.c.b16 %v1605, %v1593
    %v2098 = vpack.c.b16 %v1606, %v1594
    %v2099 = vpack.c.b16 %v1607, %v1595
    %v2100 = vpack.c.b16 %v1608, %v1596
    %v2101 = vpack.c.b16 %v1609, %v1597
    %v2102 = vpack.c.b16 %v1610, %v1598
    %v2103 = vpack.c.b16 %v1611, %v1599
    %v2104 = vpack.c.b16 %v1612, %v1600
    %v2105 = vpack.c.b16 %v1625, %v1613
    %v2106 = vpack.c.b16 %v1626, %v1614
    %v2107 = vpack.c.b16 %v1627, %v1615
    %v2108 = vpack.c.b16 %v1628, %v1616
    %v2109 = vpack.c.b16 %v1629, %v1617
    %v2110 = vpack.c.b16 %v1630, %v1618
    %v2111 = vpack.c.b16 %v1631, %v1619
    %v2112 = vpack.c.b16 %v1632, %v1620
    %v2113 = vpack.c.b16 %v1633, %v1621
    %v2114 = vpack.c.b16 %v1634, %v1622
    %v2115 = vpack.c.b16 %v1635, %v1623
    %v2116 = vpack.c.b16 %v1636, %v1624
    %v2117 = vpack.c.b16 %v1649, %v1637
    %v2118 = vpack.c.b16 %v1650, %v1638
    %v2119 = vpack.c.b16 %v1651, %v1639
    %v2120 = vpack.c.b16 %v1652, %v1640
    %v2121 = vpack.c.b16 %v1653, %v1641
    %v2122 = vpack.c.b16 %v1654, %v1642
    %v2123 = vpack.c.b16 %v1655, %v1643
    %v2124 = vpack.c.b16 %v1656, %v1644
    %v2125 = vpack.c.b16 %v1657, %v1645
    %v2126 = vpack.c.b16 %v1658, %v1646
    %v2127 = vpack.c.b16 %v1659, %v1647
    %v2128 = vpack.c.b16 %v1660, %v1648
    %v2129 = vpack.c.b16 %v1673, %v1661
    %v2130 = vpack.c.b16 %v1674, %v1662
    %v2131 = vpack.c.b16 %v1675, %v1663
    %v2132 = vpack.c.b16 %v1676, %v1664
    %v2133 = vpack.c.b16 %v1677, %v1665
    %v2134 = vpack.c.b16 %v1678, %v1666
    %v2135 = vpack.c.b16 %v1679, %v1667
    %v2136 = vpack.c.b16 %v1680, %v1668
    %v2137 = vpack.c.b16 %v1681, %v1669
    %v2138 = vpack.c.b16 %v1682, %v1670
    %v2139 = vpack.c.b16 %v1683, %v1671
    %v2140 = vpack.c.b16 %v1684, %v1672
    %v2141 = vpack.c.b16 %v1697, %v1685
    %v2142 = vpack.c.b16 %v1698, %v1686
    %v2143 = vpack.c.b16 %v1699, %v1687
    %v2144 = vpack.c.b16 %v1700, %v1688
    %v2145 = vpack.c.b16 %v1701, %v1689
    %v2146 = vpack.c.b16 %v1702, %v1690
    %v2147 = vpack.c.b16 %v1703, %v1691
    %v2148 = vpack.c.b16 %v1704, %v1692
    %v2149 = vpack.c.b16 %v1705, %v1693
    %v2150 = vpack.c.b16 %v1706, %v1694
    %v2151 = vpack.c.b16 %v1707, %v1695
    %v2152 = vpack.c.b16 %v1708, %v1696
    %v2153 = vpack.c.b16 %v1721, %v1709
    %v2154 = vpack.c.b16 %v1722, %v1710
    %v2155 = vpack.c.b16 %v1723, %v1711
    %v2156 = vpack.c.b16 %v1724, %v1712
    %v2157 = vpack.c.b16 %v1725, %v1713
    %v2158 = vpack.c.b16 %v1726, %v1714
    %v2159 = vpack.c.b16 %v1727, %v1715
    %v2160 = vpack.c.b16 %v1728, %v1716
    %v2161 = vpack.c.b16 %v1729, %v1717
    %v2162 = vpack.c.b16 %v1730, %v1718
    %v2163 = vpack.c.b16 %v1731, %v1719
    %v2164 = vpack.c.b16 %v1732, %v1720
    %v2165 = vpack.c.b16 %v1745, %v1733
    %v2166 = vpack.c.b16 %v1746, %v1734
    %v2167 = vpack.c.b16 %v1747, %v1735
    %v2168 = vpack.c.b16 %v1748, %v1736
    %v2169 = vpack.c.b16 %v1749, %v1737
    %v2170 = vpack.c.b16 %v1750, %v1738
    %v2171 = vpack.c.b16 %v1751, %v1739
    %v2172 = vpack.c.b16 %v1752, %v1740
    %v2173 = vpack.c.b16 %v1753, %v1741
    %v2174 = vpack.c.b16 %v1754, %v1742
    %v2175 = vpack.c.b16 %v1755, %v1743
    %v2176 = vpack.c.b16 %v1756, %v1744
    %v2177 = vpack.c.b16 %v1769, %v1757
    %v2178 = vpack.c.b16 %v1770, %v1758
    %v2179 = vpack.c.b16 %v1771, %v1759
    %v2180 = vpack.c.b16 %v1772, %v1760
    %v2181 = vpack.c.b16 %v1773, %v1761
    %v2182 = vpack.c.b16 %v1774, %v1762
    %v2183 = vpack.c.b16 %v1775, %v1763
    %v2184 = vpack.c.b16 %v1776, %v1764
    %v2185 = vpack.c.b16 %v1777, %v1765
    %v2186 = vpack.c.b16 %v1778, %v1766
    %v2187 = vpack.c.b16 %v1779, %v1767
    %v2188 = vpack.c.b16 %v1780, %v1768
    %v2189 = vpack.c.b16 %v1793, %v1781
    %v2190 = vpack.c.b16 %v1794, %v1782
    %v2191 = vpack.c.b16 %v1795, %v1783
    %v2192 = vpack.c.b16 %v1796, %v1784
    %v2193 = vpack.c.b16 %v1797, %v1785
    %v2194 = vpack.c.b16 %v1798, %v1786
    %v2195 = vpack.c.b16 %v1799, %v1787
    %v2196 = vpack.c.b16 %v1800, %v1788
    %v2197 = vpack.c.b16 %v1801, %v1789
    %v2198 = vpack.c.b16 %v1802, %v1790
    %v2199 = vpack.c.b16 %v1803, %v1791
    %v2200 = vpack.c.b16 %v1804, %v1792
    %v2201 = vpack.c.b16 %v1817, %v1805
    %v2202 = vpack.c.b16 %v1818, %v1806
    %v2203 = vpack.c.b16 %v1819, %v1807
    %v2204 = vpack.c.b16 %v1820, %v1808
    %v2205 = vpack.c.b16 %v1821, %v1809
    %v2206 = vpack.c.b16 %v1822, %v1810
    %v2207 = vpack.c.b16 %v1823, %v1811
    %v2208 = vpack.c.b16 %v1824, %v1812
    %v2209 = vpack.c.b16 %v1825, %v1813
    %v2210 = vpack.c.b16 %v1826, %v1814
    %v2211 = vpack.c.b16 %v1827, %v1815
    %v2212 = vpack.c.b16 %v1828, %v1816
    %v2213 = vpack.c.b16 %v1841, %v1829
    %v2214 = vpack.c.b16 %v1842, %v1830
    %v2215 = vpack.c.b16 %v1843, %v1831
    %v2216 = vpack.c.b16 %v1844, %v1832
    %v2217 = vpack.c.b16 %v1845, %v1833
    %v2218 = vpack.c.b16 %v1846, %v1834
    %v2219 = vpack.c.b16 %v1847, %v1835
    %v2220 = vpack.c.b16 %v1848, %v1836
    %v2221 = vpack.c.b16 %v1849, %v1837
    %v2222 = vpack.c.b16 %v1850, %v1838
    %v2223 = vpack.c.b16 %v1851, %v1839
    %v2224 = vpack.c.b16 %v1852, %v1840
    %v2225 = vpack.c.b16 %v1865, %v1853
    %v2226 = vpack.c.b16 %v1866, %v1854
    %v2227 = vpack.c.b16 %v1867, %v1855
    %v2228 = vpack.c.b16 %v1868, %v1856
    %v2229 = vpack.c.b16 %v1869, %v1857
    %v2230 = vpack.c.b16 %v1870, %v1858
    %v2231 = vpack.c.b16 %v1871, %v1859
    %v2232 = vpack.c.b16 %v1872, %v1860
    %v2233 = vpack.c.b16 %v1873, %v1861
    %v2234 = vpack.c.b16 %v1874, %v1862
    %v2235 = vpack.c.b16 %v1875, %v1863
    %v2236 = vpack.c.b16 %v1876, %v1864
    %v2237 = vpack.c.b16 %v1889, %v1877
    %v2238 = vpack.c.b16 %v1890, %v1878
    %v2239 = vpack.c.b16 %v1891, %v1879
    %v2240 = vpack.c.b16 %v1892, %v1880
    %v2241 = vpack.c.b16 %v1893, %v1881
    %v2242 = vpack.c.b16 %v1894, %v1882
    %v2243 = vpack.c.b16 %v1895, %v1883
    %v2244 = vpack.c.b16 %v1896, %v1884
    %v2245 = vpack.c.b16 %v1897, %v1885
    %v2246 = vpack.c.b16 %v1898, %v1886
    %v2247 = vpack.c.b16 %v1899, %v1887
    %v2248 = vpack.c.b16 %v1900, %v1888
    %vm2585 = vcmask 613376
    %v2587 = vsel %vm2585, %v508, 0
    %vm2589 = vcmask 1044480
    %vm2590 = vcmask 1045504
    %v2591 = vsel %vm2589, 4294967295, 65535
    %v2592 = vsel %vm2590, %v2591, 0
    %v2594 = vand.u32 %v2237, %v2592
    %v2597 = vand.u32 %v2238, %v2592
    %v2600 = vand.u32 %v2239, %v2592
    %v2603 = vand.u32 %v2240, %v2592
    %v2606 = vand.u32 %v2241, %v2592
    %v2609 = vand.u32 %v2242, %v2592
    %v2612 = vand.u32 %v2243, %v2592
    %v2615 = vand.u32 %v2244, %v2592
    %v2618 = vand.u32 %v2245, %v2592
    %v2621 = vand.u32 %v2246, %v2592
    %v2624 = vand.u32 %v2247, %v2592
    %v2627 = vand.u32 %v2248, %v2592
    %2629 = vmatprep.subr.bf16.mxu0 %v1986
    %2630 = vmatpush1.bf16.msra.mxu0 %v1985
    %2631 = vmatprep.subr.bf16.mxu0 %v1974
    %2632 = vmatpush1.bf16.msra.mxu0 %v1973
    %2633 = vmatprep.subr.bf16.mxu0 %v1962
    %2634 = vmatpush1.bf16.msra.mxu0 %v1961
    %2635 = vmatprep.subr.bf16.mxu0 %v1950
    %2636 = vmatpush1.bf16.msra.mxu0 %v1949
    %2637 = vmatprep.subr.bf16.mxu0 %v1938
    %2638 = vmatpush1.bf16.msra.mxu0 %v1937
    %2639 = vmatprep.subr.bf16.mxu0 %v1926
    %2640 = vmatpush1.bf16.msra.mxu0 %v1925
    %2641 = vmatprep.subr.bf16.mxu0 %v1914
    %2642 = vmatpush1.bf16.msra.mxu0 %v1913
    %2643 = vmatprep.subr.bf16.mxu0 %v1902
    %2644 = vmatpush1.bf16.msra.mxu0 %v1901
    %2645 = vmatprep.subr.bf16.mxu0 %v2082
    %2646 = vmatpush2.bf16.msra.mxu0 %v2081
    %2647 = vmatprep.subr.bf16.mxu0 %v2070
    %2648 = vmatpush2.bf16.msra.mxu0 %v2069
    %2649 = vmatprep.subr.bf16.mxu0 %v2058
    %2650 = vmatpush2.bf16.msra.mxu0 %v2057
    %2651 = vmatprep.subr.bf16.mxu0 %v2046
    %2652 = vmatpush2.bf16.msra.mxu0 %v2045
    %2653 = vmatprep.subr.bf16.mxu0 %v2034
    %2654 = vmatpush2.bf16.msra.mxu0 %v2033
    %2655 = vmatprep.subr.bf16.mxu0 %v2022
    %2656 = vmatpush2.bf16.msra.mxu0 %v2021
    %2657 = vmatprep.subr.bf16.mxu0 %v2010
    %2658 = vmatpush2.bf16.msra.mxu0 %v2009
    %2659 = vmatprep.subr.bf16.mxu0 %v1998
    %2660 = vmatpush2.bf16.msra.mxu0 %v1997
    %2661 = vmatprep.mubr.bf16.mxu0 %v506
    %2662 = vmatmul.mubr.bf16.gmra.mxu0 %v505
    %v2663 = vpop.f32.mrf.mxu0
    %v2664 = vadd.f32 0.0, %v2663
    %v2665 = vpop.f32.mrf.mxu0
    %v2666 = vadd.f32 0.0, %v2665
    %v2667 = vpop.f32.mrf.mxu0
    %v2668 = vpop.f32.mrf.mxu0
    %2669 = vdwg.mxu0
    %2670 = vmatprep.subr.bf16.mxu0 %v2178
    %2671 = vmatpush1.bf16.msra.mxu0 %v2177
    %2672 = vmatprep.subr.bf16.mxu0 %v2166
    %2673 = vmatpush1.bf16.msra.mxu0 %v2165
    %2674 = vmatprep.subr.bf16.mxu0 %v2154
    %2675 = vmatpush1.bf16.msra.mxu0 %v2153
    %2676 = vmatprep.subr.bf16.mxu0 %v2142
    %2677 = vmatpush1.bf16.msra.mxu0 %v2141
    %2678 = vmatprep.subr.bf16.mxu0 %v2130
    %2679 = vmatpush1.bf16.msra.mxu0 %v2129
    %2680 = vmatprep.subr.bf16.mxu0 %v2118
    %2681 = vmatpush1.bf16.msra.mxu0 %v2117
    %2682 = vmatprep.subr.bf16.mxu0 %v2106
    %2683 = vmatpush1.bf16.msra.mxu0 %v2105
    %2684 = vmatprep.subr.bf16.mxu0 %v2094
    %2685 = vmatpush1.bf16.msra.mxu0 %v2093
    %2686 = vmatprep.subr.bf16.mxu0 0
    %2687 = vmatpush2.bf16.msra.mxu0 0
    %2688 = vmatprep.subr.bf16.mxu0 0
    %2689 = vmatpush2.bf16.msra.mxu0 0
    %2690 = vmatprep.subr.bf16.mxu0 0
    %2691 = vmatpush2.bf16.msra.mxu0 0
    %2692 = vmatprep.subr.bf16.mxu0 %v2597
    %2693 = vmatpush2.bf16.msra.mxu0 %v2594
    %2694 = vmatprep.subr.bf16.mxu0 %v2226
    %2695 = vmatpush2.bf16.msra.mxu0 %v2225
    %2696 = vmatprep.subr.bf16.mxu0 %v2214
    %2697 = vmatpush2.bf16.msra.mxu0 %v2213
    %2698 = vmatprep.subr.bf16.mxu0 %v2202
    %2699 = vmatpush2.bf16.msra.mxu0 %v2201
    %2700 = vmatprep.subr.bf16.mxu0 %v2190
    %2701 = vmatpush2.bf16.msra.mxu0 %v2189
    %2702 = vmatprep.mubr.bf16.mxu0 %v2587
    %2703 = vmatmul.mubr.bf16.gmra.mxu0 %v507
    %v2704 = vpop.f32.mrf.mxu0
    %v2705 = vadd.f32 %v2664, %v2704
    %v2706 = vpop.f32.mrf.mxu0
    %v2707 = vadd.f32 %v2666, %v2706
    %v2708 = vpop.f32.mrf.mxu0
    %v2709 = vpop.f32.mrf.mxu0
    %2710 = vdwg.mxu0
    %2711 = vmatprep.subr.bf16.mxu0 %v1988
    %2712 = vmatpush1.bf16.msra.mxu0 %v1987
    %2713 = vmatprep.subr.bf16.mxu0 %v1976
    %2714 = vmatpush1.bf16.msra.mxu0 %v1975
    %2715 = vmatprep.subr.bf16.mxu0 %v1964
    %2716 = vmatpush1.bf16.msra.mxu0 %v1963
    %2717 = vmatprep.subr.bf16.mxu0 %v1952
    %2718 = vmatpush1.bf16.msra.mxu0 %v1951
    %2719 = vmatprep.subr.bf16.mxu0 %v1940
    %2720 = vmatpush1.bf16.msra.mxu0 %v1939
    %2721 = vmatprep.subr.bf16.mxu0 %v1928
    %2722 = vmatpush1.bf16.msra.mxu0 %v1927
    %2723 = vmatprep.subr.bf16.mxu0 %v1916
    %2724 = vmatpush1.bf16.msra.mxu0 %v1915
    %2725 = vmatprep.subr.bf16.mxu0 %v1904
    %2726 = vmatpush1.bf16.msra.mxu0 %v1903
    %2727 = vmatprep.subr.bf16.mxu0 %v2084
    %2728 = vmatpush2.bf16.msra.mxu0 %v2083
    %2729 = vmatprep.subr.bf16.mxu0 %v2072
    %2730 = vmatpush2.bf16.msra.mxu0 %v2071
    %2731 = vmatprep.subr.bf16.mxu0 %v2060
    %2732 = vmatpush2.bf16.msra.mxu0 %v2059
    %2733 = vmatprep.subr.bf16.mxu0 %v2048
    %2734 = vmatpush2.bf16.msra.mxu0 %v2047
    %2735 = vmatprep.subr.bf16.mxu0 %v2036
    %2736 = vmatpush2.bf16.msra.mxu0 %v2035
    %2737 = vmatprep.subr.bf16.mxu0 %v2024
    %2738 = vmatpush2.bf16.msra.mxu0 %v2023
    %2739 = vmatprep.subr.bf16.mxu0 %v2012
    %2740 = vmatpush2.bf16.msra.mxu0 %v2011
    %2741 = vmatprep.subr.bf16.mxu0 %v2000
    %2742 = vmatpush2.bf16.msra.mxu0 %v1999
    %2743 = vmatprep.mubr.bf16.mxu0 %v506
    %2744 = vmatmul.mubr.bf16.gmra.mxu0 %v505
    %v2745 = vpop.f32.mrf.mxu0
    %v2746 = vadd.f32 0.0, %v2745
    %v2747 = vpop.f32.mrf.mxu0
    %v2748 = vadd.f32 0.0, %v2747
    %v2749 = vpop.f32.mrf.mxu0
    %v2750 = vpop.f32.mrf.mxu0
    %2751 = vdwg.mxu0
    %2752 = vmatprep.subr.bf16.mxu0 %v2180
    %2753 = vmatpush1.bf16.msra.mxu0 %v2179
    %2754 = vmatprep.subr.bf16.mxu0 %v2168
    %2755 = vmatpush1.bf16.msra.mxu0 %v2167
    %2756 = vmatprep.subr.bf16.mxu0 %v2156
    %2757 = vmatpush1.bf16.msra.mxu0 %v2155
    %2758 = vmatprep.subr.bf16.mxu0 %v2144
    %2759 = vmatpush1.bf16.msra.mxu0 %v2143
    %2760 = vmatprep.subr.bf16.mxu0 %v2132
    %2761 = vmatpush1.bf16.msra.mxu0 %v2131
    %2762 = vmatprep.subr.bf16.mxu0 %v2120
    %2763 = vmatpush1.bf16.msra.mxu0 %v2119
    %2764 = vmatprep.subr.bf16.mxu0 %v2108
    %2765 = vmatpush1.bf16.msra.mxu0 %v2107
    %2766 = vmatprep.subr.bf16.mxu0 %v2096
    %2767 = vmatpush1.bf16.msra.mxu0 %v2095
    %2768 = vmatprep.subr.bf16.mxu0 0
    %2769 = vmatpush2.bf16.msra.mxu0 0
    %2770 = vmatprep.subr.bf16.mxu0 0
    %2771 = vmatpush2.bf16.msra.mxu0 0
    %2772 = vmatprep.subr.bf16.mxu0 0
    %2773 = vmatpush2.bf16.msra.mxu0 0
    %2774 = vmatprep.subr.bf16.mxu0 %v2603
    %2775 = vmatpush2.bf16.msra.mxu0 %v2600
    %2776 = vmatprep.subr.bf16.mxu0 %v2228
    %2777 = vmatpush2.bf16.msra.mxu0 %v2227
    %2778 = vmatprep.subr.bf16.mxu0 %v2216
    %2779 = vmatpush2.bf16.msra.mxu0 %v2215
    %2780 = vmatprep.subr.bf16.mxu0 %v2204
    %2781 = vmatpush2.bf16.msra.mxu0 %v2203
    %2782 = vmatprep.subr.bf16.mxu0 %v2192
    %2783 = vmatpush2.bf16.msra.mxu0 %v2191
    %2784 = vmatprep.mubr.bf16.mxu0 %v2587
    %2785 = vmatmul.mubr.bf16.gmra.mxu0 %v507
    %v2786 = vpop.f32.mrf.mxu0
    %v2787 = vadd.f32 %v2746, %v2786
    %v2788 = vpop.f32.mrf.mxu0
    %v2789 = vadd.f32 %v2748, %v2788
    %v2790 = vpop.f32.mrf.mxu0
    %v2791 = vpop.f32.mrf.mxu0
    %2792 = vdwg.mxu0
    %2793 = vmatprep.subr.bf16.mxu0 %v1990
    %2794 = vmatpush1.bf16.msra.mxu0 %v1989
    %2795 = vmatprep.subr.bf16.mxu0 %v1978
    %2796 = vmatpush1.bf16.msra.mxu0 %v1977
    %2797 = vmatprep.subr.bf16.mxu0 %v1966
    %2798 = vmatpush1.bf16.msra.mxu0 %v1965
    %2799 = vmatprep.subr.bf16.mxu0 %v1954
    %2800 = vmatpush1.bf16.msra.mxu0 %v1953
    %2801 = vmatprep.subr.bf16.mxu0 %v1942
    %2802 = vmatpush1.bf16.msra.mxu0 %v1941
    %2803 = vmatprep.subr.bf16.mxu0 %v1930
    %2804 = vmatpush1.bf16.msra.mxu0 %v1929
    %2805 = vmatprep.subr.bf16.mxu0 %v1918
    %2806 = vmatpush1.bf16.msra.mxu0 %v1917
    %2807 = vmatprep.subr.bf16.mxu0 %v1906
    %2808 = vmatpush1.bf16.msra.mxu0 %v1905
    %2809 = vmatprep.subr.bf16.mxu0 %v2086
    %2810 = vmatpush2.bf16.msra.mxu0 %v2085
    %2811 = vmatprep.subr.bf16.mxu0 %v2074
    %2812 = vmatpush2.bf16.msra.mxu0 %v2073
    %2813 = vmatprep.subr.bf16.mxu0 %v2062
    %2814 = vmatpush2.bf16.msra.mxu0 %v2061
    %2815 = vmatprep.subr.bf16.mxu0 %v2050
    %2816 = vmatpush2.bf16.msra.mxu0 %v2049
    %2817 = vmatprep.subr.bf16.mxu0 %v2038
    %2818 = vmatpush2.bf16.msra.mxu0 %v2037
    %2819 = vmatprep.subr.bf16.mxu0 %v2026
    %2820 = vmatpush2.bf16.msra.mxu0 %v2025
    %2821 = vmatprep.subr.bf16.mxu0 %v2014
    %2822 = vmatpush2.bf16.msra.mxu0 %v2013
    %2823 = vmatprep.subr.bf16.mxu0 %v2002
    %2824 = vmatpush2.bf16.msra.mxu0 %v2001
    %2825 = vmatprep.mubr.bf16.mxu0 %v506
    %2826 = vmatmul.mubr.bf16.gmra.mxu0 %v505
    %v2827 = vpop.f32.mrf.mxu0
    %v2828 = vadd.f32 0.0, %v2827
    %v2829 = vpop.f32.mrf.mxu0
    %v2830 = vadd.f32 0.0, %v2829
    %v2831 = vpop.f32.mrf.mxu0
    %v2832 = vpop.f32.mrf.mxu0
    %2833 = vdwg.mxu0
    %2834 = vmatprep.subr.bf16.mxu0 %v2182
    %2835 = vmatpush1.bf16.msra.mxu0 %v2181
    %2836 = vmatprep.subr.bf16.mxu0 %v2170
    %2837 = vmatpush1.bf16.msra.mxu0 %v2169
    %2838 = vmatprep.subr.bf16.mxu0 %v2158
    %2839 = vmatpush1.bf16.msra.mxu0 %v2157
    %2840 = vmatprep.subr.bf16.mxu0 %v2146
    %2841 = vmatpush1.bf16.msra.mxu0 %v2145
    %2842 = vmatprep.subr.bf16.mxu0 %v2134
    %2843 = vmatpush1.bf16.msra.mxu0 %v2133
    %2844 = vmatprep.subr.bf16.mxu0 %v2122
    %2845 = vmatpush1.bf16.msra.mxu0 %v2121
    %2846 = vmatprep.subr.bf16.mxu0 %v2110
    %2847 = vmatpush1.bf16.msra.mxu0 %v2109
    %2848 = vmatprep.subr.bf16.mxu0 %v2098
    %2849 = vmatpush1.bf16.msra.mxu0 %v2097
    %2850 = vmatprep.subr.bf16.mxu0 0
    %2851 = vmatpush2.bf16.msra.mxu0 0
    %2852 = vmatprep.subr.bf16.mxu0 0
    %2853 = vmatpush2.bf16.msra.mxu0 0
    %2854 = vmatprep.subr.bf16.mxu0 0
    %2855 = vmatpush2.bf16.msra.mxu0 0
    %2856 = vmatprep.subr.bf16.mxu0 %v2609
    %2857 = vmatpush2.bf16.msra.mxu0 %v2606
    %2858 = vmatprep.subr.bf16.mxu0 %v2230
    %2859 = vmatpush2.bf16.msra.mxu0 %v2229
    %2860 = vmatprep.subr.bf16.mxu0 %v2218
    %2861 = vmatpush2.bf16.msra.mxu0 %v2217
    %2862 = vmatprep.subr.bf16.mxu0 %v2206
    %2863 = vmatpush2.bf16.msra.mxu0 %v2205
    %2864 = vmatprep.subr.bf16.mxu0 %v2194
    %2865 = vmatpush2.bf16.msra.mxu0 %v2193
    %2866 = vmatprep.mubr.bf16.mxu0 %v2587
    %2867 = vmatmul.mubr.bf16.gmra.mxu0 %v507
    %v2868 = vpop.f32.mrf.mxu0
    %v2869 = vadd.f32 %v2828, %v2868
    %v2870 = vpop.f32.mrf.mxu0
    %v2871 = vadd.f32 %v2830, %v2870
    %v2872 = vpop.f32.mrf.mxu0
    %v2873 = vpop.f32.mrf.mxu0
    %2874 = vdwg.mxu0
    %2875 = vmatprep.subr.bf16.mxu0 %v1992
    %2876 = vmatpush1.bf16.msra.mxu0 %v1991
    %2877 = vmatprep.subr.bf16.mxu0 %v1980
    %2878 = vmatpush1.bf16.msra.mxu0 %v1979
    %2879 = vmatprep.subr.bf16.mxu0 %v1968
    %2880 = vmatpush1.bf16.msra.mxu0 %v1967
    %2881 = vmatprep.subr.bf16.mxu0 %v1956
    %2882 = vmatpush1.bf16.msra.mxu0 %v1955
    %2883 = vmatprep.subr.bf16.mxu0 %v1944
    %2884 = vmatpush1.bf16.msra.mxu0 %v1943
    %2885 = vmatprep.subr.bf16.mxu0 %v1932
    %2886 = vmatpush1.bf16.msra.mxu0 %v1931
    %2887 = vmatprep.subr.bf16.mxu0 %v1920
    %2888 = vmatpush1.bf16.msra.mxu0 %v1919
    %2889 = vmatprep.subr.bf16.mxu0 %v1908
    %2890 = vmatpush1.bf16.msra.mxu0 %v1907
    %2891 = vmatprep.subr.bf16.mxu0 %v2088
    %2892 = vmatpush2.bf16.msra.mxu0 %v2087
    %2893 = vmatprep.subr.bf16.mxu0 %v2076
    %2894 = vmatpush2.bf16.msra.mxu0 %v2075
    %2895 = vmatprep.subr.bf16.mxu0 %v2064
    %2896 = vmatpush2.bf16.msra.mxu0 %v2063
    %2897 = vmatprep.subr.bf16.mxu0 %v2052
    %2898 = vmatpush2.bf16.msra.mxu0 %v2051
    %2899 = vmatprep.subr.bf16.mxu0 %v2040
    %2900 = vmatpush2.bf16.msra.mxu0 %v2039
    %2901 = vmatprep.subr.bf16.mxu0 %v2028
    %2902 = vmatpush2.bf16.msra.mxu0 %v2027
    %2903 = vmatprep.subr.bf16.mxu0 %v2016
    %2904 = vmatpush2.bf16.msra.mxu0 %v2015
    %2905 = vmatprep.subr.bf16.mxu0 %v2004
    %2906 = vmatpush2.bf16.msra.mxu0 %v2003
    %2907 = vmatprep.mubr.bf16.mxu0 %v506
    %2908 = vmatmul.mubr.bf16.gmra.mxu0 %v505
    %v2909 = vpop.f32.mrf.mxu0
    %v2910 = vadd.f32 0.0, %v2909
    %v2911 = vpop.f32.mrf.mxu0
    %v2912 = vadd.f32 0.0, %v2911
    %v2913 = vpop.f32.mrf.mxu0
    %v2914 = vpop.f32.mrf.mxu0
    %2915 = vdwg.mxu0
    %2916 = vmatprep.subr.bf16.mxu0 %v2184
    %2917 = vmatpush1.bf16.msra.mxu0 %v2183
    %2918 = vmatprep.subr.bf16.mxu0 %v2172
    %2919 = vmatpush1.bf16.msra.mxu0 %v2171
    %2920 = vmatprep.subr.bf16.mxu0 %v2160
    %2921 = vmatpush1.bf16.msra.mxu0 %v2159
    %2922 = vmatprep.subr.bf16.mxu0 %v2148
    %2923 = vmatpush1.bf16.msra.mxu0 %v2147
    %2924 = vmatprep.subr.bf16.mxu0 %v2136
    %2925 = vmatpush1.bf16.msra.mxu0 %v2135
    %2926 = vmatprep.subr.bf16.mxu0 %v2124
    %2927 = vmatpush1.bf16.msra.mxu0 %v2123
    %2928 = vmatprep.subr.bf16.mxu0 %v2112
    %2929 = vmatpush1.bf16.msra.mxu0 %v2111
    %2930 = vmatprep.subr.bf16.mxu0 %v2100
    %2931 = vmatpush1.bf16.msra.mxu0 %v2099
    %2932 = vmatprep.subr.bf16.mxu0 0
    %2933 = vmatpush2.bf16.msra.mxu0 0
    %2934 = vmatprep.subr.bf16.mxu0 0
    %2935 = vmatpush2.bf16.msra.mxu0 0
    %2936 = vmatprep.subr.bf16.mxu0 0
    %2937 = vmatpush2.bf16.msra.mxu0 0
    %2938 = vmatprep.subr.bf16.mxu0 %v2615
    %2939 = vmatpush2.bf16.msra.mxu0 %v2612
    %2940 = vmatprep.subr.bf16.mxu0 %v2232
    %2941 = vmatpush2.bf16.msra.mxu0 %v2231
    %2942 = vmatprep.subr.bf16.mxu0 %v2220
    %2943 = vmatpush2.bf16.msra.mxu0 %v2219
    %2944 = vmatprep.subr.bf16.mxu0 %v2208
    %2945 = vmatpush2.bf16.msra.mxu0 %v2207
    %2946 = vmatprep.subr.bf16.mxu0 %v2196
    %2947 = vmatpush2.bf16.msra.mxu0 %v2195
    %2948 = vmatprep.mubr.bf16.mxu0 %v2587
    %2949 = vmatmul.mubr.bf16.gmra.mxu0 %v507
    %v2950 = vpop.f32.mrf.mxu0
    %v2951 = vadd.f32 %v2910, %v2950
    %v2952 = vpop.f32.mrf.mxu0
    %v2953 = vadd.f32 %v2912, %v2952
    %v2954 = vpop.f32.mrf.mxu0
    %v2955 = vpop.f32.mrf.mxu0
    %2956 = vdwg.mxu0
    %2957 = vmatprep.subr.bf16.mxu0 %v1994
    %2958 = vmatpush1.bf16.msra.mxu0 %v1993
    %2959 = vmatprep.subr.bf16.mxu0 %v1982
    %2960 = vmatpush1.bf16.msra.mxu0 %v1981
    %2961 = vmatprep.subr.bf16.mxu0 %v1970
    %2962 = vmatpush1.bf16.msra.mxu0 %v1969
    %2963 = vmatprep.subr.bf16.mxu0 %v1958
    %2964 = vmatpush1.bf16.msra.mxu0 %v1957
    %2965 = vmatprep.subr.bf16.mxu0 %v1946
    %2966 = vmatpush1.bf16.msra.mxu0 %v1945
    %2967 = vmatprep.subr.bf16.mxu0 %v1934
    %2968 = vmatpush1.bf16.msra.mxu0 %v1933
    %2969 = vmatprep.subr.bf16.mxu0 %v1922
    %2970 = vmatpush1.bf16.msra.mxu0 %v1921
    %2971 = vmatprep.subr.bf16.mxu0 %v1910
    %2972 = vmatpush1.bf16.msra.mxu0 %v1909
    %2973 = vmatprep.subr.bf16.mxu0 %v2090
    %2974 = vmatpush2.bf16.msra.mxu0 %v2089
    %2975 = vmatprep.subr.bf16.mxu0 %v2078
    %2976 = vmatpush2.bf16.msra.mxu0 %v2077
    %2977 = vmatprep.subr.bf16.mxu0 %v2066
    %2978 = vmatpush2.bf16.msra.mxu0 %v2065
    %2979 = vmatprep.subr.bf16.mxu0 %v2054
    %2980 = vmatpush2.bf16.msra.mxu0 %v2053
    %2981 = vmatprep.subr.bf16.mxu0 %v2042
    %2982 = vmatpush2.bf16.msra.mxu0 %v2041
    %2983 = vmatprep.subr.bf16.mxu0 %v2030
    %2984 = vmatpush2.bf16.msra.mxu0 %v2029
    %2985 = vmatprep.subr.bf16.mxu0 %v2018
    %2986 = vmatpush2.bf16.msra.mxu0 %v2017
    %2987 = vmatprep.subr.bf16.mxu0 %v2006
    %2988 = vmatpush2.bf16.msra.mxu0 %v2005
    %2989 = vmatprep.mubr.bf16.mxu0 %v506
    %2990 = vmatmul.mubr.bf16.gmra.mxu0 %v505
    %v2991 = vpop.f32.mrf.mxu0
    %v2992 = vadd.f32 0.0, %v2991
    %v2993 = vpop.f32.mrf.mxu0
    %v2994 = vadd.f32 0.0, %v2993
    %v2995 = vpop.f32.mrf.mxu0
    %v2996 = vpop.f32.mrf.mxu0
    %2997 = vdwg.mxu0
    %2998 = vmatprep.subr.bf16.mxu0 %v2186
    %2999 = vmatpush1.bf16.msra.mxu0 %v2185
    %3000 = vmatprep.subr.bf16.mxu0 %v2174
    %3001 = vmatpush1.bf16.msra.mxu0 %v2173
    %3002 = vmatprep.subr.bf16.mxu0 %v2162
    %3003 = vmatpush1.bf16.msra.mxu0 %v2161
    %3004 = vmatprep.subr.bf16.mxu0 %v2150
    %3005 = vmatpush1.bf16.msra.mxu0 %v2149
    %3006 = vmatprep.subr.bf16.mxu0 %v2138
    %3007 = vmatpush1.bf16.msra.mxu0 %v2137
    %3008 = vmatprep.subr.bf16.mxu0 %v2126
    %3009 = vmatpush1.bf16.msra.mxu0 %v2125
    %3010 = vmatprep.subr.bf16.mxu0 %v2114
    %3011 = vmatpush1.bf16.msra.mxu0 %v2113
    %3012 = vmatprep.subr.bf16.mxu0 %v2102
    %3013 = vmatpush1.bf16.msra.mxu0 %v2101
    %3014 = vmatprep.subr.bf16.mxu0 0
    %3015 = vmatpush2.bf16.msra.mxu0 0
    %3016 = vmatprep.subr.bf16.mxu0 0
    %3017 = vmatpush2.bf16.msra.mxu0 0
    %3018 = vmatprep.subr.bf16.mxu0 0
    %3019 = vmatpush2.bf16.msra.mxu0 0
    %3020 = vmatprep.subr.bf16.mxu0 %v2621
    %3021 = vmatpush2.bf16.msra.mxu0 %v2618
    %3022 = vmatprep.subr.bf16.mxu0 %v2234
    %3023 = vmatpush2.bf16.msra.mxu0 %v2233
    %3024 = vmatprep.subr.bf16.mxu0 %v2222
    %3025 = vmatpush2.bf16.msra.mxu0 %v2221
    %3026 = vmatprep.subr.bf16.mxu0 %v2210
    %3027 = vmatpush2.bf16.msra.mxu0 %v2209
    %3028 = vmatprep.subr.bf16.mxu0 %v2198
    %3029 = vmatpush2.bf16.msra.mxu0 %v2197
    %3030 = vmatprep.mubr.bf16.mxu0 %v2587
    %3031 = vmatmul.mubr.bf16.gmra.mxu0 %v507
    %v3032 = vpop.f32.mrf.mxu0
    %v3033 = vadd.f32 %v2992, %v3032
    %v3034 = vpop.f32.mrf.mxu0
    %v3035 = vadd.f32 %v2994, %v3034
    %v3036 = vpop.f32.mrf.mxu0
    %v3037 = vpop.f32.mrf.mxu0
    %3038 = vdwg.mxu0
    %3039 = vmatprep.subr.bf16.mxu0 %v1996
    %3040 = vmatpush1.bf16.msra.mxu0 %v1995
    %3041 = vmatprep.subr.bf16.mxu0 %v1984
    %3042 = vmatpush1.bf16.msra.mxu0 %v1983
    %3043 = vmatprep.subr.bf16.mxu0 %v1972
    %3044 = vmatpush1.bf16.msra.mxu0 %v1971
    %3045 = vmatprep.subr.bf16.mxu0 %v1960
    %3046 = vmatpush1.bf16.msra.mxu0 %v1959
    %3047 = vmatprep.subr.bf16.mxu0 %v1948
    %3048 = vmatpush1.bf16.msra.mxu0 %v1947
    %3049 = vmatprep.subr.bf16.mxu0 %v1936
    %3050 = vmatpush1.bf16.msra.mxu0 %v1935
    %3051 = vmatprep.subr.bf16.mxu0 %v1924
    %3052 = vmatpush1.bf16.msra.mxu0 %v1923
    %3053 = vmatprep.subr.bf16.mxu0 %v1912
    %3054 = vmatpush1.bf16.msra.mxu0 %v1911
    %3055 = vmatprep.subr.bf16.mxu0 %v2092
    %3056 = vmatpush2.bf16.msra.mxu0 %v2091
    %3057 = vmatprep.subr.bf16.mxu0 %v2080
    %3058 = vmatpush2.bf16.msra.mxu0 %v2079
    %3059 = vmatprep.subr.bf16.mxu0 %v2068
    %3060 = vmatpush2.bf16.msra.mxu0 %v2067
    %3061 = vmatprep.subr.bf16.mxu0 %v2056
    %3062 = vmatpush2.bf16.msra.mxu0 %v2055
    %3063 = vmatprep.subr.bf16.mxu0 %v2044
    %3064 = vmatpush2.bf16.msra.mxu0 %v2043
    %3065 = vmatprep.subr.bf16.mxu0 %v2032
    %3066 = vmatpush2.bf16.msra.mxu0 %v2031
    %3067 = vmatprep.subr.bf16.mxu0 %v2020
    %3068 = vmatpush2.bf16.msra.mxu0 %v2019
    %3069 = vmatprep.subr.bf16.mxu0 %v2008
    %3070 = vmatpush2.bf16.msra.mxu0 %v2007
    %3071 = vmatprep.mubr.bf16.mxu0 %v506
    %3072 = vmatmul.mubr.bf16.gmra.mxu0 %v505
    %v3073 = vpop.f32.mrf.mxu0
    %v3074 = vadd.f32 0.0, %v3073
    %v3075 = vpop.f32.mrf.mxu0
    %v3076 = vadd.f32 0.0, %v3075
    %v3077 = vpop.f32.mrf.mxu0
    %v3078 = vpop.f32.mrf.mxu0
    %3079 = vdwg.mxu0
    %3080 = vmatprep.subr.bf16.mxu0 %v2188
    %3081 = vmatpush1.bf16.msra.mxu0 %v2187
    %3082 = vmatprep.subr.bf16.mxu0 %v2176
    %3083 = vmatpush1.bf16.msra.mxu0 %v2175
    %3084 = vmatprep.subr.bf16.mxu0 %v2164
    %3085 = vmatpush1.bf16.msra.mxu0 %v2163
    %3086 = vmatprep.subr.bf16.mxu0 %v2152
    %3087 = vmatpush1.bf16.msra.mxu0 %v2151
    %3088 = vmatprep.subr.bf16.mxu0 %v2140
    %3089 = vmatpush1.bf16.msra.mxu0 %v2139
    %3090 = vmatprep.subr.bf16.mxu0 %v2128
    %3091 = vmatpush1.bf16.msra.mxu0 %v2127
    %3092 = vmatprep.subr.bf16.mxu0 %v2116
    %3093 = vmatpush1.bf16.msra.mxu0 %v2115
    %3094 = vmatprep.subr.bf16.mxu0 %v2104
    %3095 = vmatpush1.bf16.msra.mxu0 %v2103
    %3096 = vmatprep.subr.bf16.mxu0 0
    %3097 = vmatpush2.bf16.msra.mxu0 0
    %3098 = vmatprep.subr.bf16.mxu0 0
    %3099 = vmatpush2.bf16.msra.mxu0 0
    %3100 = vmatprep.subr.bf16.mxu0 0
    %3101 = vmatpush2.bf16.msra.mxu0 0
    %3102 = vmatprep.subr.bf16.mxu0 %v2627
    %3103 = vmatpush2.bf16.msra.mxu0 %v2624
    %3104 = vmatprep.subr.bf16.mxu0 %v2236
    %3105 = vmatpush2.bf16.msra.mxu0 %v2235
    %3106 = vmatprep.subr.bf16.mxu0 %v2224
    %3107 = vmatpush2.bf16.msra.mxu0 %v2223
    %3108 = vmatprep.subr.bf16.mxu0 %v2212
    %3109 = vmatpush2.bf16.msra.mxu0 %v2211
    %3110 = vmatprep.subr.bf16.mxu0 %v2200
    %3111 = vmatpush2.bf16.msra.mxu0 %v2199
    %3112 = vmatprep.mubr.bf16.mxu0 %v2587
    %3113 = vmatmul.mubr.bf16.gmra.mxu0 %v507
    %v3114 = vpop.f32.mrf.mxu0
    %v3115 = vadd.f32 %v3074, %v3114
    %v3116 = vpop.f32.mrf.mxu0
    %v3117 = vadd.f32 %v3076, %v3116
    %v3118 = vpop.f32.mrf.mxu0
    %v3119 = vpop.f32.mrf.mxu0
    %3120 = vdwg.mxu0
    %v3121 = vld [vmem:[#allocation11] sm:$0xff]
    %v3122 = vld [vmem:[#allocation11 + $0x8] sm:$0xf]
    %v3125 = vlaneseq
    %v3126 = vshrl.u32 %v3125, 7
    %v3127 = vsub.s32 0, %v3126
    %v3128 = vrot.slane %v3121, %v3127
    %v3129 = vlaneseq
    %v3130 = vshrl.u32 %v3129, 7
    %v3131 = vsub.s32 1, %v3130
    %v3132 = vrot.slane %v3121, %v3131
    %v3133 = vlaneseq
    %v3134 = vshrl.u32 %v3133, 7
    %v3135 = vsub.s32 2, %v3134
    %v3136 = vrot.slane %v3121, %v3135
    %v3137 = vlaneseq
    %v3138 = vshrl.u32 %v3137, 7
    %v3139 = vsub.s32 3, %v3138
    %v3140 = vrot.slane %v3121, %v3139
    %v3141 = vlaneseq
    %v3142 = vshrl.u32 %v3141, 7
    %v3143 = vsub.s32 4, %v3142
    %v3144 = vrot.slane %v3121, %v3143
    %v3145 = vlaneseq
    %v3146 = vshrl.u32 %v3145, 7
    %v3147 = vsub.s32 5, %v3146
    %v3148 = vrot.slane %v3121, %v3147
    %v3149 = vlaneseq
    %v3150 = vshrl.u32 %v3149, 7
    %v3151 = vsub.s32 6, %v3150
    %v3152 = vrot.slane %v3121, %v3151
    %v3153 = vlaneseq
    %v3154 = vshrl.u32 %v3153, 7
    %v3155 = vsub.s32 7, %v3154
    %v3156 = vrot.slane %v3121, %v3155
    %v3157 = vlaneseq
    %v3158 = vshrl.u32 %v3157, 7
    %v3159 = vsub.s32 0, %v3158
    %v3160 = vrot.slane %v3122, %v3159
    %v3161 = vlaneseq
    %v3162 = vshrl.u32 %v3161, 7
    %v3163 = vsub.s32 1, %v3162
    %v3164 = vrot.slane %v3122, %v3163
    %v3165 = vlaneseq
    %v3166 = vshrl.u32 %v3165, 7
    %v3167 = vsub.s32 2, %v3166
    %v3168 = vrot.slane %v3122, %v3167
    %v3169 = vlaneseq
    %v3170 = vshrl.u32 %v3169, 7
    %v3171 = vsub.s32 3, %v3170
    %v3172 = vrot.slane %v3122, %v3171
    %v3185 = vadd.f32 %v3128, %v290
    %v3186 = vadd.f32 %v3132, %v292
    %v3187 = vadd.f32 %v3136, %v331
    %v3188 = vadd.f32 %v3140, %v333
    %v3189 = vadd.f32 %v3144, %v372
    %v3190 = vadd.f32 %v3148, %v374
    %v3191 = vadd.f32 %v3152, %v413
    %v3192 = vadd.f32 %v3156, %v415
    %v3193 = vadd.f32 %v3160, %v454
    %v3194 = vadd.f32 %v3164, %v456
    %v3195 = vadd.f32 %v3168, %v495
    %v3196 = vadd.f32 %v3172, %v497
    %v3197 = vadd.f32 %v3185, %v2705
    %v3198 = vadd.f32 %v3186, %v2707
    %v3199 = vadd.f32 %v3187, %v2787
    %v3200 = vadd.f32 %v3188, %v2789
    %v3201 = vadd.f32 %v3189, %v2869
    %v3202 = vadd.f32 %v3190, %v2871
    %v3203 = vadd.f32 %v3191, %v2951
    %v3204 = vadd.f32 %v3192, %v2953
    %v3205 = vadd.f32 %v3193, %v3033
    %v3206 = vadd.f32 %v3194, %v3035
    %v3207 = vadd.f32 %v3195, %v3115
    %v3208 = vadd.f32 %v3196, %v3117
    %3209 = vst [vmem:[#allocation13] sm:$0xff] %v3197
    %3210 = vst [vmem:[#allocation13 + $0x8] sm:$0xff] %v3198
    %3211 = vst [vmem:[#allocation13 + $0x10] sm:$0xff] %v3199
    %3212 = vst [vmem:[#allocation13 + $0x18] sm:$0xff] %v3200
    %3213 = vst [vmem:[#allocation13 + $0x20] sm:$0xff] %v3201
    %3214 = vst [vmem:[#allocation13 + $0x28] sm:$0xff] %v3202
    %3215 = vst [vmem:[#allocation13 + $0x30] sm:$0xff] %v3203
    %3216 = vst [vmem:[#allocation13 + $0x38] sm:$0xff] %v3204
    %3217 = vst [vmem:[#allocation13 + $0x40] sm:$0xff] %v3205
    %3218 = vst [vmem:[#allocation13 + $0x48] sm:$0xff] %v3206
    %3219 = vst [vmem:[#allocation13 + $0x50] sm:$0xff] %v3207
    %3220 = vst [vmem:[#allocation13 + $0x58] sm:$0xff] %v3208
    %v3221 = vpack.c.bf16 %v3185, %v3185
    %v3222 = vpack.c.bf16 %v3186, %v3186
    %v3223 = vpack.c.bf16 %v3187, %v3187
    %v3224 = vpack.c.bf16 %v3188, %v3188
    %v3225 = vpack.c.bf16 %v3189, %v3189
    %v3226 = vpack.c.bf16 %v3190, %v3190
    %v3227 = vpack.c.bf16 %v3191, %v3191
    %v3228 = vpack.c.bf16 %v3192, %v3192
    %v3229 = vpack.c.bf16 %v3193, %v3193
    %v3230 = vpack.c.bf16 %v3194, %v3194
    %v3231 = vpack.c.bf16 %v3195, %v3195
    %v3232 = vpack.c.bf16 %v3196, %v3196
    %v3233 = vld [vmem:[#allocation10] sm:$0xff]
    %v3234 = vld [vmem:[#allocation10 + $0x8] sm:$0xff]
    %v3235 = vld [vmem:[#allocation10 + $0x10] sm:$0xff]
    %v3236 = vld [vmem:[#allocation10 + $0x18] sm:$0xff]
    %v3237 = vld [vmem:[#allocation10 + $0x20] sm:$0xff]
    %v3238 = vld [vmem:[#allocation10 + $0x28] sm:$0xff]
    %v3239 = vld [vmem:[#allocation10 + $0x30] sm:$0xff]
    %v3240 = vld [vmem:[#allocation10 + $0x38] sm:$0xff]
    %v3241 = vld [vmem:[#allocation10 + $0x40] sm:$0xff]
    %v3242 = vld [vmem:[#allocation10 + $0x48] sm:$0xff]
    %v3243 = vld [vmem:[#allocation10 + $0x50] sm:$0xff]
    %v3244 = vld [vmem:[#allocation10 + $0x58] sm:$0xff]
    %v3245 = vld [vmem:[#allocation10 + $0x60] sm:$0xff]
    %v3246 = vld [vmem:[#allocation10 + $0x68] sm:$0xff]
    %v3247 = vld [vmem:[#allocation10 + $0x70] sm:$0xff]
    %v3248 = vld [vmem:[#allocation10 + $0x78] sm:$0xff]
    %v3249 = vld [vmem:[#allocation10 + $0x80] sm:$0xff]
    %v3250 = vld [vmem:[#allocation10 + $0x88] sm:$0xff]
    %v3251 = vld [vmem:[#allocation10 + $0x90] sm:$0xff]
    %v3252 = vld [vmem:[#allocation10 + $0x98] sm:$0xff]
    %v3253 = vld [vmem:[#allocation10 + $0xa0] sm:$0xff]
    %v3254 = vld [vmem:[#allocation10 + $0xa8] sm:$0xff]
    %v3255 = vld [vmem:[#allocation10 + $0xb0] sm:$0xff]
    %v3256 = vld [vmem:[#allocation10 + $0xb8] sm:$0xff]
    %v3257 = vld [vmem:[#allocation10 + $0xc0] sm:$0xff]
    %v3258 = vld [vmem:[#allocation10 + $0xc8] sm:$0xff]
    %v3259 = vld [vmem:[#allocation10 + $0xd0] sm:$0xff]
    %v3260 = vld [vmem:[#allocation10 + $0xd8] sm:$0xff]
    %v3261 = vld [vmem:[#allocation10 + $0xe0] sm:$0xff]
    %v3262 = vld [vmem:[#allocation10 + $0xe8] sm:$0xff]
    %v3263 = vld [vmem:[#allocation10 + $0xf0] sm:$0xff]
    %v3264 = vld [vmem:[#allocation10 + $0xf8] sm:$0xff]
    %v3265 = vld [vmem:[#allocation10 + $0x100] sm:$0xff]
    %v3266 = vld [vmem:[#allocation10 + $0x108] sm:$0xff]
    %v3267 = vld [vmem:[#allocation10 + $0x110] sm:$0xff]
    %v3268 = vld [vmem:[#allocation10 + $0x118] sm:$0xff]
    %v3269 = vld [vmem:[#allocation10 + $0x120] sm:$0xff]
    %v3270 = vld [vmem:[#allocation10 + $0x128] sm:$0xff]
    %v3271 = vld [vmem:[#allocation10 + $0x130] sm:$0xff]
    %v3272 = vld [vmem:[#allocation10 + $0x138] sm:$0xff]
    %v3273 = vld [vmem:[#allocation10 + $0x140] sm:$0xff]
    %v3274 = vld [vmem:[#allocation10 + $0x148] sm:$0xff]
    %v3275 = vld [vmem:[#allocation10 + $0x150] sm:$0xff]
    %v3276 = vld [vmem:[#allocation10 + $0x158] sm:$0xff]
    %v3277 = vld [vmem:[#allocation10 + $0x160] sm:$0xff]
    %v3278 = vld [vmem:[#allocation10 + $0x168] sm:$0xff]
    %v3279 = vld [vmem:[#allocation10 + $0x170] sm:$0xff]
    %v3280 = vld [vmem:[#allocation10 + $0x178] sm:$0xff]
    %v3281 = vld [vmem:[#allocation10 + $0x180] sm:$0xff]
    %v3282 = vld [vmem:[#allocation10 + $0x188] sm:$0xff]
    %v3283 = vld [vmem:[#allocation10 + $0x190] sm:$0xff]
    %v3284 = vld [vmem:[#allocation10 + $0x198] sm:$0xff]
    %v3285 = vld [vmem:[#allocation10 + $0x1a0] sm:$0xff]
    %v3286 = vld [vmem:[#allocation10 + $0x1a8] sm:$0xff]
    %v3287 = vld [vmem:[#allocation10 + $0x1b0] sm:$0xff]
    %v3288 = vld [vmem:[#allocation10 + $0x1b8] sm:$0xff]
    %v3289 = vld [vmem:[#allocation10 + $0x1c0] sm:$0xff]
    %v3290 = vld [vmem:[#allocation10 + $0x1c8] sm:$0xff]
    %v3291 = vld [vmem:[#allocation10 + $0x1d0] sm:$0xff]
    %v3292 = vld [vmem:[#allocation10 + $0x1d8] sm:$0xff]
    %v3293 = vld [vmem:[#allocation10 + $0x1e0] sm:$0xff]
    %v3294 = vld [vmem:[#allocation10 + $0x1e8] sm:$0xff]
    %v3295 = vld [vmem:[#allocation10 + $0x1f0] sm:$0xff]
    %v3296 = vld [vmem:[#allocation10 + $0x1f8] sm:$0xff]
    %v3297 = vld [vmem:[#allocation10 + $0x200] sm:$0xff]
    %v3298 = vld [vmem:[#allocation10 + $0x208] sm:$0xff]
    %v3299 = vld [vmem:[#allocation10 + $0x210] sm:$0xff]
    %v3300 = vld [vmem:[#allocation10 + $0x218] sm:$0xff]
    %v3301 = vld [vmem:[#allocation10 + $0x220] sm:$0xff]
    %v3302 = vld [vmem:[#allocation10 + $0x228] sm:$0xff]
    %v3303 = vld [vmem:[#allocation10 + $0x230] sm:$0xff]
    %v3304 = vld [vmem:[#allocation10 + $0x238] sm:$0xff]
    %v3305 = vld [vmem:[#allocation10 + $0x240] sm:$0xff]
    %v3306 = vld [vmem:[#allocation10 + $0x248] sm:$0xff]
    %v3307 = vld [vmem:[#allocation10 + $0x250] sm:$0xff]
    %v3308 = vld [vmem:[#allocation10 + $0x258] sm:$0xff]
    %v3309 = vld [vmem:[#allocation10 + $0x260] sm:$0xff]
    %v3310 = vld [vmem:[#allocation10 + $0x268] sm:$0xff]
    %v3311 = vld [vmem:[#allocation10 + $0x270] sm:$0xff]
    %v3312 = vld [vmem:[#allocation10 + $0x278] sm:$0xff]
    %v3313 = vld [vmem:[#allocation10 + $0x280] sm:$0xff]
    %v3314 = vld [vmem:[#allocation10 + $0x288] sm:$0xff]
    %v3315 = vld [vmem:[#allocation10 + $0x290] sm:$0xff]
    %v3316 = vld [vmem:[#allocation10 + $0x298] sm:$0xff]
    %v3317 = vld [vmem:[#allocation10 + $0x2a0] sm:$0xff]
    %v3318 = vld [vmem:[#allocation10 + $0x2a8] sm:$0xff]
    %v3319 = vld [vmem:[#allocation10 + $0x2b0] sm:$0xff]
    %v3320 = vld [vmem:[#allocation10 + $0x2b8] sm:$0xff]
    %v3321 = vld [vmem:[#allocation10 + $0x2c0] sm:$0xff]
    %v3322 = vld [vmem:[#allocation10 + $0x2c8] sm:$0xff]
    %v3323 = vld [vmem:[#allocation10 + $0x2d0] sm:$0xff]
    %v3324 = vld [vmem:[#allocation10 + $0x2d8] sm:$0xff]
    %v3325 = vld [vmem:[#allocation10 + $0x2e0] sm:$0xff]
    %v3326 = vld [vmem:[#allocation10 + $0x2e8] sm:$0xff]
    %v3327 = vld [vmem:[#allocation10 + $0x2f0] sm:$0xff]
    %v3328 = vld [vmem:[#allocation10 + $0x2f8] sm:$0xff]
    %v3329 = vld [vmem:[#allocation10 + $0x300] sm:$0xff]
    %v3330 = vld [vmem:[#allocation10 + $0x308] sm:$0xff]
    %v3331 = vld [vmem:[#allocation10 + $0x310] sm:$0xff]
    %v3332 = vld [vmem:[#allocation10 + $0x318] sm:$0xff]
    %v3333 = vld [vmem:[#allocation10 + $0x320] sm:$0xff]
    %v3334 = vld [vmem:[#allocation10 + $0x328] sm:$0xff]
    %v3335 = vld [vmem:[#allocation10 + $0x330] sm:$0xff]
    %v3336 = vld [vmem:[#allocation10 + $0x338] sm:$0xff]
    %v3337 = vld [vmem:[#allocation10 + $0x340] sm:$0xff]
    %v3338 = vld [vmem:[#allocation10 + $0x348] sm:$0xff]
    %v3339 = vld [vmem:[#allocation10 + $0x350] sm:$0xff]
    %v3340 = vld [vmem:[#allocation10 + $0x358] sm:$0xff]
    %v3341 = vld [vmem:[#allocation10 + $0x360] sm:$0xff]
    %v3342 = vld [vmem:[#allocation10 + $0x368] sm:$0xff]
    %v3343 = vld [vmem:[#allocation10 + $0x370] sm:$0xff]
    %v3344 = vld [vmem:[#allocation10 + $0x378] sm:$0xff]
    %v3345 = vld [vmem:[#allocation10 + $0x380] sm:$0xff]
    %v3346 = vld [vmem:[#allocation10 + $0x388] sm:$0xff]
    %v3347 = vld [vmem:[#allocation10 + $0x390] sm:$0xff]
    %v3348 = vld [vmem:[#allocation10 + $0x398] sm:$0xff]
    %v3349 = vld [vmem:[#allocation10 + $0x3a0] sm:$0xff]
    %v3350 = vld [vmem:[#allocation10 + $0x3a8] sm:$0xff]
    %v3351 = vld [vmem:[#allocation10 + $0x3b0] sm:$0xff]
    %v3352 = vld [vmem:[#allocation10 + $0x3b8] sm:$0xff]
    %v3353 = vld [vmem:[#allocation10 + $0x3c0] sm:$0xff]
    %v3354 = vld [vmem:[#allocation10 + $0x3c8] sm:$0xff]
    %v3355 = vld [vmem:[#allocation10 + $0x3d0] sm:$0xff]
    %v3356 = vld [vmem:[#allocation10 + $0x3d8] sm:$0xff]
    %v3357 = vld [vmem:[#allocation10 + $0x3e0] sm:$0xff]
    %v3358 = vld [vmem:[#allocation10 + $0x3e8] sm:$0xff]
    %v3359 = vld [vmem:[#allocation10 + $0x3f0] sm:$0xff]
    %v3360 = vld [vmem:[#allocation10 + $0x3f8] sm:$0xff]
    %v3361 = vld [vmem:[#allocation10 + $0x400] sm:$0xff]
    %v3362 = vld [vmem:[#allocation10 + $0x408] sm:$0xff]
    %v3363 = vld [vmem:[#allocation10 + $0x410] sm:$0xff]
    %v3364 = vld [vmem:[#allocation10 + $0x418] sm:$0xff]
    %v3365 = vld [vmem:[#allocation10 + $0x420] sm:$0xff]
    %v3366 = vld [vmem:[#allocation10 + $0x428] sm:$0xff]
    %v3367 = vld [vmem:[#allocation10 + $0x430] sm:$0xff]
    %v3368 = vld [vmem:[#allocation10 + $0x438] sm:$0xff]
    %v3369 = vld [vmem:[#allocation10 + $0x440] sm:$0xff]
    %v3370 = vld [vmem:[#allocation10 + $0x448] sm:$0xff]
    %v3371 = vld [vmem:[#allocation10 + $0x450] sm:$0xff]
    %v3372 = vld [vmem:[#allocation10 + $0x458] sm:$0xff]
    %v3373 = vld [vmem:[#allocation10 + $0x460] sm:$0xff]
    %v3374 = vld [vmem:[#allocation10 + $0x468] sm:$0xff]
    %v3375 = vld [vmem:[#allocation10 + $0x470] sm:$0xff]
    %v3376 = vld [vmem:[#allocation10 + $0x478] sm:$0xff]
    %v3377 = vld [vmem:[#allocation10 + $0x480] sm:$0xff]
    %v3378 = vld [vmem:[#allocation10 + $0x488] sm:$0xff]
    %v3379 = vld [vmem:[#allocation10 + $0x490] sm:$0xff]
    %v3380 = vld [vmem:[#allocation10 + $0x498] sm:$0xff]
    %v3381 = vld [vmem:[#allocation10 + $0x4a0] sm:$0xff]
    %v3382 = vld [vmem:[#allocation10 + $0x4a8] sm:$0xff]
    %v3383 = vld [vmem:[#allocation10 + $0x4b0] sm:$0xff]
    %v3384 = vld [vmem:[#allocation10 + $0x4b8] sm:$0xff]
    %v3385 = vld [vmem:[#allocation10 + $0x4c0] sm:$0xff]
    %v3386 = vld [vmem:[#allocation10 + $0x4c8] sm:$0xff]
    %v3387 = vld [vmem:[#allocation10 + $0x4d0] sm:$0xff]
    %v3388 = vld [vmem:[#allocation10 + $0x4d8] sm:$0xff]
    %v3389 = vld [vmem:[#allocation10 + $0x4e0] sm:$0xff]
    %v3390 = vld [vmem:[#allocation10 + $0x4e8] sm:$0xff]
    %v3391 = vld [vmem:[#allocation10 + $0x4f0] sm:$0xff]
    %v3392 = vld [vmem:[#allocation10 + $0x4f8] sm:$0xff]
    %v3393 = vld [vmem:[#allocation10 + $0x500] sm:$0xff]
    %v3394 = vld [vmem:[#allocation10 + $0x508] sm:$0xff]
    %v3395 = vld [vmem:[#allocation10 + $0x510] sm:$0xff]
    %v3396 = vld [vmem:[#allocation10 + $0x518] sm:$0xff]
    %v3397 = vld [vmem:[#allocation10 + $0x520] sm:$0xff]
    %v3398 = vld [vmem:[#allocation10 + $0x528] sm:$0xff]
    %v3399 = vld [vmem:[#allocation10 + $0x530] sm:$0xff]
    %v3400 = vld [vmem:[#allocation10 + $0x538] sm:$0xff]
    %v3401 = vld [vmem:[#allocation10 + $0x540] sm:$0xff]
    %v3402 = vld [vmem:[#allocation10 + $0x548] sm:$0xff]
    %v3403 = vld [vmem:[#allocation10 + $0x550] sm:$0xff]
    %v3404 = vld [vmem:[#allocation10 + $0x558] sm:$0xff]
    %v3405 = vld [vmem:[#allocation10 + $0x560] sm:$0xff]
    %v3406 = vld [vmem:[#allocation10 + $0x568] sm:$0xff]
    %v3407 = vld [vmem:[#allocation10 + $0x570] sm:$0xff]
    %v3408 = vld [vmem:[#allocation10 + $0x578] sm:$0xff]
    %v3409 = vld [vmem:[#allocation10 + $0x580] sm:$0xff]
    %v3410 = vld [vmem:[#allocation10 + $0x588] sm:$0xff]
    %v3411 = vld [vmem:[#allocation10 + $0x590] sm:$0xff]
    %v3412 = vld [vmem:[#allocation10 + $0x598] sm:$0xff]
    %v3413 = vld [vmem:[#allocation10 + $0x5a0] sm:$0xff]
    %v3414 = vld [vmem:[#allocation10 + $0x5a8] sm:$0xff]
    %v3415 = vld [vmem:[#allocation10 + $0x5b0] sm:$0xff]
    %v3416 = vld [vmem:[#allocation10 + $0x5b8] sm:$0xff]
    %v3417 = vld [vmem:[#allocation10 + $0x5c0] sm:$0xff]
    %v3418 = vld [vmem:[#allocation10 + $0x5c8] sm:$0xff]
    %v3419 = vld [vmem:[#allocation10 + $0x5d0] sm:$0xff]
    %v3420 = vld [vmem:[#allocation10 + $0x5d8] sm:$0xff]
    %v3421 = vld [vmem:[#allocation10 + $0x5e0] sm:$0xff]
    %v3422 = vld [vmem:[#allocation10 + $0x5e8] sm:$0xff]
    %v3423 = vld [vmem:[#allocation10 + $0x5f0] sm:$0xff]
    %v3424 = vld [vmem:[#allocation10 + $0x5f8] sm:$0xff]
    %v3617 = vunpack.c.l.b16 %v3233
    %v3618 = vunpack.c.h.b16 %v3233
    %v3619 = vunpack.c.l.b16 %v3234
    %v3620 = vunpack.c.h.b16 %v3234
    %v3621 = vunpack.c.l.b16 %v3235
    %v3622 = vunpack.c.h.b16 %v3235
    %v3623 = vunpack.c.l.b16 %v3236
    %v3624 = vunpack.c.h.b16 %v3236
    %v3625 = vunpack.c.l.b16 %v3237
    %v3626 = vunpack.c.h.b16 %v3237
    %v3627 = vunpack.c.l.b16 %v3238
    %v3628 = vunpack.c.h.b16 %v3238
    %v3629 = vunpack.c.l.b16 %v3239
    %v3630 = vunpack.c.h.b16 %v3239
    %v3631 = vunpack.c.l.b16 %v3240
    %v3632 = vunpack.c.h.b16 %v3240
    %v3633 = vunpack.c.l.b16 %v3241
    %v3634 = vunpack.c.h.b16 %v3241
    %v3635 = vunpack.c.l.b16 %v3242
    %v3636 = vunpack.c.h.b16 %v3242
    %v3637 = vunpack.c.l.b16 %v3243
    %v3638 = vunpack.c.h.b16 %v3243
    %v3639 = vunpack.c.l.b16 %v3244
    %v3640 = vunpack.c.h.b16 %v3244
    %v3641 = vunpack.c.l.b16 %v3245
    %v3642 = vunpack.c.h.b16 %v3245
    %v3643 = vunpack.c.l.b16 %v3246
    %v3644 = vunpack.c.h.b16 %v3246
    %v3645 = vunpack.c.l.b16 %v3247
    %v3646 = vunpack.c.h.b16 %v3247
    %v3647 = vunpack.c.l.b16 %v3248
    %v3648 = vunpack.c.h.b16 %v3248
    %v3649 = vunpack.c.l.b16 %v3249
    %v3650 = vunpack.c.h.b16 %v3249
    %v3651 = vunpack.c.l.b16 %v3250
    %v3652 = vunpack.c.h.b16 %v3250
    %v3653 = vunpack.c.l.b16 %v3251
    %v3654 = vunpack.c.h.b16 %v3251
    %v3655 = vunpack.c.l.b16 %v3252
    %v3656 = vunpack.c.h.b16 %v3252
    %v3657 = vunpack.c.l.b16 %v3253
    %v3658 = vunpack.c.h.b16 %v3253
    %v3659 = vunpack.c.l.b16 %v3254
    %v3660 = vunpack.c.h.b16 %v3254
    %v3661 = vunpack.c.l.b16 %v3255
    %v3662 = vunpack.c.h.b16 %v3255
    %v3663 = vunpack.c.l.b16 %v3256
    %v3664 = vunpack.c.h.b16 %v3256
    %v3665 = vunpack.c.l.b16 %v3257
    %v3666 = vunpack.c.h.b16 %v3257
    %v3667 = vunpack.c.l.b16 %v3258
    %v3668 = vunpack.c.h.b16 %v3258
    %v3669 = vunpack.c.l.b16 %v3259
    %v3670 = vunpack.c.h.b16 %v3259
    %v3671 = vunpack.c.l.b16 %v3260
    %v3672 = vunpack.c.h.b16 %v3260
    %v3673 = vunpack.c.l.b16 %v3261
    %v3674 = vunpack.c.h.b16 %v3261
    %v3675 = vunpack.c.l.b16 %v3262
    %v3676 = vunpack.c.h.b16 %v3262
    %v3677 = vunpack.c.l.b16 %v3263
    %v3678 = vunpack.c.h.b16 %v3263
    %v3679 = vunpack.c.l.b16 %v3264
    %v3680 = vunpack.c.h.b16 %v3264
    %v3681 = vunpack.c.l.b16 %v3265
    %v3682 = vunpack.c.h.b16 %v3265
    %v3683 = vunpack.c.l.b16 %v3266
    %v3684 = vunpack.c.h.b16 %v3266
    %v3685 = vunpack.c.l.b16 %v3267
    %v3686 = vunpack.c.h.b16 %v3267
    %v3687 = vunpack.c.l.b16 %v3268
    %v3688 = vunpack.c.h.b16 %v3268
    %v3689 = vunpack.c.l.b16 %v3269
    %v3690 = vunpack.c.h.b16 %v3269
    %v3691 = vunpack.c.l.b16 %v3270
    %v3692 = vunpack.c.h.b16 %v3270
    %v3693 = vunpack.c.l.b16 %v3271
    %v3694 = vunpack.c.h.b16 %v3271
    %v3695 = vunpack.c.l.b16 %v3272
    %v3696 = vunpack.c.h.b16 %v3272
    %v3697 = vunpack.c.l.b16 %v3273
    %v3698 = vunpack.c.h.b16 %v3273
    %v3699 = vunpack.c.l.b16 %v3274
    %v3700 = vunpack.c.h.b16 %v3274
    %v3701 = vunpack.c.l.b16 %v3275
    %v3702 = vunpack.c.h.b16 %v3275
    %v3703 = vunpack.c.l.b16 %v3276
    %v3704 = vunpack.c.h.b16 %v3276
    %v3705 = vunpack.c.l.b16 %v3277
    %v3706 = vunpack.c.h.b16 %v3277
    %v3707 = vunpack.c.l.b16 %v3278
    %v3708 = vunpack.c.h.b16 %v3278
    %v3709 = vunpack.c.l.b16 %v3279
    %v3710 = vunpack.c.h.b16 %v3279
    %v3711 = vunpack.c.l.b16 %v3280
    %v3712 = vunpack.c.h.b16 %v3280
    %v3713 = vunpack.c.l.b16 %v3281
    %v3714 = vunpack.c.h.b16 %v3281
    %v3715 = vunpack.c.l.b16 %v3282
    %v3716 = vunpack.c.h.b16 %v3282
    %v3717 = vunpack.c.l.b16 %v3283
    %v3718 = vunpack.c.h.b16 %v3283
    %v3719 = vunpack.c.l.b16 %v3284
    %v3720 = vunpack.c.h.b16 %v3284
    %v3721 = vunpack.c.l.b16 %v3285
    %v3722 = vunpack.c.h.b16 %v3285
    %v3723 = vunpack.c.l.b16 %v3286
    %v3724 = vunpack.c.h.b16 %v3286
    %v3725 = vunpack.c.l.b16 %v3287
    %v3726 = vunpack.c.h.b16 %v3287
    %v3727 = vunpack.c.l.b16 %v3288
    %v3728 = vunpack.c.h.b16 %v3288
    %v3729 = vunpack.c.l.b16 %v3289
    %v3730 = vunpack.c.h.b16 %v3289
    %v3731 = vunpack.c.l.b16 %v3290
    %v3732 = vunpack.c.h.b16 %v3290
    %v3733 = vunpack.c.l.b16 %v3291
    %v3734 = vunpack.c.h.b16 %v3291
    %v3735 = vunpack.c.l.b16 %v3292
    %v3736 = vunpack.c.h.b16 %v3292
    %v3737 = vunpack.c.l.b16 %v3293
    %v3738 = vunpack.c.h.b16 %v3293
    %v3739 = vunpack.c.l.b16 %v3294
    %v3740 = vunpack.c.h.b16 %v3294
    %v3741 = vunpack.c.l.b16 %v3295
    %v3742 = vunpack.c.h.b16 %v3295
    %v3743 = vunpack.c.l.b16 %v3296
    %v3744 = vunpack.c.h.b16 %v3296
    %v3745 = vunpack.c.l.b16 %v3297
    %v3746 = vunpack.c.h.b16 %v3297
    %v3747 = vunpack.c.l.b16 %v3298
    %v3748 = vunpack.c.h.b16 %v3298
    %v3749 = vunpack.c.l.b16 %v3299
    %v3750 = vunpack.c.h.b16 %v3299
    %v3751 = vunpack.c.l.b16 %v3300
    %v3752 = vunpack.c.h.b16 %v3300
    %v3753 = vunpack.c.l.b16 %v3301
    %v3754 = vunpack.c.h.b16 %v3301
    %v3755 = vunpack.c.l.b16 %v3302
    %v3756 = vunpack.c.h.b16 %v3302
    %v3757 = vunpack.c.l.b16 %v3303
    %v3758 = vunpack.c.h.b16 %v3303
    %v3759 = vunpack.c.l.b16 %v3304
    %v3760 = vunpack.c.h.b16 %v3304
    %v3761 = vunpack.c.l.b16 %v3305
    %v3762 = vunpack.c.h.b16 %v3305
    %v3763 = vunpack.c.l.b16 %v3306
    %v3764 = vunpack.c.h.b16 %v3306
    %v3765 = vunpack.c.l.b16 %v3307
    %v3766 = vunpack.c.h.b16 %v3307
    %v3767 = vunpack.c.l.b16 %v3308
    %v3768 = vunpack.c.h.b16 %v3308
    %v3769 = vunpack.c.l.b16 %v3309
    %v3770 = vunpack.c.h.b16 %v3309
    %v3771 = vunpack.c.l.b16 %v3310
    %v3772 = vunpack.c.h.b16 %v3310
    %v3773 = vunpack.c.l.b16 %v3311
    %v3774 = vunpack.c.h.b16 %v3311
    %v3775 = vunpack.c.l.b16 %v3312
    %v3776 = vunpack.c.h.b16 %v3312
    %v3777 = vunpack.c.l.b16 %v3313
    %v3778 = vunpack.c.h.b16 %v3313
    %v3779 = vunpack.c.l.b16 %v3314
    %v3780 = vunpack.c.h.b16 %v3314
    %v3781 = vunpack.c.l.b16 %v3315
    %v3782 = vunpack.c.h.b16 %v3315
    %v3783 = vunpack.c.l.b16 %v3316
    %v3784 = vunpack.c.h.b16 %v3316
    %v3785 = vunpack.c.l.b16 %v3317
    %v3786 = vunpack.c.h.b16 %v3317
    %v3787 = vunpack.c.l.b16 %v3318
    %v3788 = vunpack.c.h.b16 %v3318
    %v3789 = vunpack.c.l.b16 %v3319
    %v3790 = vunpack.c.h.b16 %v3319
    %v3791 = vunpack.c.l.b16 %v3320
    %v3792 = vunpack.c.h.b16 %v3320
    %v3793 = vunpack.c.l.b16 %v3321
    %v3794 = vunpack.c.h.b16 %v3321
    %v3795 = vunpack.c.l.b16 %v3322
    %v3796 = vunpack.c.h.b16 %v3322
    %v3797 = vunpack.c.l.b16 %v3323
    %v3798 = vunpack.c.h.b16 %v3323
    %v3799 = vunpack.c.l.b16 %v3324
    %v3800 = vunpack.c.h.b16 %v3324
    %v3801 = vunpack.c.l.b16 %v3325
    %v3802 = vunpack.c.h.b16 %v3325
    %v3803 = vunpack.c.l.b16 %v3326
    %v3804 = vunpack.c.h.b16 %v3326
    %v3805 = vunpack.c.l.b16 %v3327
    %v3806 = vunpack.c.h.b16 %v3327
    %v3807 = vunpack.c.l.b16 %v3328
    %v3808 = vunpack.c.h.b16 %v3328
    %v3809 = vunpack.c.l.b16 %v3329
    %v3810 = vunpack.c.h.b16 %v3329
    %v3811 = vunpack.c.l.b16 %v3330
    %v3812 = vunpack.c.h.b16 %v3330
    %v3813 = vunpack.c.l.b16 %v3331
    %v3814 = vunpack.c.h.b16 %v3331
    %v3815 = vunpack.c.l.b16 %v3332
    %v3816 = vunpack.c.h.b16 %v3332
    %v3817 = vunpack.c.l.b16 %v3333
    %v3818 = vunpack.c.h.b16 %v3333
    %v3819 = vunpack.c.l.b16 %v3334
    %v3820 = vunpack.c.h.b16 %v3334
    %v3821 = vunpack.c.l.b16 %v3335
    %v3822 = vunpack.c.h.b16 %v3335
    %v3823 = vunpack.c.l.b16 %v3336
    %v3824 = vunpack.c.h.b16 %v3336
    %v3825 = vunpack.c.l.b16 %v3337
    %v3826 = vunpack.c.h.b16 %v3337
    %v3827 = vunpack.c.l.b16 %v3338
    %v3828 = vunpack.c.h.b16 %v3338
    %v3829 = vunpack.c.l.b16 %v3339
    %v3830 = vunpack.c.h.b16 %v3339
    %v3831 = vunpack.c.l.b16 %v3340
    %v3832 = vunpack.c.h.b16 %v3340
    %v3833 = vunpack.c.l.b16 %v3341
    %v3834 = vunpack.c.h.b16 %v3341
    %v3835 = vunpack.c.l.b16 %v3342
    %v3836 = vunpack.c.h.b16 %v3342
    %v3837 = vunpack.c.l.b16 %v3343
    %v3838 = vunpack.c.h.b16 %v3343
    %v3839 = vunpack.c.l.b16 %v3344
    %v3840 = vunpack.c.h.b16 %v3344
    %v3841 = vunpack.c.l.b16 %v3345
    %v3842 = vunpack.c.h.b16 %v3345
    %v3843 = vunpack.c.l.b16 %v3346
    %v3844 = vunpack.c.h.b16 %v3346
    %v3845 = vunpack.c.l.b16 %v3347
    %v3846 = vunpack.c.h.b16 %v3347
    %v3847 = vunpack.c.l.b16 %v3348
    %v3848 = vunpack.c.h.b16 %v3348
    %v3849 = vunpack.c.l.b16 %v3349
    %v3850 = vunpack.c.h.b16 %v3349
    %v3851 = vunpack.c.l.b16 %v3350
    %v3852 = vunpack.c.h.b16 %v3350
    %v3853 = vunpack.c.l.b16 %v3351
    %v3854 = vunpack.c.h.b16 %v3351
    %v3855 = vunpack.c.l.b16 %v3352
    %v3856 = vunpack.c.h.b16 %v3352
    %v3857 = vunpack.c.l.b16 %v3353
    %v3858 = vunpack.c.h.b16 %v3353
    %v3859 = vunpack.c.l.b16 %v3354
    %v3860 = vunpack.c.h.b16 %v3354
    %v3861 = vunpack.c.l.b16 %v3355
    %v3862 = vunpack.c.h.b16 %v3355
    %v3863 = vunpack.c.l.b16 %v3356
    %v3864 = vunpack.c.h.b16 %v3356
    %v3865 = vunpack.c.l.b16 %v3357
    %v3866 = vunpack.c.h.b16 %v3357
    %v3867 = vunpack.c.l.b16 %v3358
    %v3868 = vunpack.c.h.b16 %v3358
    %v3869 = vunpack.c.l.b16 %v3359
    %v3870 = vunpack.c.h.b16 %v3359
    %v3871 = vunpack.c.l.b16 %v3360
    %v3872 = vunpack.c.h.b16 %v3360
    %v3873 = vunpack.c.l.b16 %v3361
    %v3874 = vunpack.c.h.b16 %v3361
    %v3875 = vunpack.c.l.b16 %v3362
    %v3876 = vunpack.c.h.b16 %v3362
    %v3877 = vunpack.c.l.b16 %v3363
    %v3878 = vunpack.c.h.b16 %v3363
    %v3879 = vunpack.c.l.b16 %v3364
    %v3880 = vunpack.c.h.b16 %v3364
    %v3881 = vunpack.c.l.b16 %v3365
    %v3882 = vunpack.c.h.b16 %v3365
    %v3883 = vunpack.c.l.b16 %v3366
    %v3884 = vunpack.c.h.b16 %v3366
    %v3885 = vunpack.c.l.b16 %v3367
    %v3886 = vunpack.c.h.b16 %v3367
    %v3887 = vunpack.c.l.b16 %v3368
    %v3888 = vunpack.c.h.b16 %v3368
    %v3889 = vunpack.c.l.b16 %v3369
    %v3890 = vunpack.c.h.b16 %v3369
    %v3891 = vunpack.c.l.b16 %v3370
    %v3892 = vunpack.c.h.b16 %v3370
    %v3893 = vunpack.c.l.b16 %v3371
    %v3894 = vunpack.c.h.b16 %v3371
    %v3895 = vunpack.c.l.b16 %v3372
    %v3896 = vunpack.c.h.b16 %v3372
    %v3897 = vunpack.c.l.b16 %v3373
    %v3898 = vunpack.c.h.b16 %v3373
    %v3899 = vunpack.c.l.b16 %v3374
    %v3900 = vunpack.c.h.b16 %v3374
    %v3901 = vunpack.c.l.b16 %v3375
    %v3902 = vunpack.c.h.b16 %v3375
    %v3903 = vunpack.c.l.b16 %v3376
    %v3904 = vunpack.c.h.b16 %v3376
    %v3905 = vunpack.c.l.b16 %v3377
    %v3906 = vunpack.c.h.b16 %v3377
    %v3907 = vunpack.c.l.b16 %v3378
    %v3908 = vunpack.c.h.b16 %v3378
    %v3909 = vunpack.c.l.b16 %v3379
    %v3910 = vunpack.c.h.b16 %v3379
    %v3911 = vunpack.c.l.b16 %v3380
    %v3912 = vunpack.c.h.b16 %v3380
    %v3913 = vunpack.c.l.b16 %v3381
    %v3914 = vunpack.c.h.b16 %v3381
    %v3915 = vunpack.c.l.b16 %v3382
    %v3916 = vunpack.c.h.b16 %v3382
    %v3917 = vunpack.c.l.b16 %v3383
    %v3918 = vunpack.c.h.b16 %v3383
    %v3919 = vunpack.c.l.b16 %v3384
    %v3920 = vunpack.c.h.b16 %v3384
    %v3921 = vunpack.c.l.b16 %v3385
    %v3922 = vunpack.c.h.b16 %v3385
    %v3923 = vunpack.c.l.b16 %v3386
    %v3924 = vunpack.c.h.b16 %v3386
    %v3925 = vunpack.c.l.b16 %v3387
    %v3926 = vunpack.c.h.b16 %v3387
    %v3927 = vunpack.c.l.b16 %v3388
    %v3928 = vunpack.c.h.b16 %v3388
    %v3929 = vunpack.c.l.b16 %v3389
    %v3930 = vunpack.c.h.b16 %v3389
    %v3931 = vunpack.c.l.b16 %v3390
    %v3932 = vunpack.c.h.b16 %v3390
    %v3933 = vunpack.c.l.b16 %v3391
    %v3934 = vunpack.c.h.b16 %v3391
    %v3935 = vunpack.c.l.b16 %v3392
    %v3936 = vunpack.c.h.b16 %v3392
    %v3937 = vunpack.c.l.b16 %v3393
    %v3938 = vunpack.c.h.b16 %v3393
    %v3939 = vunpack.c.l.b16 %v3394
    %v3940 = vunpack.c.h.b16 %v3394
    %v3941 = vunpack.c.l.b16 %v3395
    %v3942 = vunpack.c.h.b16 %v3395
    %v3943 = vunpack.c.l.b16 %v3396
    %v3944 = vunpack.c.h.b16 %v3396
    %v3945 = vunpack.c.l.b16 %v3397
    %v3946 = vunpack.c.h.b16 %v3397
    %v3947 = vunpack.c.l.b16 %v3398
    %v3948 = vunpack.c.h.b16 %v3398
    %v3949 = vunpack.c.l.b16 %v3399
    %v3950 = vunpack.c.h.b16 %v3399
    %v3951 = vunpack.c.l.b16 %v3400
    %v3952 = vunpack.c.h.b16 %v3400
    %v3953 = vunpack.c.l.b16 %v3401
    %v3954 = vunpack.c.h.b16 %v3401
    %v3955 = vunpack.c.l.b16 %v3402
    %v3956 = vunpack.c.h.b16 %v3402
    %v3957 = vunpack.c.l.b16 %v3403
    %v3958 = vunpack.c.h.b16 %v3403
    %v3959 = vunpack.c.l.b16 %v3404
    %v3960 = vunpack.c.h.b16 %v3404
    %v3961 = vunpack.c.l.b16 %v3405
    %v3962 = vunpack.c.h.b16 %v3405
    %v3963 = vunpack.c.l.b16 %v3406
    %v3964 = vunpack.c.h.b16 %v3406
    %v3965 = vunpack.c.l.b16 %v3407
    %v3966 = vunpack.c.h.b16 %v3407
    %v3967 = vunpack.c.l.b16 %v3408
    %v3968 = vunpack.c.h.b16 %v3408
    %v3969 = vunpack.c.l.b16 %v3409
    %v3970 = vunpack.c.h.b16 %v3409
    %v3971 = vunpack.c.l.b16 %v3410
    %v3972 = vunpack.c.h.b16 %v3410
    %v3973 = vunpack.c.l.b16 %v3411
    %v3974 = vunpack.c.h.b16 %v3411
    %v3975 = vunpack.c.l.b16 %v3412
    %v3976 = vunpack.c.h.b16 %v3412
    %v3977 = vunpack.c.l.b16 %v3413
    %v3978 = vunpack.c.h.b16 %v3413
    %v3979 = vunpack.c.l.b16 %v3414
    %v3980 = vunpack.c.h.b16 %v3414
    %v3981 = vunpack.c.l.b16 %v3415
    %v3982 = vunpack.c.h.b16 %v3415
    %v3983 = vunpack.c.l.b16 %v3416
    %v3984 = vunpack.c.h.b16 %v3416
    %v3985 = vunpack.c.l.b16 %v3417
    %v3986 = vunpack.c.h.b16 %v3417
    %v3987 = vunpack.c.l.b16 %v3418
    %v3988 = vunpack.c.h.b16 %v3418
    %v3989 = vunpack.c.l.b16 %v3419
    %v3990 = vunpack.c.h.b16 %v3419
    %v3991 = vunpack.c.l.b16 %v3420
    %v3992 = vunpack.c.h.b16 %v3420
    %v3993 = vunpack.c.l.b16 %v3421
    %v3994 = vunpack.c.h.b16 %v3421
    %v3995 = vunpack.c.l.b16 %v3422
    %v3996 = vunpack.c.h.b16 %v3422
    %v3997 = vunpack.c.l.b16 %v3423
    %v3998 = vunpack.c.h.b16 %v3423
    %v3999 = vunpack.c.l.b16 %v3424
    %v4000 = vunpack.c.h.b16 %v3424
    %v4001 = vpack.c.b16 %v3619, %v3617
    %v4002 = vpack.c.b16 %v3620, %v3618
    %v4003 = vpack.c.b16 %v3623, %v3621
    %v4004 = vpack.c.b16 %v3624, %v3622
    %v4005 = vpack.c.b16 %v3627, %v3625
    %v4006 = vpack.c.b16 %v3628, %v3626
    %v4007 = vpack.c.b16 %v3631, %v3629
    %v4008 = vpack.c.b16 %v3632, %v3630
    %v4009 = vpack.c.b16 %v3635, %v3633
    %v4010 = vpack.c.b16 %v3636, %v3634
    %v4011 = vpack.c.b16 %v3639, %v3637
    %v4012 = vpack.c.b16 %v3640, %v3638
    %v4013 = vpack.c.b16 %v3643, %v3641
    %v4014 = vpack.c.b16 %v3644, %v3642
    %v4015 = vpack.c.b16 %v3647, %v3645
    %v4016 = vpack.c.b16 %v3648, %v3646
    %v4017 = vpack.c.b16 %v3651, %v3649
    %v4018 = vpack.c.b16 %v3652, %v3650
    %v4019 = vpack.c.b16 %v3655, %v3653
    %v4020 = vpack.c.b16 %v3656, %v3654
    %v4021 = vpack.c.b16 %v3659, %v3657
    %v4022 = vpack.c.b16 %v3660, %v3658
    %v4023 = vpack.c.b16 %v3663, %v3661
    %v4024 = vpack.c.b16 %v3664, %v3662
    %v4025 = vpack.c.b16 %v3667, %v3665
    %v4026 = vpack.c.b16 %v3668, %v3666
    %v4027 = vpack.c.b16 %v3671, %v3669
    %v4028 = vpack.c.b16 %v3672, %v3670
    %v4029 = vpack.c.b16 %v3675, %v3673
    %v4030 = vpack.c.b16 %v3676, %v3674
    %v4031 = vpack.c.b16 %v3679, %v3677
    %v4032 = vpack.c.b16 %v3680, %v3678
    %v4033 = vpack.c.b16 %v3683, %v3681
    %v4034 = vpack.c.b16 %v3684, %v3682
    %v4035 = vpack.c.b16 %v3687, %v3685
    %v4036 = vpack.c.b16 %v3688, %v3686
    %v4037 = vpack.c.b16 %v3691, %v3689
    %v4038 = vpack.c.b16 %v3692, %v3690
    %v4039 = vpack.c.b16 %v3695, %v3693
    %v4040 = vpack.c.b16 %v3696, %v3694
    %v4041 = vpack.c.b16 %v3699, %v3697
    %v4042 = vpack.c.b16 %v3700, %v3698
    %v4043 = vpack.c.b16 %v3703, %v3701
    %v4044 = vpack.c.b16 %v3704, %v3702
    %v4045 = vpack.c.b16 %v3707, %v3705
    %v4046 = vpack.c.b16 %v3708, %v3706
    %v4047 = vpack.c.b16 %v3711, %v3709
    %v4048 = vpack.c.b16 %v3712, %v3710
    %v4049 = vpack.c.b16 %v3715, %v3713
    %v4050 = vpack.c.b16 %v3716, %v3714
    %v4051 = vpack.c.b16 %v3719, %v3717
    %v4052 = vpack.c.b16 %v3720, %v3718
    %v4053 = vpack.c.b16 %v3723, %v3721
    %v4054 = vpack.c.b16 %v3724, %v3722
    %v4055 = vpack.c.b16 %v3727, %v3725
    %v4056 = vpack.c.b16 %v3728, %v3726
    %v4057 = vpack.c.b16 %v3731, %v3729
    %v4058 = vpack.c.b16 %v3732, %v3730
    %v4059 = vpack.c.b16 %v3735, %v3733
    %v4060 = vpack.c.b16 %v3736, %v3734
    %v4061 = vpack.c.b16 %v3739, %v3737
    %v4062 = vpack.c.b16 %v3740, %v3738
    %v4063 = vpack.c.b16 %v3743, %v3741
    %v4064 = vpack.c.b16 %v3744, %v3742
    %v4065 = vpack.c.b16 %v3747, %v3745
    %v4066 = vpack.c.b16 %v3748, %v3746
    %v4067 = vpack.c.b16 %v3751, %v3749
    %v4068 = vpack.c.b16 %v3752, %v3750
    %v4069 = vpack.c.b16 %v3755, %v3753
    %v4070 = vpack.c.b16 %v3756, %v3754
    %v4071 = vpack.c.b16 %v3759, %v3757
    %v4072 = vpack.c.b16 %v3760, %v3758
    %v4073 = vpack.c.b16 %v3763, %v3761
    %v4074 = vpack.c.b16 %v3764, %v3762
    %v4075 = vpack.c.b16 %v3767, %v3765
    %v4076 = vpack.c.b16 %v3768, %v3766
    %v4077 = vpack.c.b16 %v3771, %v3769
    %v4078 = vpack.c.b16 %v3772, %v3770
    %v4079 = vpack.c.b16 %v3775, %v3773
    %v4080 = vpack.c.b16 %v3776, %v3774
    %v4081 = vpack.c.b16 %v3779, %v3777
    %v4082 = vpack.c.b16 %v3780, %v3778
    %v4083 = vpack.c.b16 %v3783, %v3781
    %v4084 = vpack.c.b16 %v3784, %v3782
    %v4085 = vpack.c.b16 %v3787, %v3785
    %v4086 = vpack.c.b16 %v3788, %v3786
    %v4087 = vpack.c.b16 %v3791, %v3789
    %v4088 = vpack.c.b16 %v3792, %v3790
    %v4089 = vpack.c.b16 %v3795, %v3793
    %v4090 = vpack.c.b16 %v3796, %v3794
    %v4091 = vpack.c.b16 %v3799, %v3797
    %v4092 = vpack.c.b16 %v3800, %v3798
    %v4093 = vpack.c.b16 %v3803, %v3801
    %v4094 = vpack.c.b16 %v3804, %v3802
    %v4095 = vpack.c.b16 %v3807, %v3805
    %v4096 = vpack.c.b16 %v3808, %v3806
    %v4097 = vpack.c.b16 %v3811, %v3809
    %v4098 = vpack.c.b16 %v3812, %v3810
    %v4099 = vpack.c.b16 %v3815, %v3813
    %v4100 = vpack.c.b16 %v3816, %v3814
    %v4101 = vpack.c.b16 %v3819, %v3817
    %v4102 = vpack.c.b16 %v3820, %v3818
    %v4103 = vpack.c.b16 %v3823, %v3821
    %v4104 = vpack.c.b16 %v3824, %v3822
    %v4105 = vpack.c.b16 %v3827, %v3825
    %v4106 = vpack.c.b16 %v3828, %v3826
    %v4107 = vpack.c.b16 %v3831, %v3829
    %v4108 = vpack.c.b16 %v3832, %v3830
    %v4109 = vpack.c.b16 %v3835, %v3833
    %v4110 = vpack.c.b16 %v3836, %v3834
    %v4111 = vpack.c.b16 %v3839, %v3837
    %v4112 = vpack.c.b16 %v3840, %v3838
    %v4113 = vpack.c.b16 %v3843, %v3841
    %v4114 = vpack.c.b16 %v3844, %v3842
    %v4115 = vpack.c.b16 %v3847, %v3845
    %v4116 = vpack.c.b16 %v3848, %v3846
    %v4117 = vpack.c.b16 %v3851, %v3849
    %v4118 = vpack.c.b16 %v3852, %v3850
    %v4119 = vpack.c.b16 %v3855, %v3853
    %v4120 = vpack.c.b16 %v3856, %v3854
    %v4121 = vpack.c.b16 %v3859, %v3857
    %v4122 = vpack.c.b16 %v3860, %v3858
    %v4123 = vpack.c.b16 %v3863, %v3861
    %v4124 = vpack.c.b16 %v3864, %v3862
    %v4125 = vpack.c.b16 %v3867, %v3865
    %v4126 = vpack.c.b16 %v3868, %v3866
    %v4127 = vpack.c.b16 %v3871, %v3869
    %v4128 = vpack.c.b16 %v3872, %v3870
    %v4129 = vpack.c.b16 %v3875, %v3873
    %v4130 = vpack.c.b16 %v3876, %v3874
    %v4131 = vpack.c.b16 %v3879, %v3877
    %v4132 = vpack.c.b16 %v3880, %v3878
    %v4133 = vpack.c.b16 %v3883, %v3881
    %v4134 = vpack.c.b16 %v3884, %v3882
    %v4135 = vpack.c.b16 %v3887, %v3885
    %v4136 = vpack.c.b16 %v3888, %v3886
    %v4137 = vpack.c.b16 %v3891, %v3889
    %v4138 = vpack.c.b16 %v3892, %v3890
    %v4139 = vpack.c.b16 %v3895, %v3893
    %v4140 = vpack.c.b16 %v3896, %v3894
    %v4141 = vpack.c.b16 %v3899, %v3897
    %v4142 = vpack.c.b16 %v3900, %v3898
    %v4143 = vpack.c.b16 %v3903, %v3901
    %v4144 = vpack.c.b16 %v3904, %v3902
    %v4145 = vpack.c.b16 %v3907, %v3905
    %v4146 = vpack.c.b16 %v3908, %v3906
    %v4147 = vpack.c.b16 %v3911, %v3909
    %v4148 = vpack.c.b16 %v3912, %v3910
    %v4149 = vpack.c.b16 %v3915, %v3913
    %v4150 = vpack.c.b16 %v3916, %v3914
    %v4151 = vpack.c.b16 %v3919, %v3917
    %v4152 = vpack.c.b16 %v3920, %v3918
    %v4153 = vpack.c.b16 %v3923, %v3921
    %v4154 = vpack.c.b16 %v3924, %v3922
    %v4155 = vpack.c.b16 %v3927, %v3925
    %v4156 = vpack.c.b16 %v3928, %v3926
    %v4157 = vpack.c.b16 %v3931, %v3929
    %v4158 = vpack.c.b16 %v3932, %v3930
    %v4159 = vpack.c.b16 %v3935, %v3933
    %v4160 = vpack.c.b16 %v3936, %v3934
    %v4161 = vpack.c.b16 %v3939, %v3937
    %v4162 = vpack.c.b16 %v3940, %v3938
    %v4163 = vpack.c.b16 %v3943, %v3941
    %v4164 = vpack.c.b16 %v3944, %v3942
    %v4165 = vpack.c.b16 %v3947, %v3945
    %v4166 = vpack.c.b16 %v3948, %v3946
    %v4167 = vpack.c.b16 %v3951, %v3949
    %v4168 = vpack.c.b16 %v3952, %v3950
    %v4169 = vpack.c.b16 %v3955, %v3953
    %v4170 = vpack.c.b16 %v3956, %v3954
    %v4171 = vpack.c.b16 %v3959, %v3957
    %v4172 = vpack.c.b16 %v3960, %v3958
    %v4173 = vpack.c.b16 %v3963, %v3961
    %v4174 = vpack.c.b16 %v3964, %v3962
    %v4175 = vpack.c.b16 %v3967, %v3965
    %v4176 = vpack.c.b16 %v3968, %v3966
    %v4177 = vpack.c.b16 %v3971, %v3969
    %v4178 = vpack.c.b16 %v3972, %v3970
    %v4179 = vpack.c.b16 %v3975, %v3973
    %v4180 = vpack.c.b16 %v3976, %v3974
    %v4181 = vpack.c.b16 %v3979, %v3977
    %v4182 = vpack.c.b16 %v3980, %v3978
    %v4183 = vpack.c.b16 %v3983, %v3981
    %v4184 = vpack.c.b16 %v3984, %v3982
    %v4185 = vpack.c.b16 %v3987, %v3985
    %v4186 = vpack.c.b16 %v3988, %v3986
    %v4187 = vpack.c.b16 %v3991, %v3989
    %v4188 = vpack.c.b16 %v3992, %v3990
    %v4189 = vpack.c.b16 %v3995, %v3993
    %v4190 = vpack.c.b16 %v3996, %v3994
    %v4191 = vpack.c.b16 %v3999, %v3997
    %v4192 = vpack.c.b16 %v4000, %v3998
    %4385 = vmatprep.subr.bf16.mxu0 %v4016
    %4386 = vmatpush1.bf16.msra.mxu0 %v4015
    %4387 = vmatprep.subr.bf16.mxu0 %v4014
    %4388 = vmatpush1.bf16.msra.mxu0 %v4013
    %4389 = vmatprep.subr.bf16.mxu0 %v4012
    %4390 = vmatpush1.bf16.msra.mxu0 %v4011
    %4391 = vmatprep.subr.bf16.mxu0 %v4010
    %4392 = vmatpush1.bf16.msra.mxu0 %v4009
    %4393 = vmatprep.subr.bf16.mxu0 %v4008
    %4394 = vmatpush1.bf16.msra.mxu0 %v4007
    %4395 = vmatprep.subr.bf16.mxu0 %v4006
    %4396 = vmatpush1.bf16.msra.mxu0 %v4005
    %4397 = vmatprep.subr.bf16.mxu0 %v4004
    %4398 = vmatpush1.bf16.msra.mxu0 %v4003
    %4399 = vmatprep.subr.bf16.mxu0 %v4002
    %4400 = vmatpush1.bf16.msra.mxu0 %v4001
    %4401 = vmatprep.subr.bf16.mxu0 %v4032
    %4402 = vmatpush2.bf16.msra.mxu0 %v4031
    %4403 = vmatprep.subr.bf16.mxu0 %v4030
    %4404 = vmatpush2.bf16.msra.mxu0 %v4029
    %4405 = vmatprep.subr.bf16.mxu0 %v4028
    %4406 = vmatpush2.bf16.msra.mxu0 %v4027
    %4407 = vmatprep.subr.bf16.mxu0 %v4026
    %4408 = vmatpush2.bf16.msra.mxu0 %v4025
    %4409 = vmatprep.subr.bf16.mxu0 %v4024
    %4410 = vmatpush2.bf16.msra.mxu0 %v4023
    %4411 = vmatprep.subr.bf16.mxu0 %v4022
    %4412 = vmatpush2.bf16.msra.mxu0 %v4021
    %4413 = vmatprep.subr.bf16.mxu0 %v4020
    %4414 = vmatpush2.bf16.msra.mxu0 %v4019
    %4415 = vmatprep.subr.bf16.mxu0 %v4018
    %4416 = vmatpush2.bf16.msra.mxu0 %v4017
    %4417 = vmatprep.mubr.bf16.mxu0 %v3222
    %4418 = vmatmul.mubr.bf16.gmra.mxu0 %v3221
    %v4419 = vpop.f32.mrf.mxu0
    %v4420 = vadd.f32 0.0, %v4419
    %v4421 = vpop.f32.mrf.mxu0
    %v4422 = vadd.f32 0.0, %v4421
    %v4423 = vpop.f32.mrf.mxu0
    %v4424 = vpop.f32.mrf.mxu0
    %4425 = vdwg.mxu0
    %4426 = vmatprep.subr.bf16.mxu0 %v4048
    %4427 = vmatpush1.bf16.msra.mxu0 %v4047
    %4428 = vmatprep.subr.bf16.mxu0 %v4046
    %4429 = vmatpush1.bf16.msra.mxu0 %v4045
    %4430 = vmatprep.subr.bf16.mxu0 %v4044
    %4431 = vmatpush1.bf16.msra.mxu0 %v4043
    %4432 = vmatprep.subr.bf16.mxu0 %v4042
    %4433 = vmatpush1.bf16.msra.mxu0 %v4041
    %4434 = vmatprep.subr.bf16.mxu0 %v4040
    %4435 = vmatpush1.bf16.msra.mxu0 %v4039
    %4436 = vmatprep.subr.bf16.mxu0 %v4038
    %4437 = vmatpush1.bf16.msra.mxu0 %v4037
    %4438 = vmatprep.subr.bf16.mxu0 %v4036
    %4439 = vmatpush1.bf16.msra.mxu0 %v4035
    %4440 = vmatprep.subr.bf16.mxu0 %v4034
    %4441 = vmatpush1.bf16.msra.mxu0 %v4033
    %4442 = vmatprep.subr.bf16.mxu0 %v4064
    %4443 = vmatpush2.bf16.msra.mxu0 %v4063
    %4444 = vmatprep.subr.bf16.mxu0 %v4062
    %4445 = vmatpush2.bf16.msra.mxu0 %v4061
    %4446 = vmatprep.subr.bf16.mxu0 %v4060
    %4447 = vmatpush2.bf16.msra.mxu0 %v4059
    %4448 = vmatprep.subr.bf16.mxu0 %v4058
    %4449 = vmatpush2.bf16.msra.mxu0 %v4057
    %4450 = vmatprep.subr.bf16.mxu0 %v4056
    %4451 = vmatpush2.bf16.msra.mxu0 %v4055
    %4452 = vmatprep.subr.bf16.mxu0 %v4054
    %4453 = vmatpush2.bf16.msra.mxu0 %v4053
    %4454 = vmatprep.subr.bf16.mxu0 %v4052
    %4455 = vmatpush2.bf16.msra.mxu0 %v4051
    %4456 = vmatprep.subr.bf16.mxu0 %v4050
    %4457 = vmatpush2.bf16.msra.mxu0 %v4049
    %4458 = vmatprep.mubr.bf16.mxu0 %v3224
    %4459 = vmatmul.mubr.bf16.gmra.mxu0 %v3223
    %v4460 = vpop.f32.mrf.mxu0
    %v4461 = vadd.f32 %v4420, %v4460
    %v4462 = vpop.f32.mrf.mxu0
    %v4463 = vadd.f32 %v4422, %v4462
    %v4464 = vpop.f32.mrf.mxu0
    %v4465 = vpop.f32.mrf.mxu0
    %4466 = vdwg.mxu0
    %4467 = vmatprep.subr.bf16.mxu0 %v4080
    %4468 = vmatpush1.bf16.msra.mxu0 %v4079
    %4469 = vmatprep.subr.bf16.mxu0 %v4078
    %4470 = vmatpush1.bf16.msra.mxu0 %v4077
    %4471 = vmatprep.subr.bf16.mxu0 %v4076
    %4472 = vmatpush1.bf16.msra.mxu0 %v4075
    %4473 = vmatprep.subr.bf16.mxu0 %v4074
    %4474 = vmatpush1.bf16.msra.mxu0 %v4073
    %4475 = vmatprep.subr.bf16.mxu0 %v4072
    %4476 = vmatpush1.bf16.msra.mxu0 %v4071
    %4477 = vmatprep.subr.bf16.mxu0 %v4070
    %4478 = vmatpush1.bf16.msra.mxu0 %v4069
    %4479 = vmatprep.subr.bf16.mxu0 %v4068
    %4480 = vmatpush1.bf16.msra.mxu0 %v4067
    %4481 = vmatprep.subr.bf16.mxu0 %v4066
    %4482 = vmatpush1.bf16.msra.mxu0 %v4065
    %4483 = vmatprep.subr.bf16.mxu0 %v4096
    %4484 = vmatpush2.bf16.msra.mxu0 %v4095
    %4485 = vmatprep.subr.bf16.mxu0 %v4094
    %4486 = vmatpush2.bf16.msra.mxu0 %v4093
    %4487 = vmatprep.subr.bf16.mxu0 %v4092
    %4488 = vmatpush2.bf16.msra.mxu0 %v4091
    %4489 = vmatprep.subr.bf16.mxu0 %v4090
    %4490 = vmatpush2.bf16.msra.mxu0 %v4089
    %4491 = vmatprep.subr.bf16.mxu0 %v4088
    %4492 = vmatpush2.bf16.msra.mxu0 %v4087
    %4493 = vmatprep.subr.bf16.mxu0 %v4086
    %4494 = vmatpush2.bf16.msra.mxu0 %v4085
    %4495 = vmatprep.subr.bf16.mxu0 %v4084
    %4496 = vmatpush2.bf16.msra.mxu0 %v4083
    %4497 = vmatprep.subr.bf16.mxu0 %v4082
    %4498 = vmatpush2.bf16.msra.mxu0 %v4081
    %4499 = vmatprep.mubr.bf16.mxu0 %v3226
    %4500 = vmatmul.mubr.bf16.gmra.mxu0 %v3225
    %v4501 = vpop.f32.mrf.mxu0
    %v4502 = vadd.f32 %v4461, %v4501
    %v4503 = vpop.f32.mrf.mxu0
    %v4504 = vadd.f32 %v4463, %v4503
    %v4505 = vpop.f32.mrf.mxu0
    %v4506 = vpop.f32.mrf.mxu0
    %4507 = vdwg.mxu0
    %4508 = vmatprep.subr.bf16.mxu0 %v4112
    %4509 = vmatpush1.bf16.msra.mxu0 %v4111
    %4510 = vmatprep.subr.bf16.mxu0 %v4110
    %4511 = vmatpush1.bf16.msra.mxu0 %v4109
    %4512 = vmatprep.subr.bf16.mxu0 %v4108
    %4513 = vmatpush1.bf16.msra.mxu0 %v4107
    %4514 = vmatprep.subr.bf16.mxu0 %v4106
    %4515 = vmatpush1.bf16.msra.mxu0 %v4105
    %4516 = vmatprep.subr.bf16.mxu0 %v4104
    %4517 = vmatpush1.bf16.msra.mxu0 %v4103
    %4518 = vmatprep.subr.bf16.mxu0 %v4102
    %4519 = vmatpush1.bf16.msra.mxu0 %v4101
    %4520 = vmatprep.subr.bf16.mxu0 %v4100
    %4521 = vmatpush1.bf16.msra.mxu0 %v4099
    %4522 = vmatprep.subr.bf16.mxu0 %v4098
    %4523 = vmatpush1.bf16.msra.mxu0 %v4097
    %4524 = vmatprep.subr.bf16.mxu0 %v4128
    %4525 = vmatpush2.bf16.msra.mxu0 %v4127
    %4526 = vmatprep.subr.bf16.mxu0 %v4126
    %4527 = vmatpush2.bf16.msra.mxu0 %v4125
    %4528 = vmatprep.subr.bf16.mxu0 %v4124
    %4529 = vmatpush2.bf16.msra.mxu0 %v4123
    %4530 = vmatprep.subr.bf16.mxu0 %v4122
    %4531 = vmatpush2.bf16.msra.mxu0 %v4121
    %4532 = vmatprep.subr.bf16.mxu0 %v4120
    %4533 = vmatpush2.bf16.msra.mxu0 %v4119
    %4534 = vmatprep.subr.bf16.mxu0 %v4118
    %4535 = vmatpush2.bf16.msra.mxu0 %v4117
    %4536 = vmatprep.subr.bf16.mxu0 %v4116
    %4537 = vmatpush2.bf16.msra.mxu0 %v4115
    %4538 = vmatprep.subr.bf16.mxu0 %v4114
    %4539 = vmatpush2.bf16.msra.mxu0 %v4113
    %4540 = vmatprep.mubr.bf16.mxu0 %v3228
    %4541 = vmatmul.mubr.bf16.gmra.mxu0 %v3227
    %v4542 = vpop.f32.mrf.mxu0
    %v4543 = vadd.f32 %v4502, %v4542
    %v4544 = vpop.f32.mrf.mxu0
    %v4545 = vadd.f32 %v4504, %v4544
    %v4546 = vpop.f32.mrf.mxu0
    %v4547 = vpop.f32.mrf.mxu0
    %4548 = vdwg.mxu0
    %4549 = vmatprep.subr.bf16.mxu0 %v4144
    %4550 = vmatpush1.bf16.msra.mxu0 %v4143
    %4551 = vmatprep.subr.bf16.mxu0 %v4142
    %4552 = vmatpush1.bf16.msra.mxu0 %v4141
    %4553 = vmatprep.subr.bf16.mxu0 %v4140
    %4554 = vmatpush1.bf16.msra.mxu0 %v4139
    %4555 = vmatprep.subr.bf16.mxu0 %v4138
    %4556 = vmatpush1.bf16.msra.mxu0 %v4137
    %4557 = vmatprep.subr.bf16.mxu0 %v4136
    %4558 = vmatpush1.bf16.msra.mxu0 %v4135
    %4559 = vmatprep.subr.bf16.mxu0 %v4134
    %4560 = vmatpush1.bf16.msra.mxu0 %v4133
    %4561 = vmatprep.subr.bf16.mxu0 %v4132
    %4562 = vmatpush1.bf16.msra.mxu0 %v4131
    %4563 = vmatprep.subr.bf16.mxu0 %v4130
    %4564 = vmatpush1.bf16.msra.mxu0 %v4129
    %4565 = vmatprep.subr.bf16.mxu0 %v4160
    %4566 = vmatpush2.bf16.msra.mxu0 %v4159
    %4567 = vmatprep.subr.bf16.mxu0 %v4158
    %4568 = vmatpush2.bf16.msra.mxu0 %v4157
    %4569 = vmatprep.subr.bf16.mxu0 %v4156
    %4570 = vmatpush2.bf16.msra.mxu0 %v4155
    %4571 = vmatprep.subr.bf16.mxu0 %v4154
    %4572 = vmatpush2.bf16.msra.mxu0 %v4153
    %4573 = vmatprep.subr.bf16.mxu0 %v4152
    %4574 = vmatpush2.bf16.msra.mxu0 %v4151
    %4575 = vmatprep.subr.bf16.mxu0 %v4150
    %4576 = vmatpush2.bf16.msra.mxu0 %v4149
    %4577 = vmatprep.subr.bf16.mxu0 %v4148
    %4578 = vmatpush2.bf16.msra.mxu0 %v4147
    %4579 = vmatprep.subr.bf16.mxu0 %v4146
    %4580 = vmatpush2.bf16.msra.mxu0 %v4145
    %4581 = vmatprep.mubr.bf16.mxu0 %v3230
    %4582 = vmatmul.mubr.bf16.gmra.mxu0 %v3229
    %v4583 = vpop.f32.mrf.mxu0
    %v4584 = vadd.f32 %v4543, %v4583
    %v4585 = vpop.f32.mrf.mxu0
    %v4586 = vadd.f32 %v4545, %v4585
    %v4587 = vpop.f32.mrf.mxu0
    %v4588 = vpop.f32.mrf.mxu0
    %4589 = vdwg.mxu0
    %4590 = vmatprep.subr.bf16.mxu0 %v4176
    %4591 = vmatpush1.bf16.msra.mxu0 %v4175
    %4592 = vmatprep.subr.bf16.mxu0 %v4174
    %4593 = vmatpush1.bf16.msra.mxu0 %v4173
    %4594 = vmatprep.subr.bf16.mxu0 %v4172
    %4595 = vmatpush1.bf16.msra.mxu0 %v4171
    %4596 = vmatprep.subr.bf16.mxu0 %v4170
    %4597 = vmatpush1.bf16.msra.mxu0 %v4169
    %4598 = vmatprep.subr.bf16.mxu0 %v4168
    %4599 = vmatpush1.bf16.msra.mxu0 %v4167
    %4600 = vmatprep.subr.bf16.mxu0 %v4166
    %4601 = vmatpush1.bf16.msra.mxu0 %v4165
    %4602 = vmatprep.subr.bf16.mxu0 %v4164
    %4603 = vmatpush1.bf16.msra.mxu0 %v4163
    %4604 = vmatprep.subr.bf16.mxu0 %v4162
    %4605 = vmatpush1.bf16.msra.mxu0 %v4161
    %4606 = vmatprep.subr.bf16.mxu0 %v4192
    %4607 = vmatpush2.bf16.msra.mxu0 %v4191
    %4608 = vmatprep.subr.bf16.mxu0 %v4190
    %4609 = vmatpush2.bf16.msra.mxu0 %v4189
    %4610 = vmatprep.subr.bf16.mxu0 %v4188
    %4611 = vmatpush2.bf16.msra.mxu0 %v4187
    %4612 = vmatprep.subr.bf16.mxu0 %v4186
    %4613 = vmatpush2.bf16.msra.mxu0 %v4185
    %4614 = vmatprep.subr.bf16.mxu0 %v4184
    %4615 = vmatpush2.bf16.msra.mxu0 %v4183
    %4616 = vmatprep.subr.bf16.mxu0 %v4182
    %4617 = vmatpush2.bf16.msra.mxu0 %v4181
    %4618 = vmatprep.subr.bf16.mxu0 %v4180
    %4619 = vmatpush2.bf16.msra.mxu0 %v4179
    %4620 = vmatprep.subr.bf16.mxu0 %v4178
    %4621 = vmatpush2.bf16.msra.mxu0 %v4177
    %4622 = vmatprep.mubr.bf16.mxu0 %v3232
    %4623 = vmatmul.mubr.bf16.gmra.mxu0 %v3231
    %v4624 = vpop.f32.mrf.mxu0
    %v4625 = vadd.f32 %v4584, %v4624
    %v4626 = vpop.f32.mrf.mxu0
    %v4627 = vadd.f32 %v4586, %v4626
    %v4628 = vpop.f32.mrf.mxu0
    %v4629 = vpop.f32.mrf.mxu0
    %4630 = vdwg.mxu0
    %4631 = vst [vmem:[#allocation14] sm:$0xff] %v4625
    %4632 = vst [vmem:[#allocation14 + $0x8] sm:$0xff] %v4627
    // Predicated region
    $region50: #{tpu_custom_call.1} parent=1 // pred_check
      _
    $region51: #{tpu_custom_call.1} parent=1 // pred_check_branch
      %4634 = sbr.rel (0) target = $region53
    $region52: #{tpu_custom_call.1} parent=1 // pred_region
      %s4636 = ssub.s32 1536, 1536
      %4637 = vsyncadd [#allocation4], %s4636
      %s4639 = sshll.u32 [#allocation13], 4
      %s4640 = int_to_ptr.vmem [resolvable:$true] %s4639
      %4642 = dma.vmem_to_hbm [thread:$0]  %s4640, 1536, %s6, [#allocation4]
    $region53: #{tpu_custom_call.1} parent=1 // pred_fallthru
      _
    // Predicated region
    $region54: #{tpu_custom_call.1} parent=1 // pred_check
      _
    $region55: #{tpu_custom_call.1} parent=1 // pred_check_branch
      %4644 = sbr.rel (0) target = $region57
    $region56: #{tpu_custom_call.1} parent=1 // pred_region
      %s4646 = ssub.s32 256, 256
      %4647 = vsyncadd [#allocation15], %s4646
      %s4649 = sshll.u32 [#allocation14], 4
      %s4650 = int_to_ptr.vmem [resolvable:$true] %s4649
      %4652 = dma.vmem_to_hbm [thread:$0]  %s4650, 256, %s7, [#allocation15]
    $region57: #{tpu_custom_call.1} parent=1 // pred_fallthru
      _
    // Predicated region
    $region58: #{tpu_custom_call.1} parent=1 // pred_check
      _
    $region59: #{tpu_custom_call.1} parent=1 // pred_check_branch
      %4654 = sbr.rel (0) target = $region61
    $region60: #{tpu_custom_call.1} parent=1 // pred_region
      %4655 = dma.done [#allocation4], 1536
    $region61: #{tpu_custom_call.1} parent=1 // pred_fallthru
      _
    // Predicated region
    $region62: #{tpu_custom_call.1} parent=1 // pred_check
      _
    $region63: #{tpu_custom_call.1} parent=1 // pred_check_branch
      %4657 = sbr.rel (0) target = $region65
    $region64: #{tpu_custom_call.1} parent=1 // pred_region
      %4658 = dma.done [#allocation15], 256
    $region65: #{tpu_custom_call.1} parent=1 // pred_fallthru
      _
    %4659 = vsyncpa [#allocation3], 1
    %4660 = vsyncpa [#allocation6], 1
    %4661 = vsyncpa [#allocation9], 1
    %4662 = vsyncpa [#allocation12], 1
    %4663 = vsyncpa [#allocation4], 1
    %4664 = vsyncpa [#allocation15], 1

</llo_original>
